<compile_context>
chip_gen: v5e
topology: v5e:2x2
jax: 0.10.0
libtpu: 0.0.40
codegen_flags: <defaults>
</compile_context>

<pallas_src>
import functools

import jax
import jax.numpy as jnp
from jax.experimental import pallas as pl
from jax.experimental.pallas import tpu as pltpu


# ---------------------------------------------------------------------------
# Fully fused kernel
# ---------------------------------------------------------------------------
def _graph_cls_kernel(x_ref, ei_ref, ea_ref, bcol_ref,
                      w1_ref, b1_ref, w2_ref, b2_ref, p_ref,
                      lw1a_ref, lw1b_ref, lb1_ref,
                      lw2_ref, lb2_ref, lw3_ref, lb3_ref,
                      out_ref, *, ratio):
    f32 = jnp.float32
    bf16 = jnp.bfloat16
    N = x_ref.shape[0]
    E = ea_ref.shape[0]
    H = w1_ref.shape[1]
    num_graphs = out_ref.shape[0]

    # ---- dense normalized adjacency: A_hat = D^-1/2 (A + I) D^-1/2 --------
    # edge list lives in SMEM; A (+ self loops) is built with per-edge masks.
    row_id = jax.lax.broadcasted_iota(jnp.int32, (N, N), 0)      # dst index i
    col_id = jax.lax.broadcasted_iota(jnp.int32, (N, N), 1)      # src index j
    eye = row_id == col_id

    def add_edge(e, a):
        s = ei_ref[0, e]                                          # src node
        d = ei_ref[1, e]                                          # dst node
        w = ea_ref[e]                                             # edge weight
        return a + jnp.where((row_id == d) & (col_id == s), w, 0.0)

    a = jax.lax.fori_loop(0, E, add_edge,
                          jnp.where(eye, 1.0, 0.0).astype(f32), unroll=True)
    deg = jnp.sum(a, axis=1, keepdims=True)                       # (N,1) >= 1
    dinv = jax.lax.rsqrt(deg)                                     # D^-1/2
    a_bf = a.astype(bf16)

    # A_hat @ Y == dinv * (A @ (dinv * Y)); only column-oriented scaling needed.
    def gcn(h, w_ref_, b_ref_):
        xw = jnp.dot(h.astype(bf16), w_ref_[...], preferred_element_type=f32)
        agg = dinv * jnp.dot(a_bf, (dinv * xw).astype(bf16),
                             preferred_element_type=f32)
        return jnp.maximum(agg + b_ref_[...], 0.0)

    x1 = gcn(x_ref[...], w1_ref, b1_ref)                          # (N,H)
    x2 = gcn(x1, w2_ref, b2_ref)
    x3 = gcn(x2, w2_ref, b2_ref)      # forward reuses conv2 (conv3 is unused)

    # ---- TopKPooling score: sigmoid(cat(x1,x2,x3) @ p/||p||) ---------------
    # chunk-wise VPU multiply + lane reduction (no concat, no 1-col matmul).
    p1 = p_ref[:, 0:H]
    p2 = p_ref[:, H:2 * H]
    p3 = p_ref[:, 2 * H:3 * H]
    s_col = (jnp.sum(x1 * p1, axis=1, keepdims=True)
             + jnp.sum(x2 * p2, axis=1, keepdims=True)
             + jnp.sum(x3 * p3, axis=1, keepdims=True))            # (N,1) f32
    score = 1.0 / (1.0 + jnp.exp(-s_col))                          # exact sigmoid

    # ---- per-graph top-k selection (rank < ceil(ratio * n_graph)) ----------
    # exact f32 row-oriented copies via eye-mask + sublane sum ("transpose").
    bcol = bcol_ref[...]                                           # (N,1) graph id
    s_row = jnp.sum(jnp.where(eye, s_col, 0.0), axis=0, keepdims=True)  # (1,N)
    b_row = jnp.sum(jnp.where(eye, bcol, 0.0), axis=0, keepdims=True)   # (1,N)

    same = bcol == b_row                                           # (N,N)
    better = (s_row > s_col) | ((s_row == s_col) & (col_id < row_id))
    rank = jnp.sum(jnp.where(same & better, 1.0, 0.0), axis=1, keepdims=True)
    n_graph = jnp.sum(jnp.where(same, 1.0, 0.0), axis=1, keepdims=True)
    sel = rank < jnp.ceil(ratio * n_graph)                         # (N,1) bool
    # TODO(synk): TopKPooling's filtered edge_index/edge_attr are not rebuilt
    # (they are unused by the remainder of the forward pass).

    # ---- masked per-graph mean / max readout of score-scaled features ------
    xs = (x1 * score, x2 * score, x3 * score)                      # 3 x (N,H)
    neg = jnp.finfo(f32).min
    mean_rows = ([], [], [])
    max_rows = ([], [], [])
    for g in range(num_graphs):                                    # B is static
        m = jnp.where((bcol == float(g)) & sel, 1.0, 0.0)          # (N,1)
        cnt = jnp.sum(m, axis=0, keepdims=True)                    # (1,1)
        inv = 1.0 / jnp.maximum(cnt, 1.0)                          # exact divide
        nonempty = cnt > 0.5
        for c in range(3):
            mean_rows[c].append(jnp.sum(m * xs[c], axis=0, keepdims=True) * inv)
            mx = jnp.max(jnp.where(m > 0.0, xs[c], neg), axis=0, keepdims=True)
            max_rows[c].append(jnp.where(nonempty, mx, 0.0))

    # ---- MLP head: relu(line1) -> relu(line2) -> dropout(p=0) -> line3 -----
    h = lb1_ref[...]                                               # (1,H) bias
    for c in range(3):
        mean_c = jnp.concatenate(mean_rows[c], axis=0)             # (B,H)
        max_c = jnp.concatenate(max_rows[c], axis=0)               # (B,H)
        h = h + jnp.dot(mean_c.astype(bf16), lw1a_ref[c * H:(c + 1) * H, :],
                        preferred_element_type=f32)
        h = h + jnp.dot(max_c.astype(bf16), lw1b_ref[c * H:(c + 1) * H, :],
                        preferred_element_type=f32)
    h = jnp.maximum(h, 0.0)
    h = jnp.maximum(jnp.dot(h.astype(bf16), lw2_ref[...],
                            preferred_element_type=f32) + lb2_ref[...], 0.0)
    out_ref[...] = (jnp.dot(h.astype(bf16), lw3_ref[...],
                            preferred_element_type=f32) + lb3_ref[...])


def _fused_forward(x, edge_index, edge_attr, batch_col,
                   w1, b1, w2, b2, p, lw1a, lw1b, lb1, lw2, lb2, lw3, lb3,
                   *, num_graphs, ratio):
    C = lw3.shape[1]
    vmem = pl.BlockSpec(memory_space=pltpu.MemorySpace.VMEM)
    smem = pl.BlockSpec(memory_space=pltpu.MemorySpace.SMEM)
    kernel = functools.partial(_graph_cls_kernel, ratio=ratio)
    return pl.pallas_call(
        kernel,
        out_shape=jax.ShapeDtypeStruct((num_graphs, C), jnp.float32),
        in_specs=[vmem, smem, smem, vmem,          # x, edge_index, edge_attr, batch
                  vmem, vmem, vmem, vmem, vmem,    # w1, b1, w2, b2, p
                  vmem, vmem, vmem,                # lw1a, lw1b, lb1
                  vmem, vmem, vmem, vmem],         # lw2, lb2, lw3, lb3
        out_specs=vmem,
    )(x, edge_index, edge_attr, batch_col,
      w1, b1, w2, b2, p, lw1a, lw1b, lb1, lw2, lb2, lw3, lb3)


# ---------------------------------------------------------------------------
# Parameter handling
# ---------------------------------------------------------------------------
def init_params(key, hidden=32, in_dim=512):
    """Deterministic synthetic init; shapes mirror GraphCls.__init__."""
    ks = jax.random.split(key, 10)

    def glorot(k, shape):
        lim = jnp.sqrt(6.0 / (shape[0] + shape[1]))
        return jax.random.uniform(k, shape, jnp.float32, -lim, lim)

    H3 = 3 * hidden
    return dict(
        w1=glorot(ks[0], (in_dim, hidden)), b1=jnp.zeros((hidden,), jnp.float32),
        w2=glorot(ks[1], (hidden, hidden)), b2=jnp.zeros((hidden,), jnp.float32),
        # conv3 is initialized but unused by forward (it reuses conv2) - mirrors the module
        w3=glorot(ks[2], (hidden, hidden)), b3=jnp.zeros((hidden,), jnp.float32),
        pool_p=glorot(ks[3], (1, H3)).reshape(H3),
        lw1=glorot(ks[4], (2 * H3, hidden)),
        lb1=0.01 * jax.random.normal(ks[5], (hidden,), jnp.float32),
        lw2=glorot(ks[6], (hidden, hidden // 2)),
        lb2=0.01 * jax.random.normal(ks[7], (hidden // 2,), jnp.float32),
        lw3=glorot(ks[8], (hidden // 2, 3)),
        lb3=0.01 * jax.random.normal(ks[9], (3,), jnp.float32),
    )


def prepare_params(params):
    """One-time preprocessing: bf16 casts, bias reshapes, lw1 split, p/||p||."""
    bf16 = jnp.bfloat16
    f32 = jnp.float32
    H = params["w1"].shape[1]
    F3 = 3 * H
    p = params["pool_p"].astype(f32)
    p_unit = (p / jnp.linalg.norm(p)).reshape(1, F3)
    return dict(
        w1=params["w1"].astype(bf16), b1=params["b1"].astype(f32).reshape(1, H),
        w2=params["w2"].astype(bf16), b2=params["b2"].astype(f32).reshape(1, H),
        p=p_unit,
        lw1a=params["lw1"][:F3].astype(bf16),      # mean half of the readout concat
        lw1b=params["lw1"][F3:].astype(bf16),      # max half
        lb1=params["lb1"].astype(f32).reshape(1, -1),
        lw2=params["lw2"].astype(bf16),
        lb2=params["lb2"].astype(f32).reshape(1, -1),
        lw3=params["lw3"].astype(bf16),
        lb3=params["lb3"].astype(f32).reshape(1, -1),
    )


# ---------------------------------------------------------------------------
# Forward pass (mirrors GraphCls.forward) -- one pallas_call per invocation
# ---------------------------------------------------------------------------
@functools.partial(jax.jit, static_argnames=("num_graphs", "ratio"))
def graph_cls_forward(dev_params, x, edge_index, edge_attr, batch,
                      num_graphs, ratio=0.8):
    N = x.shape[0]
    batch_col = batch.astype(jnp.float32).reshape(N, 1)
    return _fused_forward(
        x.astype(jnp.float32),
        edge_index.astype(jnp.int32),
        edge_attr.astype(jnp.float32),
        batch_col,
        dev_params["w1"], dev_params["b1"], dev_params["w2"], dev_params["b2"],
        dev_params["p"], dev_params["lw1a"], dev_params["lw1b"],
        dev_params["lb1"], dev_params["lw2"], dev_params["lb2"],
        dev_params["lw3"], dev_params["lb3"],
        num_graphs=num_graphs, ratio=ratio)                        # (B, 3)


if __name__ == "__main__":
    key = jax.random.PRNGKey(0)
    k_x, k_e1, k_e2, k_w, k_p = jax.random.split(key, 5)

    hidden = 32
    in_dim = 512
    B = 2                # graphs in the batch
    n_per = 8            # nodes per graph
    N = B * n_per        # total nodes = 16
    E = 40               # total edges (no self loops)

    x = jax.random.normal(k_x, (N, in_dim), jnp.float32)

    src_local = jax.random.randint(k_e1, (E,), 0, n_per)
    off = jax.random.randint(k_e2, (E,), 1, n_per)
    dst_local = (src_local + off) % n_per
    graph_of_edge = jnp.repeat(jnp.arange(B), E // B)
    src = src_local + graph_of_edge * n_per
    dst = dst_local + graph_of_edge * n_per
    edge_index = jnp.stack([src, dst]).astype(jnp.int32)
    edge_attr = jax.random.uniform(k_w, (E,), jnp.float32, 0.5, 1.5)
    batch = jnp.repeat(jnp.arange(B), n_per).astype(jnp.int32)

    params = init_params(k_p, hidden=hidden, in_dim=in_dim)
    dev_params = prepare_params(params)

    out = graph_cls_forward(dev_params, x, edge_index, edge_attr, batch,
                            num_graphs=B)
    jax.block_until_ready(out)
    assert out.shape == (B, 3)
    assert bool(jnp.all(jnp.isfinite(out)))
    print("KERNEL_OK")
</pallas_src>

<mosaic_0001>
module attributes {stable_mosaic.version = 11 : i64} {
  func.func @_graph_cls_kernel(%arg0: memref<16x512xf32, #tpu.memory_space<vmem>>, %arg1: memref<2x40xi32, #tpu.memory_space<smem>>, %arg2: memref<40xf32, #tpu.memory_space<smem>>, %arg3: memref<16x1xf32, #tpu.memory_space<vmem>>, %arg4: memref<512x32xbf16, #tpu.memory_space<vmem>>, %arg5: memref<1x32xf32, #tpu.memory_space<vmem>>, %arg6: memref<32x32xbf16, #tpu.memory_space<vmem>>, %arg7: memref<1x32xf32, #tpu.memory_space<vmem>>, %arg8: memref<1x96xf32, #tpu.memory_space<vmem>>, %arg9: memref<96x32xbf16, #tpu.memory_space<vmem>>, %arg10: memref<96x32xbf16, #tpu.memory_space<vmem>>, %arg11: memref<1x32xf32, #tpu.memory_space<vmem>>, %arg12: memref<32x16xbf16, #tpu.memory_space<vmem>>, %arg13: memref<1x16xf32, #tpu.memory_space<vmem>>, %arg14: memref<16x3xbf16, #tpu.memory_space<vmem>>, %arg15: memref<1x3xf32, #tpu.memory_space<vmem>>, %arg16: memref<2x3xf32, #tpu.memory_space<vmem>>) attributes {dimension_semantics = [], scalar_prefetch = 0 : i64, scratch_operands = 0 : i64, tpu.core_type = #tpu.core_type<tc>} {
    %0 = tpu.iota {dimensions = array<i32: 0>} : vector<16x16xi32>
    %1 = tpu.iota {dimensions = array<i32: 1>} : vector<16x16xi32>
    %2 = arith.cmpi eq, %0, %1 : vector<16x16xi32>
    %cst = arith.constant 1.000000e+00 : f32
    %cst_0 = arith.constant 0.000000e+00 : f32
    %3 = vector.broadcast %cst : f32 to vector<16x16xf32>
    %4 = vector.broadcast %cst_0 : f32 to vector<16x16xf32>
    %5 = arith.select %2, %3, %4 : vector<16x16xi1>, vector<16x16xf32>
    %c0_i32 = arith.constant 0 : i32
    %c0 = arith.constant 0 : index
    %6 = arith.index_cast %c0_i32 : i32 to index
    %7 = memref.load %arg1[%c0, %6] : memref<2x40xi32, #tpu.memory_space<smem>>
    %c1 = arith.constant 1 : index
    %8 = arith.index_cast %c0_i32 : i32 to index
    %9 = memref.load %arg1[%c1, %8] : memref<2x40xi32, #tpu.memory_space<smem>>
    %10 = arith.index_cast %c0_i32 : i32 to index
    %11 = memref.load %arg2[%10] : memref<40xf32, #tpu.memory_space<smem>>
    %12 = vector.broadcast %9 : i32 to vector<16x16xi32>
    %13 = arith.cmpi eq, %0, %12 : vector<16x16xi32>
    %14 = vector.broadcast %7 : i32 to vector<16x16xi32>
    %15 = arith.cmpi eq, %1, %14 : vector<16x16xi32>
    %16 = arith.andi %13, %15 : vector<16x16xi1>
    %cst_1 = arith.constant 0.000000e+00 : f32
    %17 = vector.broadcast %11 : f32 to vector<16x16xf32>
    %18 = vector.broadcast %cst_1 : f32 to vector<16x16xf32>
    %19 = arith.select %16, %17, %18 : vector<16x16xi1>, vector<16x16xf32>
    %20 = arith.addf %5, %19 : vector<16x16xf32>
    %c1_i32 = arith.constant 1 : i32
    %c0_2 = arith.constant 0 : index
    %21 = arith.index_cast %c1_i32 : i32 to index
    %22 = memref.load %arg1[%c0_2, %21] : memref<2x40xi32, #tpu.memory_space<smem>>
    %c1_3 = arith.constant 1 : index
    %23 = arith.index_cast %c1_i32 : i32 to index
    %24 = memref.load %arg1[%c1_3, %23] : memref<2x40xi32, #tpu.memory_space<smem>>
    %25 = arith.index_cast %c1_i32 : i32 to index
    %26 = memref.load %arg2[%25] : memref<40xf32, #tpu.memory_space<smem>>
    %27 = vector.broadcast %24 : i32 to vector<16x16xi32>
    %28 = arith.cmpi eq, %0, %27 : vector<16x16xi32>
    %29 = vector.broadcast %22 : i32 to vector<16x16xi32>
    %30 = arith.cmpi eq, %1, %29 : vector<16x16xi32>
    %31 = arith.andi %28, %30 : vector<16x16xi1>
    %cst_4 = arith.constant 0.000000e+00 : f32
    %32 = vector.broadcast %26 : f32 to vector<16x16xf32>
    %33 = vector.broadcast %cst_4 : f32 to vector<16x16xf32>
    %34 = arith.select %31, %32, %33 : vector<16x16xi1>, vector<16x16xf32>
    %35 = arith.addf %20, %34 : vector<16x16xf32>
    %c2_i32 = arith.constant 2 : i32
    %c0_5 = arith.constant 0 : index
    %36 = arith.index_cast %c2_i32 : i32 to index
    %37 = memref.load %arg1[%c0_5, %36] : memref<2x40xi32, #tpu.memory_space<smem>>
    %c1_6 = arith.constant 1 : index
    %38 = arith.index_cast %c2_i32 : i32 to index
    %39 = memref.load %arg1[%c1_6, %38] : memref<2x40xi32, #tpu.memory_space<smem>>
    %40 = arith.index_cast %c2_i32 : i32 to index
    %41 = memref.load %arg2[%40] : memref<40xf32, #tpu.memory_space<smem>>
    %42 = vector.broadcast %39 : i32 to vector<16x16xi32>
    %43 = arith.cmpi eq, %0, %42 : vector<16x16xi32>
    %44 = vector.broadcast %37 : i32 to vector<16x16xi32>
    %45 = arith.cmpi eq, %1, %44 : vector<16x16xi32>
    %46 = arith.andi %43, %45 : vector<16x16xi1>
    %cst_7 = arith.constant 0.000000e+00 : f32
    %47 = vector.broadcast %41 : f32 to vector<16x16xf32>
    %48 = vector.broadcast %cst_7 : f32 to vector<16x16xf32>
    %49 = arith.select %46, %47, %48 : vector<16x16xi1>, vector<16x16xf32>
    %50 = arith.addf %35, %49 : vector<16x16xf32>
    %c3_i32 = arith.constant 3 : i32
    %c0_8 = arith.constant 0 : index
    %51 = arith.index_cast %c3_i32 : i32 to index
    %52 = memref.load %arg1[%c0_8, %51] : memref<2x40xi32, #tpu.memory_space<smem>>
    %c1_9 = arith.constant 1 : index
    %53 = arith.index_cast %c3_i32 : i32 to index
    %54 = memref.load %arg1[%c1_9, %53] : memref<2x40xi32, #tpu.memory_space<smem>>
    %55 = arith.index_cast %c3_i32 : i32 to index
    %56 = memref.load %arg2[%55] : memref<40xf32, #tpu.memory_space<smem>>
    %57 = vector.broadcast %54 : i32 to vector<16x16xi32>
    %58 = arith.cmpi eq, %0, %57 : vector<16x16xi32>
    %59 = vector.broadcast %52 : i32 to vector<16x16xi32>
    %60 = arith.cmpi eq, %1, %59 : vector<16x16xi32>
    %61 = arith.andi %58, %60 : vector<16x16xi1>
    %cst_10 = arith.constant 0.000000e+00 : f32
    %62 = vector.broadcast %56 : f32 to vector<16x16xf32>
    %63 = vector.broadcast %cst_10 : f32 to vector<16x16xf32>
    %64 = arith.select %61, %62, %63 : vector<16x16xi1>, vector<16x16xf32>
    %65 = arith.addf %50, %64 : vector<16x16xf32>
    %c4_i32 = arith.constant 4 : i32
    %c0_11 = arith.constant 0 : index
    %66 = arith.index_cast %c4_i32 : i32 to index
    %67 = memref.load %arg1[%c0_11, %66] : memref<2x40xi32, #tpu.memory_space<smem>>
    %c1_12 = arith.constant 1 : index
    %68 = arith.index_cast %c4_i32 : i32 to index
    %69 = memref.load %arg1[%c1_12, %68] : memref<2x40xi32, #tpu.memory_space<smem>>
    %70 = arith.index_cast %c4_i32 : i32 to index
    %71 = memref.load %arg2[%70] : memref<40xf32, #tpu.memory_space<smem>>
    %72 = vector.broadcast %69 : i32 to vector<16x16xi32>
    %73 = arith.cmpi eq, %0, %72 : vector<16x16xi32>
    %74 = vector.broadcast %67 : i32 to vector<16x16xi32>
    %75 = arith.cmpi eq, %1, %74 : vector<16x16xi32>
    %76 = arith.andi %73, %75 : vector<16x16xi1>
    %cst_13 = arith.constant 0.000000e+00 : f32
    %77 = vector.broadcast %71 : f32 to vector<16x16xf32>
    %78 = vector.broadcast %cst_13 : f32 to vector<16x16xf32>
    %79 = arith.select %76, %77, %78 : vector<16x16xi1>, vector<16x16xf32>
    %80 = arith.addf %65, %79 : vector<16x16xf32>
    %c5_i32 = arith.constant 5 : i32
    %c0_14 = arith.constant 0 : index
    %81 = arith.index_cast %c5_i32 : i32 to index
    %82 = memref.load %arg1[%c0_14, %81] : memref<2x40xi32, #tpu.memory_space<smem>>
    %c1_15 = arith.constant 1 : index
    %83 = arith.index_cast %c5_i32 : i32 to index
    %84 = memref.load %arg1[%c1_15, %83] : memref<2x40xi32, #tpu.memory_space<smem>>
    %85 = arith.index_cast %c5_i32 : i32 to index
    %86 = memref.load %arg2[%85] : memref<40xf32, #tpu.memory_space<smem>>
    %87 = vector.broadcast %84 : i32 to vector<16x16xi32>
    %88 = arith.cmpi eq, %0, %87 : vector<16x16xi32>
    %89 = vector.broadcast %82 : i32 to vector<16x16xi32>
    %90 = arith.cmpi eq, %1, %89 : vector<16x16xi32>
    %91 = arith.andi %88, %90 : vector<16x16xi1>
    %cst_16 = arith.constant 0.000000e+00 : f32
    %92 = vector.broadcast %86 : f32 to vector<16x16xf32>
    %93 = vector.broadcast %cst_16 : f32 to vector<16x16xf32>
    %94 = arith.select %91, %92, %93 : vector<16x16xi1>, vector<16x16xf32>
    %95 = arith.addf %80, %94 : vector<16x16xf32>
    %c6_i32 = arith.constant 6 : i32
    %c0_17 = arith.constant 0 : index
    %96 = arith.index_cast %c6_i32 : i32 to index
    %97 = memref.load %arg1[%c0_17, %96] : memref<2x40xi32, #tpu.memory_space<smem>>
    %c1_18 = arith.constant 1 : index
    %98 = arith.index_cast %c6_i32 : i32 to index
    %99 = memref.load %arg1[%c1_18, %98] : memref<2x40xi32, #tpu.memory_space<smem>>
    %100 = arith.index_cast %c6_i32 : i32 to index
    %101 = memref.load %arg2[%100] : memref<40xf32, #tpu.memory_space<smem>>
    %102 = vector.broadcast %99 : i32 to vector<16x16xi32>
    %103 = arith.cmpi eq, %0, %102 : vector<16x16xi32>
    %104 = vector.broadcast %97 : i32 to vector<16x16xi32>
    %105 = arith.cmpi eq, %1, %104 : vector<16x16xi32>
    %106 = arith.andi %103, %105 : vector<16x16xi1>
    %cst_19 = arith.constant 0.000000e+00 : f32
    %107 = vector.broadcast %101 : f32 to vector<16x16xf32>
    %108 = vector.broadcast %cst_19 : f32 to vector<16x16xf32>
    %109 = arith.select %106, %107, %108 : vector<16x16xi1>, vector<16x16xf32>
    %110 = arith.addf %95, %109 : vector<16x16xf32>
    %c7_i32 = arith.constant 7 : i32
    %c0_20 = arith.constant 0 : index
    %111 = arith.index_cast %c7_i32 : i32 to index
    %112 = memref.load %arg1[%c0_20, %111] : memref<2x40xi32, #tpu.memory_space<smem>>
    %c1_21 = arith.constant 1 : index
    %113 = arith.index_cast %c7_i32 : i32 to index
    %114 = memref.load %arg1[%c1_21, %113] : memref<2x40xi32, #tpu.memory_space<smem>>
    %115 = arith.index_cast %c7_i32 : i32 to index
    %116 = memref.load %arg2[%115] : memref<40xf32, #tpu.memory_space<smem>>
    %117 = vector.broadcast %114 : i32 to vector<16x16xi32>
    %118 = arith.cmpi eq, %0, %117 : vector<16x16xi32>
    %119 = vector.broadcast %112 : i32 to vector<16x16xi32>
    %120 = arith.cmpi eq, %1, %119 : vector<16x16xi32>
    %121 = arith.andi %118, %120 : vector<16x16xi1>
    %cst_22 = arith.constant 0.000000e+00 : f32
    %122 = vector.broadcast %116 : f32 to vector<16x16xf32>
    %123 = vector.broadcast %cst_22 : f32 to vector<16x16xf32>
    %124 = arith.select %121, %122, %123 : vector<16x16xi1>, vector<16x16xf32>
    %125 = arith.addf %110, %124 : vector<16x16xf32>
    %c8_i32 = arith.constant 8 : i32
    %c0_23 = arith.constant 0 : index
    %126 = arith.index_cast %c8_i32 : i32 to index
    %127 = memref.load %arg1[%c0_23, %126] : memref<2x40xi32, #tpu.memory_space<smem>>
    %c1_24 = arith.constant 1 : index
    %128 = arith.index_cast %c8_i32 : i32 to index
    %129 = memref.load %arg1[%c1_24, %128] : memref<2x40xi32, #tpu.memory_space<smem>>
    %130 = arith.index_cast %c8_i32 : i32 to index
    %131 = memref.load %arg2[%130] : memref<40xf32, #tpu.memory_space<smem>>
    %132 = vector.broadcast %129 : i32 to vector<16x16xi32>
    %133 = arith.cmpi eq, %0, %132 : vector<16x16xi32>
    %134 = vector.broadcast %127 : i32 to vector<16x16xi32>
    %135 = arith.cmpi eq, %1, %134 : vector<16x16xi32>
    %136 = arith.andi %133, %135 : vector<16x16xi1>
    %cst_25 = arith.constant 0.000000e+00 : f32
    %137 = vector.broadcast %131 : f32 to vector<16x16xf32>
    %138 = vector.broadcast %cst_25 : f32 to vector<16x16xf32>
    %139 = arith.select %136, %137, %138 : vector<16x16xi1>, vector<16x16xf32>
    %140 = arith.addf %125, %139 : vector<16x16xf32>
    %c9_i32 = arith.constant 9 : i32
    %c0_26 = arith.constant 0 : index
    %141 = arith.index_cast %c9_i32 : i32 to index
    %142 = memref.load %arg1[%c0_26, %141] : memref<2x40xi32, #tpu.memory_space<smem>>
    %c1_27 = arith.constant 1 : index
    %143 = arith.index_cast %c9_i32 : i32 to index
    %144 = memref.load %arg1[%c1_27, %143] : memref<2x40xi32, #tpu.memory_space<smem>>
    %145 = arith.index_cast %c9_i32 : i32 to index
    %146 = memref.load %arg2[%145] : memref<40xf32, #tpu.memory_space<smem>>
    %147 = vector.broadcast %144 : i32 to vector<16x16xi32>
    %148 = arith.cmpi eq, %0, %147 : vector<16x16xi32>
    %149 = vector.broadcast %142 : i32 to vector<16x16xi32>
    %150 = arith.cmpi eq, %1, %149 : vector<16x16xi32>
    %151 = arith.andi %148, %150 : vector<16x16xi1>
    %cst_28 = arith.constant 0.000000e+00 : f32
    %152 = vector.broadcast %146 : f32 to vector<16x16xf32>
    %153 = vector.broadcast %cst_28 : f32 to vector<16x16xf32>
    %154 = arith.select %151, %152, %153 : vector<16x16xi1>, vector<16x16xf32>
    %155 = arith.addf %140, %154 : vector<16x16xf32>
    %c10_i32 = arith.constant 10 : i32
    %c0_29 = arith.constant 0 : index
    %156 = arith.index_cast %c10_i32 : i32 to index
    %157 = memref.load %arg1[%c0_29, %156] : memref<2x40xi32, #tpu.memory_space<smem>>
    %c1_30 = arith.constant 1 : index
    %158 = arith.index_cast %c10_i32 : i32 to index
    %159 = memref.load %arg1[%c1_30, %158] : memref<2x40xi32, #tpu.memory_space<smem>>
    %160 = arith.index_cast %c10_i32 : i32 to index
    %161 = memref.load %arg2[%160] : memref<40xf32, #tpu.memory_space<smem>>
    %162 = vector.broadcast %159 : i32 to vector<16x16xi32>
    %163 = arith.cmpi eq, %0, %162 : vector<16x16xi32>
    %164 = vector.broadcast %157 : i32 to vector<16x16xi32>
    %165 = arith.cmpi eq, %1, %164 : vector<16x16xi32>
    %166 = arith.andi %163, %165 : vector<16x16xi1>
    %cst_31 = arith.constant 0.000000e+00 : f32
    %167 = vector.broadcast %161 : f32 to vector<16x16xf32>
    %168 = vector.broadcast %cst_31 : f32 to vector<16x16xf32>
    %169 = arith.select %166, %167, %168 : vector<16x16xi1>, vector<16x16xf32>
    %170 = arith.addf %155, %169 : vector<16x16xf32>
    %c11_i32 = arith.constant 11 : i32
    %c0_32 = arith.constant 0 : index
    %171 = arith.index_cast %c11_i32 : i32 to index
    %172 = memref.load %arg1[%c0_32, %171] : memref<2x40xi32, #tpu.memory_space<smem>>
    %c1_33 = arith.constant 1 : index
    %173 = arith.index_cast %c11_i32 : i32 to index
    %174 = memref.load %arg1[%c1_33, %173] : memref<2x40xi32, #tpu.memory_space<smem>>
    %175 = arith.index_cast %c11_i32 : i32 to index
    %176 = memref.load %arg2[%175] : memref<40xf32, #tpu.memory_space<smem>>
    %177 = vector.broadcast %174 : i32 to vector<16x16xi32>
    %178 = arith.cmpi eq, %0, %177 : vector<16x16xi32>
    %179 = vector.broadcast %172 : i32 to vector<16x16xi32>
    %180 = arith.cmpi eq, %1, %179 : vector<16x16xi32>
    %181 = arith.andi %178, %180 : vector<16x16xi1>
    %cst_34 = arith.constant 0.000000e+00 : f32
    %182 = vector.broadcast %176 : f32 to vector<16x16xf32>
    %183 = vector.broadcast %cst_34 : f32 to vector<16x16xf32>
    %184 = arith.select %181, %182, %183 : vector<16x16xi1>, vector<16x16xf32>
    %185 = arith.addf %170, %184 : vector<16x16xf32>
    %c12_i32 = arith.constant 12 : i32
    %c0_35 = arith.constant 0 : index
    %186 = arith.index_cast %c12_i32 : i32 to index
    %187 = memref.load %arg1[%c0_35, %186] : memref<2x40xi32, #tpu.memory_space<smem>>
    %c1_36 = arith.constant 1 : index
    %188 = arith.index_cast %c12_i32 : i32 to index
    %189 = memref.load %arg1[%c1_36, %188] : memref<2x40xi32, #tpu.memory_space<smem>>
    %190 = arith.index_cast %c12_i32 : i32 to index
    %191 = memref.load %arg2[%190] : memref<40xf32, #tpu.memory_space<smem>>
    %192 = vector.broadcast %189 : i32 to vector<16x16xi32>
    %193 = arith.cmpi eq, %0, %192 : vector<16x16xi32>
    %194 = vector.broadcast %187 : i32 to vector<16x16xi32>
    %195 = arith.cmpi eq, %1, %194 : vector<16x16xi32>
    %196 = arith.andi %193, %195 : vector<16x16xi1>
    %cst_37 = arith.constant 0.000000e+00 : f32
    %197 = vector.broadcast %191 : f32 to vector<16x16xf32>
    %198 = vector.broadcast %cst_37 : f32 to vector<16x16xf32>
    %199 = arith.select %196, %197, %198 : vector<16x16xi1>, vector<16x16xf32>
    %200 = arith.addf %185, %199 : vector<16x16xf32>
    %c13_i32 = arith.constant 13 : i32
    %c0_38 = arith.constant 0 : index
    %201 = arith.index_cast %c13_i32 : i32 to index
    %202 = memref.load %arg1[%c0_38, %201] : memref<2x40xi32, #tpu.memory_space<smem>>
    %c1_39 = arith.constant 1 : index
    %203 = arith.index_cast %c13_i32 : i32 to index
    %204 = memref.load %arg1[%c1_39, %203] : memref<2x40xi32, #tpu.memory_space<smem>>
    %205 = arith.index_cast %c13_i32 : i32 to index
    %206 = memref.load %arg2[%205] : memref<40xf32, #tpu.memory_space<smem>>
    %207 = vector.broadcast %204 : i32 to vector<16x16xi32>
    %208 = arith.cmpi eq, %0, %207 : vector<16x16xi32>
    %209 = vector.broadcast %202 : i32 to vector<16x16xi32>
    %210 = arith.cmpi eq, %1, %209 : vector<16x16xi32>
    %211 = arith.andi %208, %210 : vector<16x16xi1>
    %cst_40 = arith.constant 0.000000e+00 : f32
    %212 = vector.broadcast %206 : f32 to vector<16x16xf32>
    %213 = vector.broadcast %cst_40 : f32 to vector<16x16xf32>
    %214 = arith.select %211, %212, %213 : vector<16x16xi1>, vector<16x16xf32>
    %215 = arith.addf %200, %214 : vector<16x16xf32>
    %c14_i32 = arith.constant 14 : i32
    %c0_41 = arith.constant 0 : index
    %216 = arith.index_cast %c14_i32 : i32 to index
    %217 = memref.load %arg1[%c0_41, %216] : memref<2x40xi32, #tpu.memory_space<smem>>
    %c1_42 = arith.constant 1 : index
    %218 = arith.index_cast %c14_i32 : i32 to index
    %219 = memref.load %arg1[%c1_42, %218] : memref<2x40xi32, #tpu.memory_space<smem>>
    %220 = arith.index_cast %c14_i32 : i32 to index
    %221 = memref.load %arg2[%220] : memref<40xf32, #tpu.memory_space<smem>>
    %222 = vector.broadcast %219 : i32 to vector<16x16xi32>
    %223 = arith.cmpi eq, %0, %222 : vector<16x16xi32>
    %224 = vector.broadcast %217 : i32 to vector<16x16xi32>
    %225 = arith.cmpi eq, %1, %224 : vector<16x16xi32>
    %226 = arith.andi %223, %225 : vector<16x16xi1>
    %cst_43 = arith.constant 0.000000e+00 : f32
    %227 = vector.broadcast %221 : f32 to vector<16x16xf32>
    %228 = vector.broadcast %cst_43 : f32 to vector<16x16xf32>
    %229 = arith.select %226, %227, %228 : vector<16x16xi1>, vector<16x16xf32>
    %230 = arith.addf %215, %229 : vector<16x16xf32>
    %c15_i32 = arith.constant 15 : i32
    %c0_44 = arith.constant 0 : index
    %231 = arith.index_cast %c15_i32 : i32 to index
    %232 = memref.load %arg1[%c0_44, %231] : memref<2x40xi32, #tpu.memory_space<smem>>
    %c1_45 = arith.constant 1 : index
    %233 = arith.index_cast %c15_i32 : i32 to index
    %234 = memref.load %arg1[%c1_45, %233] : memref<2x40xi32, #tpu.memory_space<smem>>
    %235 = arith.index_cast %c15_i32 : i32 to index
    %236 = memref.load %arg2[%235] : memref<40xf32, #tpu.memory_space<smem>>
    %237 = vector.broadcast %234 : i32 to vector<16x16xi32>
    %238 = arith.cmpi eq, %0, %237 : vector<16x16xi32>
    %239 = vector.broadcast %232 : i32 to vector<16x16xi32>
    %240 = arith.cmpi eq, %1, %239 : vector<16x16xi32>
    %241 = arith.andi %238, %240 : vector<16x16xi1>
    %cst_46 = arith.constant 0.000000e+00 : f32
    %242 = vector.broadcast %236 : f32 to vector<16x16xf32>
    %243 = vector.broadcast %cst_46 : f32 to vector<16x16xf32>
    %244 = arith.select %241, %242, %243 : vector<16x16xi1>, vector<16x16xf32>
    %245 = arith.addf %230, %244 : vector<16x16xf32>
    %c16_i32 = arith.constant 16 : i32
    %c0_47 = arith.constant 0 : index
    %246 = arith.index_cast %c16_i32 : i32 to index
    %247 = memref.load %arg1[%c0_47, %246] : memref<2x40xi32, #tpu.memory_space<smem>>
    %c1_48 = arith.constant 1 : index
    %248 = arith.index_cast %c16_i32 : i32 to index
    %249 = memref.load %arg1[%c1_48, %248] : memref<2x40xi32, #tpu.memory_space<smem>>
    %250 = arith.index_cast %c16_i32 : i32 to index
    %251 = memref.load %arg2[%250] : memref<40xf32, #tpu.memory_space<smem>>
    %252 = vector.broadcast %249 : i32 to vector<16x16xi32>
    %253 = arith.cmpi eq, %0, %252 : vector<16x16xi32>
    %254 = vector.broadcast %247 : i32 to vector<16x16xi32>
    %255 = arith.cmpi eq, %1, %254 : vector<16x16xi32>
    %256 = arith.andi %253, %255 : vector<16x16xi1>
    %cst_49 = arith.constant 0.000000e+00 : f32
    %257 = vector.broadcast %251 : f32 to vector<16x16xf32>
    %258 = vector.broadcast %cst_49 : f32 to vector<16x16xf32>
    %259 = arith.select %256, %257, %258 : vector<16x16xi1>, vector<16x16xf32>
    %260 = arith.addf %245, %259 : vector<16x16xf32>
    %c17_i32 = arith.constant 17 : i32
    %c0_50 = arith.constant 0 : index
    %261 = arith.index_cast %c17_i32 : i32 to index
    %262 = memref.load %arg1[%c0_50, %261] : memref<2x40xi32, #tpu.memory_space<smem>>
    %c1_51 = arith.constant 1 : index
    %263 = arith.index_cast %c17_i32 : i32 to index
    %264 = memref.load %arg1[%c1_51, %263] : memref<2x40xi32, #tpu.memory_space<smem>>
    %265 = arith.index_cast %c17_i32 : i32 to index
    %266 = memref.load %arg2[%265] : memref<40xf32, #tpu.memory_space<smem>>
    %267 = vector.broadcast %264 : i32 to vector<16x16xi32>
    %268 = arith.cmpi eq, %0, %267 : vector<16x16xi32>
    %269 = vector.broadcast %262 : i32 to vector<16x16xi32>
    %270 = arith.cmpi eq, %1, %269 : vector<16x16xi32>
    %271 = arith.andi %268, %270 : vector<16x16xi1>
    %cst_52 = arith.constant 0.000000e+00 : f32
    %272 = vector.broadcast %266 : f32 to vector<16x16xf32>
    %273 = vector.broadcast %cst_52 : f32 to vector<16x16xf32>
    %274 = arith.select %271, %272, %273 : vector<16x16xi1>, vector<16x16xf32>
    %275 = arith.addf %260, %274 : vector<16x16xf32>
    %c18_i32 = arith.constant 18 : i32
    %c0_53 = arith.constant 0 : index
    %276 = arith.index_cast %c18_i32 : i32 to index
    %277 = memref.load %arg1[%c0_53, %276] : memref<2x40xi32, #tpu.memory_space<smem>>
    %c1_54 = arith.constant 1 : index
    %278 = arith.index_cast %c18_i32 : i32 to index
    %279 = memref.load %arg1[%c1_54, %278] : memref<2x40xi32, #tpu.memory_space<smem>>
    %280 = arith.index_cast %c18_i32 : i32 to index
    %281 = memref.load %arg2[%280] : memref<40xf32, #tpu.memory_space<smem>>
    %282 = vector.broadcast %279 : i32 to vector<16x16xi32>
    %283 = arith.cmpi eq, %0, %282 : vector<16x16xi32>
    %284 = vector.broadcast %277 : i32 to vector<16x16xi32>
    %285 = arith.cmpi eq, %1, %284 : vector<16x16xi32>
    %286 = arith.andi %283, %285 : vector<16x16xi1>
    %cst_55 = arith.constant 0.000000e+00 : f32
    %287 = vector.broadcast %281 : f32 to vector<16x16xf32>
    %288 = vector.broadcast %cst_55 : f32 to vector<16x16xf32>
    %289 = arith.select %286, %287, %288 : vector<16x16xi1>, vector<16x16xf32>
    %290 = arith.addf %275, %289 : vector<16x16xf32>
    %c19_i32 = arith.constant 19 : i32
    %c0_56 = arith.constant 0 : index
    %291 = arith.index_cast %c19_i32 : i32 to index
    %292 = memref.load %arg1[%c0_56, %291] : memref<2x40xi32, #tpu.memory_space<smem>>
    %c1_57 = arith.constant 1 : index
    %293 = arith.index_cast %c19_i32 : i32 to index
    %294 = memref.load %arg1[%c1_57, %293] : memref<2x40xi32, #tpu.memory_space<smem>>
    %295 = arith.index_cast %c19_i32 : i32 to index
    %296 = memref.load %arg2[%295] : memref<40xf32, #tpu.memory_space<smem>>
    %297 = vector.broadcast %294 : i32 to vector<16x16xi32>
    %298 = arith.cmpi eq, %0, %297 : vector<16x16xi32>
    %299 = vector.broadcast %292 : i32 to vector<16x16xi32>
    %300 = arith.cmpi eq, %1, %299 : vector<16x16xi32>
    %301 = arith.andi %298, %300 : vector<16x16xi1>
    %cst_58 = arith.constant 0.000000e+00 : f32
    %302 = vector.broadcast %296 : f32 to vector<16x16xf32>
    %303 = vector.broadcast %cst_58 : f32 to vector<16x16xf32>
    %304 = arith.select %301, %302, %303 : vector<16x16xi1>, vector<16x16xf32>
    %305 = arith.addf %290, %304 : vector<16x16xf32>
    %c20_i32 = arith.constant 20 : i32
    %c0_59 = arith.constant 0 : index
    %306 = arith.index_cast %c20_i32 : i32 to index
    %307 = memref.load %arg1[%c0_59, %306] : memref<2x40xi32, #tpu.memory_space<smem>>
    %c1_60 = arith.constant 1 : index
    %308 = arith.index_cast %c20_i32 : i32 to index
    %309 = memref.load %arg1[%c1_60, %308] : memref<2x40xi32, #tpu.memory_space<smem>>
    %310 = arith.index_cast %c20_i32 : i32 to index
    %311 = memref.load %arg2[%310] : memref<40xf32, #tpu.memory_space<smem>>
    %312 = vector.broadcast %309 : i32 to vector<16x16xi32>
    %313 = arith.cmpi eq, %0, %312 : vector<16x16xi32>
    %314 = vector.broadcast %307 : i32 to vector<16x16xi32>
    %315 = arith.cmpi eq, %1, %314 : vector<16x16xi32>
    %316 = arith.andi %313, %315 : vector<16x16xi1>
    %cst_61 = arith.constant 0.000000e+00 : f32
    %317 = vector.broadcast %311 : f32 to vector<16x16xf32>
    %318 = vector.broadcast %cst_61 : f32 to vector<16x16xf32>
    %319 = arith.select %316, %317, %318 : vector<16x16xi1>, vector<16x16xf32>
    %320 = arith.addf %305, %319 : vector<16x16xf32>
    %c21_i32 = arith.constant 21 : i32
    %c0_62 = arith.constant 0 : index
    %321 = arith.index_cast %c21_i32 : i32 to index
    %322 = memref.load %arg1[%c0_62, %321] : memref<2x40xi32, #tpu.memory_space<smem>>
    %c1_63 = arith.constant 1 : index
    %323 = arith.index_cast %c21_i32 : i32 to index
    %324 = memref.load %arg1[%c1_63, %323] : memref<2x40xi32, #tpu.memory_space<smem>>
    %325 = arith.index_cast %c21_i32 : i32 to index
    %326 = memref.load %arg2[%325] : memref<40xf32, #tpu.memory_space<smem>>
    %327 = vector.broadcast %324 : i32 to vector<16x16xi32>
    %328 = arith.cmpi eq, %0, %327 : vector<16x16xi32>
    %329 = vector.broadcast %322 : i32 to vector<16x16xi32>
    %330 = arith.cmpi eq, %1, %329 : vector<16x16xi32>
    %331 = arith.andi %328, %330 : vector<16x16xi1>
    %cst_64 = arith.constant 0.000000e+00 : f32
    %332 = vector.broadcast %326 : f32 to vector<16x16xf32>
    %333 = vector.broadcast %cst_64 : f32 to vector<16x16xf32>
    %334 = arith.select %331, %332, %333 : vector<16x16xi1>, vector<16x16xf32>
    %335 = arith.addf %320, %334 : vector<16x16xf32>
    %c22_i32 = arith.constant 22 : i32
    %c0_65 = arith.constant 0 : index
    %336 = arith.index_cast %c22_i32 : i32 to index
    %337 = memref.load %arg1[%c0_65, %336] : memref<2x40xi32, #tpu.memory_space<smem>>
    %c1_66 = arith.constant 1 : index
    %338 = arith.index_cast %c22_i32 : i32 to index
    %339 = memref.load %arg1[%c1_66, %338] : memref<2x40xi32, #tpu.memory_space<smem>>
    %340 = arith.index_cast %c22_i32 : i32 to index
    %341 = memref.load %arg2[%340] : memref<40xf32, #tpu.memory_space<smem>>
    %342 = vector.broadcast %339 : i32 to vector<16x16xi32>
    %343 = arith.cmpi eq, %0, %342 : vector<16x16xi32>
    %344 = vector.broadcast %337 : i32 to vector<16x16xi32>
    %345 = arith.cmpi eq, %1, %344 : vector<16x16xi32>
    %346 = arith.andi %343, %345 : vector<16x16xi1>
    %cst_67 = arith.constant 0.000000e+00 : f32
    %347 = vector.broadcast %341 : f32 to vector<16x16xf32>
    %348 = vector.broadcast %cst_67 : f32 to vector<16x16xf32>
    %349 = arith.select %346, %347, %348 : vector<16x16xi1>, vector<16x16xf32>
    %350 = arith.addf %335, %349 : vector<16x16xf32>
    %c23_i32 = arith.constant 23 : i32
    %c0_68 = arith.constant 0 : index
    %351 = arith.index_cast %c23_i32 : i32 to index
    %352 = memref.load %arg1[%c0_68, %351] : memref<2x40xi32, #tpu.memory_space<smem>>
    %c1_69 = arith.constant 1 : index
    %353 = arith.index_cast %c23_i32 : i32 to index
    %354 = memref.load %arg1[%c1_69, %353] : memref<2x40xi32, #tpu.memory_space<smem>>
    %355 = arith.index_cast %c23_i32 : i32 to index
    %356 = memref.load %arg2[%355] : memref<40xf32, #tpu.memory_space<smem>>
    %357 = vector.broadcast %354 : i32 to vector<16x16xi32>
    %358 = arith.cmpi eq, %0, %357 : vector<16x16xi32>
    %359 = vector.broadcast %352 : i32 to vector<16x16xi32>
    %360 = arith.cmpi eq, %1, %359 : vector<16x16xi32>
    %361 = arith.andi %358, %360 : vector<16x16xi1>
    %cst_70 = arith.constant 0.000000e+00 : f32
    %362 = vector.broadcast %356 : f32 to vector<16x16xf32>
    %363 = vector.broadcast %cst_70 : f32 to vector<16x16xf32>
    %364 = arith.select %361, %362, %363 : vector<16x16xi1>, vector<16x16xf32>
    %365 = arith.addf %350, %364 : vector<16x16xf32>
    %c24_i32 = arith.constant 24 : i32
    %c0_71 = arith.constant 0 : index
    %366 = arith.index_cast %c24_i32 : i32 to index
    %367 = memref.load %arg1[%c0_71, %366] : memref<2x40xi32, #tpu.memory_space<smem>>
    %c1_72 = arith.constant 1 : index
    %368 = arith.index_cast %c24_i32 : i32 to index
    %369 = memref.load %arg1[%c1_72, %368] : memref<2x40xi32, #tpu.memory_space<smem>>
    %370 = arith.index_cast %c24_i32 : i32 to index
    %371 = memref.load %arg2[%370] : memref<40xf32, #tpu.memory_space<smem>>
    %372 = vector.broadcast %369 : i32 to vector<16x16xi32>
    %373 = arith.cmpi eq, %0, %372 : vector<16x16xi32>
    %374 = vector.broadcast %367 : i32 to vector<16x16xi32>
    %375 = arith.cmpi eq, %1, %374 : vector<16x16xi32>
    %376 = arith.andi %373, %375 : vector<16x16xi1>
    %cst_73 = arith.constant 0.000000e+00 : f32
    %377 = vector.broadcast %371 : f32 to vector<16x16xf32>
    %378 = vector.broadcast %cst_73 : f32 to vector<16x16xf32>
    %379 = arith.select %376, %377, %378 : vector<16x16xi1>, vector<16x16xf32>
    %380 = arith.addf %365, %379 : vector<16x16xf32>
    %c25_i32 = arith.constant 25 : i32
    %c0_74 = arith.constant 0 : index
    %381 = arith.index_cast %c25_i32 : i32 to index
    %382 = memref.load %arg1[%c0_74, %381] : memref<2x40xi32, #tpu.memory_space<smem>>
    %c1_75 = arith.constant 1 : index
    %383 = arith.index_cast %c25_i32 : i32 to index
    %384 = memref.load %arg1[%c1_75, %383] : memref<2x40xi32, #tpu.memory_space<smem>>
    %385 = arith.index_cast %c25_i32 : i32 to index
    %386 = memref.load %arg2[%385] : memref<40xf32, #tpu.memory_space<smem>>
    %387 = vector.broadcast %384 : i32 to vector<16x16xi32>
    %388 = arith.cmpi eq, %0, %387 : vector<16x16xi32>
    %389 = vector.broadcast %382 : i32 to vector<16x16xi32>
    %390 = arith.cmpi eq, %1, %389 : vector<16x16xi32>
    %391 = arith.andi %388, %390 : vector<16x16xi1>
    %cst_76 = arith.constant 0.000000e+00 : f32
    %392 = vector.broadcast %386 : f32 to vector<16x16xf32>
    %393 = vector.broadcast %cst_76 : f32 to vector<16x16xf32>
    %394 = arith.select %391, %392, %393 : vector<16x16xi1>, vector<16x16xf32>
    %395 = arith.addf %380, %394 : vector<16x16xf32>
    %c26_i32 = arith.constant 26 : i32
    %c0_77 = arith.constant 0 : index
    %396 = arith.index_cast %c26_i32 : i32 to index
    %397 = memref.load %arg1[%c0_77, %396] : memref<2x40xi32, #tpu.memory_space<smem>>
    %c1_78 = arith.constant 1 : index
    %398 = arith.index_cast %c26_i32 : i32 to index
    %399 = memref.load %arg1[%c1_78, %398] : memref<2x40xi32, #tpu.memory_space<smem>>
    %400 = arith.index_cast %c26_i32 : i32 to index
    %401 = memref.load %arg2[%400] : memref<40xf32, #tpu.memory_space<smem>>
    %402 = vector.broadcast %399 : i32 to vector<16x16xi32>
    %403 = arith.cmpi eq, %0, %402 : vector<16x16xi32>
    %404 = vector.broadcast %397 : i32 to vector<16x16xi32>
    %405 = arith.cmpi eq, %1, %404 : vector<16x16xi32>
    %406 = arith.andi %403, %405 : vector<16x16xi1>
    %cst_79 = arith.constant 0.000000e+00 : f32
    %407 = vector.broadcast %401 : f32 to vector<16x16xf32>
    %408 = vector.broadcast %cst_79 : f32 to vector<16x16xf32>
    %409 = arith.select %406, %407, %408 : vector<16x16xi1>, vector<16x16xf32>
    %410 = arith.addf %395, %409 : vector<16x16xf32>
    %c27_i32 = arith.constant 27 : i32
    %c0_80 = arith.constant 0 : index
    %411 = arith.index_cast %c27_i32 : i32 to index
    %412 = memref.load %arg1[%c0_80, %411] : memref<2x40xi32, #tpu.memory_space<smem>>
    %c1_81 = arith.constant 1 : index
    %413 = arith.index_cast %c27_i32 : i32 to index
    %414 = memref.load %arg1[%c1_81, %413] : memref<2x40xi32, #tpu.memory_space<smem>>
    %415 = arith.index_cast %c27_i32 : i32 to index
    %416 = memref.load %arg2[%415] : memref<40xf32, #tpu.memory_space<smem>>
    %417 = vector.broadcast %414 : i32 to vector<16x16xi32>
    %418 = arith.cmpi eq, %0, %417 : vector<16x16xi32>
    %419 = vector.broadcast %412 : i32 to vector<16x16xi32>
    %420 = arith.cmpi eq, %1, %419 : vector<16x16xi32>
    %421 = arith.andi %418, %420 : vector<16x16xi1>
    %cst_82 = arith.constant 0.000000e+00 : f32
    %422 = vector.broadcast %416 : f32 to vector<16x16xf32>
    %423 = vector.broadcast %cst_82 : f32 to vector<16x16xf32>
    %424 = arith.select %421, %422, %423 : vector<16x16xi1>, vector<16x16xf32>
    %425 = arith.addf %410, %424 : vector<16x16xf32>
    %c28_i32 = arith.constant 28 : i32
    %c0_83 = arith.constant 0 : index
    %426 = arith.index_cast %c28_i32 : i32 to index
    %427 = memref.load %arg1[%c0_83, %426] : memref<2x40xi32, #tpu.memory_space<smem>>
    %c1_84 = arith.constant 1 : index
    %428 = arith.index_cast %c28_i32 : i32 to index
    %429 = memref.load %arg1[%c1_84, %428] : memref<2x40xi32, #tpu.memory_space<smem>>
    %430 = arith.index_cast %c28_i32 : i32 to index
    %431 = memref.load %arg2[%430] : memref<40xf32, #tpu.memory_space<smem>>
    %432 = vector.broadcast %429 : i32 to vector<16x16xi32>
    %433 = arith.cmpi eq, %0, %432 : vector<16x16xi32>
    %434 = vector.broadcast %427 : i32 to vector<16x16xi32>
    %435 = arith.cmpi eq, %1, %434 : vector<16x16xi32>
    %436 = arith.andi %433, %435 : vector<16x16xi1>
    %cst_85 = arith.constant 0.000000e+00 : f32
    %437 = vector.broadcast %431 : f32 to vector<16x16xf32>
    %438 = vector.broadcast %cst_85 : f32 to vector<16x16xf32>
    %439 = arith.select %436, %437, %438 : vector<16x16xi1>, vector<16x16xf32>
    %440 = arith.addf %425, %439 : vector<16x16xf32>
    %c29_i32 = arith.constant 29 : i32
    %c0_86 = arith.constant 0 : index
    %441 = arith.index_cast %c29_i32 : i32 to index
    %442 = memref.load %arg1[%c0_86, %441] : memref<2x40xi32, #tpu.memory_space<smem>>
    %c1_87 = arith.constant 1 : index
    %443 = arith.index_cast %c29_i32 : i32 to index
    %444 = memref.load %arg1[%c1_87, %443] : memref<2x40xi32, #tpu.memory_space<smem>>
    %445 = arith.index_cast %c29_i32 : i32 to index
    %446 = memref.load %arg2[%445] : memref<40xf32, #tpu.memory_space<smem>>
    %447 = vector.broadcast %444 : i32 to vector<16x16xi32>
    %448 = arith.cmpi eq, %0, %447 : vector<16x16xi32>
    %449 = vector.broadcast %442 : i32 to vector<16x16xi32>
    %450 = arith.cmpi eq, %1, %449 : vector<16x16xi32>
    %451 = arith.andi %448, %450 : vector<16x16xi1>
    %cst_88 = arith.constant 0.000000e+00 : f32
    %452 = vector.broadcast %446 : f32 to vector<16x16xf32>
    %453 = vector.broadcast %cst_88 : f32 to vector<16x16xf32>
    %454 = arith.select %451, %452, %453 : vector<16x16xi1>, vector<16x16xf32>
    %455 = arith.addf %440, %454 : vector<16x16xf32>
    %c30_i32 = arith.constant 30 : i32
    %c0_89 = arith.constant 0 : index
    %456 = arith.index_cast %c30_i32 : i32 to index
    %457 = memref.load %arg1[%c0_89, %456] : memref<2x40xi32, #tpu.memory_space<smem>>
    %c1_90 = arith.constant 1 : index
    %458 = arith.index_cast %c30_i32 : i32 to index
    %459 = memref.load %arg1[%c1_90, %458] : memref<2x40xi32, #tpu.memory_space<smem>>
    %460 = arith.index_cast %c30_i32 : i32 to index
    %461 = memref.load %arg2[%460] : memref<40xf32, #tpu.memory_space<smem>>
    %462 = vector.broadcast %459 : i32 to vector<16x16xi32>
    %463 = arith.cmpi eq, %0, %462 : vector<16x16xi32>
    %464 = vector.broadcast %457 : i32 to vector<16x16xi32>
    %465 = arith.cmpi eq, %1, %464 : vector<16x16xi32>
    %466 = arith.andi %463, %465 : vector<16x16xi1>
    %cst_91 = arith.constant 0.000000e+00 : f32
    %467 = vector.broadcast %461 : f32 to vector<16x16xf32>
    %468 = vector.broadcast %cst_91 : f32 to vector<16x16xf32>
    %469 = arith.select %466, %467, %468 : vector<16x16xi1>, vector<16x16xf32>
    %470 = arith.addf %455, %469 : vector<16x16xf32>
    %c31_i32 = arith.constant 31 : i32
    %c0_92 = arith.constant 0 : index
    %471 = arith.index_cast %c31_i32 : i32 to index
    %472 = memref.load %arg1[%c0_92, %471] : memref<2x40xi32, #tpu.memory_space<smem>>
    %c1_93 = arith.constant 1 : index
    %473 = arith.index_cast %c31_i32 : i32 to index
    %474 = memref.load %arg1[%c1_93, %473] : memref<2x40xi32, #tpu.memory_space<smem>>
    %475 = arith.index_cast %c31_i32 : i32 to index
    %476 = memref.load %arg2[%475] : memref<40xf32, #tpu.memory_space<smem>>
    %477 = vector.broadcast %474 : i32 to vector<16x16xi32>
    %478 = arith.cmpi eq, %0, %477 : vector<16x16xi32>
    %479 = vector.broadcast %472 : i32 to vector<16x16xi32>
    %480 = arith.cmpi eq, %1, %479 : vector<16x16xi32>
    %481 = arith.andi %478, %480 : vector<16x16xi1>
    %cst_94 = arith.constant 0.000000e+00 : f32
    %482 = vector.broadcast %476 : f32 to vector<16x16xf32>
    %483 = vector.broadcast %cst_94 : f32 to vector<16x16xf32>
    %484 = arith.select %481, %482, %483 : vector<16x16xi1>, vector<16x16xf32>
    %485 = arith.addf %470, %484 : vector<16x16xf32>
    %c32_i32 = arith.constant 32 : i32
    %c0_95 = arith.constant 0 : index
    %486 = arith.index_cast %c32_i32 : i32 to index
    %487 = memref.load %arg1[%c0_95, %486] : memref<2x40xi32, #tpu.memory_space<smem>>
    %c1_96 = arith.constant 1 : index
    %488 = arith.index_cast %c32_i32 : i32 to index
    %489 = memref.load %arg1[%c1_96, %488] : memref<2x40xi32, #tpu.memory_space<smem>>
    %490 = arith.index_cast %c32_i32 : i32 to index
    %491 = memref.load %arg2[%490] : memref<40xf32, #tpu.memory_space<smem>>
    %492 = vector.broadcast %489 : i32 to vector<16x16xi32>
    %493 = arith.cmpi eq, %0, %492 : vector<16x16xi32>
    %494 = vector.broadcast %487 : i32 to vector<16x16xi32>
    %495 = arith.cmpi eq, %1, %494 : vector<16x16xi32>
    %496 = arith.andi %493, %495 : vector<16x16xi1>
    %cst_97 = arith.constant 0.000000e+00 : f32
    %497 = vector.broadcast %491 : f32 to vector<16x16xf32>
    %498 = vector.broadcast %cst_97 : f32 to vector<16x16xf32>
    %499 = arith.select %496, %497, %498 : vector<16x16xi1>, vector<16x16xf32>
    %500 = arith.addf %485, %499 : vector<16x16xf32>
    %c33_i32 = arith.constant 33 : i32
    %c0_98 = arith.constant 0 : index
    %501 = arith.index_cast %c33_i32 : i32 to index
    %502 = memref.load %arg1[%c0_98, %501] : memref<2x40xi32, #tpu.memory_space<smem>>
    %c1_99 = arith.constant 1 : index
    %503 = arith.index_cast %c33_i32 : i32 to index
    %504 = memref.load %arg1[%c1_99, %503] : memref<2x40xi32, #tpu.memory_space<smem>>
    %505 = arith.index_cast %c33_i32 : i32 to index
    %506 = memref.load %arg2[%505] : memref<40xf32, #tpu.memory_space<smem>>
    %507 = vector.broadcast %504 : i32 to vector<16x16xi32>
    %508 = arith.cmpi eq, %0, %507 : vector<16x16xi32>
    %509 = vector.broadcast %502 : i32 to vector<16x16xi32>
    %510 = arith.cmpi eq, %1, %509 : vector<16x16xi32>
    %511 = arith.andi %508, %510 : vector<16x16xi1>
    %cst_100 = arith.constant 0.000000e+00 : f32
    %512 = vector.broadcast %506 : f32 to vector<16x16xf32>
    %513 = vector.broadcast %cst_100 : f32 to vector<16x16xf32>
    %514 = arith.select %511, %512, %513 : vector<16x16xi1>, vector<16x16xf32>
    %515 = arith.addf %500, %514 : vector<16x16xf32>
    %c34_i32 = arith.constant 34 : i32
    %c0_101 = arith.constant 0 : index
    %516 = arith.index_cast %c34_i32 : i32 to index
    %517 = memref.load %arg1[%c0_101, %516] : memref<2x40xi32, #tpu.memory_space<smem>>
    %c1_102 = arith.constant 1 : index
    %518 = arith.index_cast %c34_i32 : i32 to index
    %519 = memref.load %arg1[%c1_102, %518] : memref<2x40xi32, #tpu.memory_space<smem>>
    %520 = arith.index_cast %c34_i32 : i32 to index
    %521 = memref.load %arg2[%520] : memref<40xf32, #tpu.memory_space<smem>>
    %522 = vector.broadcast %519 : i32 to vector<16x16xi32>
    %523 = arith.cmpi eq, %0, %522 : vector<16x16xi32>
    %524 = vector.broadcast %517 : i32 to vector<16x16xi32>
    %525 = arith.cmpi eq, %1, %524 : vector<16x16xi32>
    %526 = arith.andi %523, %525 : vector<16x16xi1>
    %cst_103 = arith.constant 0.000000e+00 : f32
    %527 = vector.broadcast %521 : f32 to vector<16x16xf32>
    %528 = vector.broadcast %cst_103 : f32 to vector<16x16xf32>
    %529 = arith.select %526, %527, %528 : vector<16x16xi1>, vector<16x16xf32>
    %530 = arith.addf %515, %529 : vector<16x16xf32>
    %c35_i32 = arith.constant 35 : i32
    %c0_104 = arith.constant 0 : index
    %531 = arith.index_cast %c35_i32 : i32 to index
    %532 = memref.load %arg1[%c0_104, %531] : memref<2x40xi32, #tpu.memory_space<smem>>
    %c1_105 = arith.constant 1 : index
    %533 = arith.index_cast %c35_i32 : i32 to index
    %534 = memref.load %arg1[%c1_105, %533] : memref<2x40xi32, #tpu.memory_space<smem>>
    %535 = arith.index_cast %c35_i32 : i32 to index
    %536 = memref.load %arg2[%535] : memref<40xf32, #tpu.memory_space<smem>>
    %537 = vector.broadcast %534 : i32 to vector<16x16xi32>
    %538 = arith.cmpi eq, %0, %537 : vector<16x16xi32>
    %539 = vector.broadcast %532 : i32 to vector<16x16xi32>
    %540 = arith.cmpi eq, %1, %539 : vector<16x16xi32>
    %541 = arith.andi %538, %540 : vector<16x16xi1>
    %cst_106 = arith.constant 0.000000e+00 : f32
    %542 = vector.broadcast %536 : f32 to vector<16x16xf32>
    %543 = vector.broadcast %cst_106 : f32 to vector<16x16xf32>
    %544 = arith.select %541, %542, %543 : vector<16x16xi1>, vector<16x16xf32>
    %545 = arith.addf %530, %544 : vector<16x16xf32>
    %c36_i32 = arith.constant 36 : i32
    %c0_107 = arith.constant 0 : index
    %546 = arith.index_cast %c36_i32 : i32 to index
    %547 = memref.load %arg1[%c0_107, %546] : memref<2x40xi32, #tpu.memory_space<smem>>
    %c1_108 = arith.constant 1 : index
    %548 = arith.index_cast %c36_i32 : i32 to index
    %549 = memref.load %arg1[%c1_108, %548] : memref<2x40xi32, #tpu.memory_space<smem>>
    %550 = arith.index_cast %c36_i32 : i32 to index
    %551 = memref.load %arg2[%550] : memref<40xf32, #tpu.memory_space<smem>>
    %552 = vector.broadcast %549 : i32 to vector<16x16xi32>
    %553 = arith.cmpi eq, %0, %552 : vector<16x16xi32>
    %554 = vector.broadcast %547 : i32 to vector<16x16xi32>
    %555 = arith.cmpi eq, %1, %554 : vector<16x16xi32>
    %556 = arith.andi %553, %555 : vector<16x16xi1>
    %cst_109 = arith.constant 0.000000e+00 : f32
    %557 = vector.broadcast %551 : f32 to vector<16x16xf32>
    %558 = vector.broadcast %cst_109 : f32 to vector<16x16xf32>
    %559 = arith.select %556, %557, %558 : vector<16x16xi1>, vector<16x16xf32>
    %560 = arith.addf %545, %559 : vector<16x16xf32>
    %c37_i32 = arith.constant 37 : i32
    %c0_110 = arith.constant 0 : index
    %561 = arith.index_cast %c37_i32 : i32 to index
    %562 = memref.load %arg1[%c0_110, %561] : memref<2x40xi32, #tpu.memory_space<smem>>
    %c1_111 = arith.constant 1 : index
    %563 = arith.index_cast %c37_i32 : i32 to index
    %564 = memref.load %arg1[%c1_111, %563] : memref<2x40xi32, #tpu.memory_space<smem>>
    %565 = arith.index_cast %c37_i32 : i32 to index
    %566 = memref.load %arg2[%565] : memref<40xf32, #tpu.memory_space<smem>>
    %567 = vector.broadcast %564 : i32 to vector<16x16xi32>
    %568 = arith.cmpi eq, %0, %567 : vector<16x16xi32>
    %569 = vector.broadcast %562 : i32 to vector<16x16xi32>
    %570 = arith.cmpi eq, %1, %569 : vector<16x16xi32>
    %571 = arith.andi %568, %570 : vector<16x16xi1>
    %cst_112 = arith.constant 0.000000e+00 : f32
    %572 = vector.broadcast %566 : f32 to vector<16x16xf32>
    %573 = vector.broadcast %cst_112 : f32 to vector<16x16xf32>
    %574 = arith.select %571, %572, %573 : vector<16x16xi1>, vector<16x16xf32>
    %575 = arith.addf %560, %574 : vector<16x16xf32>
    %c38_i32 = arith.constant 38 : i32
    %c0_113 = arith.constant 0 : index
    %576 = arith.index_cast %c38_i32 : i32 to index
    %577 = memref.load %arg1[%c0_113, %576] : memref<2x40xi32, #tpu.memory_space<smem>>
    %c1_114 = arith.constant 1 : index
    %578 = arith.index_cast %c38_i32 : i32 to index
    %579 = memref.load %arg1[%c1_114, %578] : memref<2x40xi32, #tpu.memory_space<smem>>
    %580 = arith.index_cast %c38_i32 : i32 to index
    %581 = memref.load %arg2[%580] : memref<40xf32, #tpu.memory_space<smem>>
    %582 = vector.broadcast %579 : i32 to vector<16x16xi32>
    %583 = arith.cmpi eq, %0, %582 : vector<16x16xi32>
    %584 = vector.broadcast %577 : i32 to vector<16x16xi32>
    %585 = arith.cmpi eq, %1, %584 : vector<16x16xi32>
    %586 = arith.andi %583, %585 : vector<16x16xi1>
    %cst_115 = arith.constant 0.000000e+00 : f32
    %587 = vector.broadcast %581 : f32 to vector<16x16xf32>
    %588 = vector.broadcast %cst_115 : f32 to vector<16x16xf32>
    %589 = arith.select %586, %587, %588 : vector<16x16xi1>, vector<16x16xf32>
    %590 = arith.addf %575, %589 : vector<16x16xf32>
    %c39_i32 = arith.constant 39 : i32
    %c0_116 = arith.constant 0 : index
    %591 = arith.index_cast %c39_i32 : i32 to index
    %592 = memref.load %arg1[%c0_116, %591] : memref<2x40xi32, #tpu.memory_space<smem>>
    %c1_117 = arith.constant 1 : index
    %593 = arith.index_cast %c39_i32 : i32 to index
    %594 = memref.load %arg1[%c1_117, %593] : memref<2x40xi32, #tpu.memory_space<smem>>
    %595 = arith.index_cast %c39_i32 : i32 to index
    %596 = memref.load %arg2[%595] : memref<40xf32, #tpu.memory_space<smem>>
    %597 = vector.broadcast %594 : i32 to vector<16x16xi32>
    %598 = arith.cmpi eq, %0, %597 : vector<16x16xi32>
    %599 = vector.broadcast %592 : i32 to vector<16x16xi32>
    %600 = arith.cmpi eq, %1, %599 : vector<16x16xi32>
    %601 = arith.andi %598, %600 : vector<16x16xi1>
    %cst_118 = arith.constant 0.000000e+00 : f32
    %602 = vector.broadcast %596 : f32 to vector<16x16xf32>
    %603 = vector.broadcast %cst_118 : f32 to vector<16x16xf32>
    %604 = arith.select %601, %602, %603 : vector<16x16xi1>, vector<16x16xf32>
    %605 = arith.addf %590, %604 : vector<16x16xf32>
    %c40_i32 = arith.constant 40 : i32
    %cst_119 = arith.constant dense<0.000000e+00> : vector<16xf32>
    %606 = vector.multi_reduction <add>, %605, %cst_119 [1] : vector<16x16xf32> to vector<16xf32>
    %607 = vector.shape_cast %606 : vector<16xf32> to vector<16x1xf32>
    %608 = math.rsqrt %607 : vector<16x1xf32>
    %609 = arith.truncf %605 : vector<16x16xf32> to vector<16x16xbf16>
    %c0_120 = arith.constant 0 : index
    %c0_121 = arith.constant 0 : index
    %610 = vector.load %arg0[%c0_120, %c0_121] : memref<16x512xf32, #tpu.memory_space<vmem>>, vector<16x512xf32>
    %611 = arith.truncf %610 : vector<16x512xf32> to vector<16x512xbf16>
    %c0_122 = arith.constant 0 : index
    %c0_123 = arith.constant 0 : index
    %612 = vector.load %arg4[%c0_122, %c0_123] : memref<512x32xbf16, #tpu.memory_space<vmem>>, vector<512x32xbf16>
    %cst_124 = arith.constant dense<0.000000e+00> : vector<16x32xf32>
    %613 = tpu.matmul %611, %612, %cst_124 {dimension_numbers = #tpu.dot_dimension_numbers<[1], [0], [0], [1], [0, 0, 1, 1], [], []>} : vector<16x512xbf16>, vector<512x32xbf16>, vector<16x32xf32> -> vector<16x32xf32>
    %614 = vector.broadcast %608 : vector<16x1xf32> to vector<16x32xf32>
    %615 = arith.mulf %614, %613 : vector<16x32xf32>
    %616 = arith.truncf %615 : vector<16x32xf32> to vector<16x32xbf16>
    %cst_125 = arith.constant dense<0.000000e+00> : vector<16x32xf32>
    %617 = tpu.matmul %609, %616, %cst_125 {dimension_numbers = #tpu.dot_dimension_numbers<[1], [0], [0], [1], [0, 0, 1, 1], [], []>} : vector<16x16xbf16>, vector<16x32xbf16>, vector<16x32xf32> -> vector<16x32xf32>
    %618 = vector.broadcast %608 : vector<16x1xf32> to vector<16x32xf32>
    %619 = arith.mulf %618, %617 : vector<16x32xf32>
    %c0_126 = arith.constant 0 : index
    %c0_127 = arith.constant 0 : index
    %620 = vector.load %arg5[%c0_126, %c0_127] : memref<1x32xf32, #tpu.memory_space<vmem>>, vector<1x32xf32>
    %621 = vector.broadcast %620 : vector<1x32xf32> to vector<16x32xf32>
    %622 = arith.addf %619, %621 : vector<16x32xf32>
    %cst_128 = arith.constant 0.000000e+00 : f32
    %623 = vector.broadcast %cst_128 : f32 to vector<16x32xf32>
    %624 = arith.maximumf %622, %623 : vector<16x32xf32>
    %625 = arith.truncf %624 : vector<16x32xf32> to vector<16x32xbf16>
    %c0_129 = arith.constant 0 : index
    %c0_130 = arith.constant 0 : index
    %626 = vector.load %arg6[%c0_129, %c0_130] : memref<32x32xbf16, #tpu.memory_space<vmem>>, vector<32x32xbf16>
    %cst_131 = arith.constant dense<0.000000e+00> : vector<16x32xf32>
    %627 = tpu.matmul %625, %626, %cst_131 {dimension_numbers = #tpu.dot_dimension_numbers<[1], [0], [0], [1], [0, 0, 1, 1], [], []>} : vector<16x32xbf16>, vector<32x32xbf16>, vector<16x32xf32> -> vector<16x32xf32>
    %628 = vector.broadcast %608 : vector<16x1xf32> to vector<16x32xf32>
    %629 = arith.mulf %628, %627 : vector<16x32xf32>
    %630 = arith.truncf %629 : vector<16x32xf32> to vector<16x32xbf16>
    %cst_132 = arith.constant dense<0.000000e+00> : vector<16x32xf32>
    %631 = tpu.matmul %609, %630, %cst_132 {dimension_numbers = #tpu.dot_dimension_numbers<[1], [0], [0], [1], [0, 0, 1, 1], [], []>} : vector<16x16xbf16>, vector<16x32xbf16>, vector<16x32xf32> -> vector<16x32xf32>
    %632 = vector.broadcast %608 : vector<16x1xf32> to vector<16x32xf32>
    %633 = arith.mulf %632, %631 : vector<16x32xf32>
    %c0_133 = arith.constant 0 : index
    %c0_134 = arith.constant 0 : index
    %634 = vector.load %arg7[%c0_133, %c0_134] : memref<1x32xf32, #tpu.memory_space<vmem>>, vector<1x32xf32>
    %635 = vector.broadcast %634 : vector<1x32xf32> to vector<16x32xf32>
    %636 = arith.addf %633, %635 : vector<16x32xf32>
    %cst_135 = arith.constant 0.000000e+00 : f32
    %637 = vector.broadcast %cst_135 : f32 to vector<16x32xf32>
    %638 = arith.maximumf %636, %637 : vector<16x32xf32>
    %639 = arith.truncf %638 : vector<16x32xf32> to vector<16x32xbf16>
    %c0_136 = arith.constant 0 : index
    %c0_137 = arith.constant 0 : index
    %640 = vector.load %arg6[%c0_136, %c0_137] : memref<32x32xbf16, #tpu.memory_space<vmem>>, vector<32x32xbf16>
    %cst_138 = arith.constant dense<0.000000e+00> : vector<16x32xf32>
    %641 = tpu.matmul %639, %640, %cst_138 {dimension_numbers = #tpu.dot_dimension_numbers<[1], [0], [0], [1], [0, 0, 1, 1], [], []>} : vector<16x32xbf16>, vector<32x32xbf16>, vector<16x32xf32> -> vector<16x32xf32>
    %642 = vector.broadcast %608 : vector<16x1xf32> to vector<16x32xf32>
    %643 = arith.mulf %642, %641 : vector<16x32xf32>
    %644 = arith.truncf %643 : vector<16x32xf32> to vector<16x32xbf16>
    %cst_139 = arith.constant dense<0.000000e+00> : vector<16x32xf32>
    %645 = tpu.matmul %609, %644, %cst_139 {dimension_numbers = #tpu.dot_dimension_numbers<[1], [0], [0], [1], [0, 0, 1, 1], [], []>} : vector<16x16xbf16>, vector<16x32xbf16>, vector<16x32xf32> -> vector<16x32xf32>
    %646 = vector.broadcast %608 : vector<16x1xf32> to vector<16x32xf32>
    %647 = arith.mulf %646, %645 : vector<16x32xf32>
    %c0_140 = arith.constant 0 : index
    %c0_141 = arith.constant 0 : index
    %648 = vector.load %arg7[%c0_140, %c0_141] : memref<1x32xf32, #tpu.memory_space<vmem>>, vector<1x32xf32>
    %649 = vector.broadcast %648 : vector<1x32xf32> to vector<16x32xf32>
    %650 = arith.addf %647, %649 : vector<16x32xf32>
    %cst_142 = arith.constant 0.000000e+00 : f32
    %651 = vector.broadcast %cst_142 : f32 to vector<16x32xf32>
    %652 = arith.maximumf %650, %651 : vector<16x32xf32>
    %c0_143 = arith.constant 0 : index
    %c0_144 = arith.constant 0 : index
    %653 = vector.load %arg8[%c0_143, %c0_144] : memref<1x96xf32, #tpu.memory_space<vmem>>, vector<1x32xf32>
    %c0_145 = arith.constant 0 : index
    %c32 = arith.constant 32 : index
    %654 = vector.load %arg8[%c0_145, %c32] : memref<1x96xf32, #tpu.memory_space<vmem>>, vector<1x32xf32>
    %c0_146 = arith.constant 0 : index
    %c64 = arith.constant 64 : index
    %655 = vector.load %arg8[%c0_146, %c64] : memref<1x96xf32, #tpu.memory_space<vmem>>, vector<1x32xf32>
    %656 = vector.broadcast %653 : vector<1x32xf32> to vector<16x32xf32>
    %657 = arith.mulf %624, %656 : vector<16x32xf32>
    %cst_147 = arith.constant dense<0.000000e+00> : vector<16xf32>
    %658 = vector.multi_reduction <add>, %657, %cst_147 [1] : vector<16x32xf32> to vector<16xf32>
    %659 = vector.shape_cast %658 : vector<16xf32> to vector<16x1xf32>
    %660 = vector.broadcast %654 : vector<1x32xf32> to vector<16x32xf32>
    %661 = arith.mulf %638, %660 : vector<16x32xf32>
    %cst_148 = arith.constant dense<0.000000e+00> : vector<16xf32>
    %662 = vector.multi_reduction <add>, %661, %cst_148 [1] : vector<16x32xf32> to vector<16xf32>
    %663 = vector.shape_cast %662 : vector<16xf32> to vector<16x1xf32>
    %664 = arith.addf %659, %663 : vector<16x1xf32>
    %665 = vector.broadcast %655 : vector<1x32xf32> to vector<16x32xf32>
    %666 = arith.mulf %652, %665 : vector<16x32xf32>
    %cst_149 = arith.constant dense<0.000000e+00> : vector<16xf32>
    %667 = vector.multi_reduction <add>, %666, %cst_149 [1] : vector<16x32xf32> to vector<16xf32>
    %668 = vector.shape_cast %667 : vector<16xf32> to vector<16x1xf32>
    %669 = arith.addf %664, %668 : vector<16x1xf32>
    %cst_150 = arith.constant 0.000000e+00 : f32
    %670 = vector.broadcast %cst_150 : f32 to vector<16x1xf32>
    %671 = arith.subf %670, %669 : vector<16x1xf32>
    %672 = math.exp %671 : vector<16x1xf32>
    %cst_151 = arith.constant 1.000000e+00 : f32
    %673 = vector.broadcast %cst_151 : f32 to vector<16x1xf32>
    %674 = arith.addf %673, %672 : vector<16x1xf32>
    %cst_152 = arith.constant 1.000000e+00 : f32
    %675 = vector.broadcast %cst_152 : f32 to vector<16x1xf32>
    %676 = arith.divf %675, %674 : vector<16x1xf32>
    %c0_153 = arith.constant 0 : index
    %c0_154 = arith.constant 0 : index
    %677 = vector.load %arg3[%c0_153, %c0_154] : memref<16x1xf32, #tpu.memory_space<vmem>>, vector<16x1xf32>
    %cst_155 = arith.constant 0.000000e+00 : f32
    %678 = vector.shape_cast %669 : vector<16x1xf32> to vector<16x1xf32>
    %679 = vector.broadcast %678 : vector<16x1xf32> to vector<16x16xf32>
    %680 = vector.broadcast %cst_155 : f32 to vector<16x16xf32>
    %681 = arith.select %2, %679, %680 : vector<16x16xi1>, vector<16x16xf32>
    %cst_156 = arith.constant dense<0.000000e+00> : vector<16xf32>
    %682 = vector.multi_reduction <add>, %681, %cst_156 [0] : vector<16x16xf32> to vector<16xf32>
    %683 = vector.shape_cast %682 : vector<16xf32> to vector<1x16xf32>
    %cst_157 = arith.constant 0.000000e+00 : f32
    %684 = vector.shape_cast %677 : vector<16x1xf32> to vector<16x1xf32>
    %685 = vector.broadcast %684 : vector<16x1xf32> to vector<16x16xf32>
    %686 = vector.broadcast %cst_157 : f32 to vector<16x16xf32>
    %687 = arith.select %2, %685, %686 : vector<16x16xi1>, vector<16x16xf32>
    %cst_158 = arith.constant dense<0.000000e+00> : vector<16xf32>
    %688 = vector.multi_reduction <add>, %687, %cst_158 [0] : vector<16x16xf32> to vector<16xf32>
    %689 = vector.shape_cast %688 : vector<16xf32> to vector<1x16xf32>
    %690 = vector.broadcast %677 : vector<16x1xf32> to vector<16x16xf32>
    %691 = vector.broadcast %689 : vector<1x16xf32> to vector<16x16xf32>
    %692 = arith.cmpf oeq, %690, %691 : vector<16x16xf32>
    %693 = vector.broadcast %683 : vector<1x16xf32> to vector<16x16xf32>
    %694 = vector.broadcast %669 : vector<16x1xf32> to vector<16x16xf32>
    %695 = arith.cmpf ogt, %693, %694 : vector<16x16xf32>
    %696 = vector.broadcast %683 : vector<1x16xf32> to vector<16x16xf32>
    %697 = vector.broadcast %669 : vector<16x1xf32> to vector<16x16xf32>
    %698 = arith.cmpf oeq, %696, %697 : vector<16x16xf32>
    %699 = arith.cmpi slt, %1, %0 : vector<16x16xi32>
    %700 = arith.andi %698, %699 : vector<16x16xi1>
    %701 = arith.ori %695, %700 : vector<16x16xi1>
    %702 = arith.andi %692, %701 : vector<16x16xi1>
    %cst_159 = arith.constant 1.000000e+00 : f32
    %cst_160 = arith.constant 0.000000e+00 : f32
    %703 = vector.broadcast %cst_159 : f32 to vector<16x16xf32>
    %704 = vector.broadcast %cst_160 : f32 to vector<16x16xf32>
    %705 = arith.select %702, %703, %704 : vector<16x16xi1>, vector<16x16xf32>
    %cst_161 = arith.constant dense<0.000000e+00> : vector<16xf32>
    %706 = vector.multi_reduction <add>, %705, %cst_161 [1] : vector<16x16xf32> to vector<16xf32>
    %707 = vector.shape_cast %706 : vector<16xf32> to vector<16x1xf32>
    %cst_162 = arith.constant 1.000000e+00 : f32
    %cst_163 = arith.constant 0.000000e+00 : f32
    %708 = vector.broadcast %cst_162 : f32 to vector<16x16xf32>
    %709 = vector.broadcast %cst_163 : f32 to vector<16x16xf32>
    %710 = arith.select %692, %708, %709 : vector<16x16xi1>, vector<16x16xf32>
    %cst_164 = arith.constant dense<0.000000e+00> : vector<16xf32>
    %711 = vector.multi_reduction <add>, %710, %cst_164 [1] : vector<16x16xf32> to vector<16xf32>
    %712 = vector.shape_cast %711 : vector<16xf32> to vector<16x1xf32>
    %cst_165 = arith.constant 8.000000e-01 : f32
    %713 = vector.broadcast %cst_165 : f32 to vector<16x1xf32>
    %714 = arith.mulf %713, %712 : vector<16x1xf32>
    %715 = math.ceil %714 : vector<16x1xf32>
    %716 = arith.cmpf olt, %707, %715 : vector<16x1xf32>
    %717 = vector.broadcast %676 : vector<16x1xf32> to vector<16x32xf32>
    %718 = arith.mulf %624, %717 : vector<16x32xf32>
    %719 = vector.broadcast %676 : vector<16x1xf32> to vector<16x32xf32>
    %720 = arith.mulf %638, %719 : vector<16x32xf32>
    %721 = vector.broadcast %676 : vector<16x1xf32> to vector<16x32xf32>
    %722 = arith.mulf %652, %721 : vector<16x32xf32>
    %cst_166 = arith.constant 0.000000e+00 : f32
    %723 = vector.broadcast %cst_166 : f32 to vector<16x1xf32>
    %724 = arith.cmpf oeq, %677, %723 : vector<16x1xf32>
    %725 = arith.andi %724, %716 : vector<16x1xi1>
    %cst_167 = arith.constant 1.000000e+00 : f32
    %cst_168 = arith.constant 0.000000e+00 : f32
    %726 = vector.broadcast %cst_167 : f32 to vector<16x1xf32>
    %727 = vector.broadcast %cst_168 : f32 to vector<16x1xf32>
    %728 = arith.select %725, %726, %727 : vector<16x1xi1>, vector<16x1xf32>
    %cst_169 = arith.constant dense<0.000000e+00> : vector<1xf32>
    %729 = vector.multi_reduction <add>, %728, %cst_169 [0] : vector<16x1xf32> to vector<1xf32>
    %730 = vector.shape_cast %729 : vector<1xf32> to vector<1x1xf32>
    %cst_170 = arith.constant 1.000000e+00 : f32
    %731 = vector.broadcast %cst_170 : f32 to vector<1x1xf32>
    %732 = arith.maximumf %730, %731 : vector<1x1xf32>
    %cst_171 = arith.constant 1.000000e+00 : f32
    %733 = vector.broadcast %cst_171 : f32 to vector<1x1xf32>
    %734 = arith.divf %733, %732 : vector<1x1xf32>
    %cst_172 = arith.constant 5.000000e-01 : f32
    %735 = vector.broadcast %cst_172 : f32 to vector<1x1xf32>
    %736 = arith.cmpf ogt, %730, %735 : vector<1x1xf32>
    %737 = vector.broadcast %728 : vector<16x1xf32> to vector<16x32xf32>
    %738 = arith.mulf %737, %718 : vector<16x32xf32>
    %cst_173 = arith.constant dense<0.000000e+00> : vector<32xf32>
    %739 = vector.multi_reduction <add>, %738, %cst_173 [0] : vector<16x32xf32> to vector<32xf32>
    %740 = vector.shape_cast %739 : vector<32xf32> to vector<1x32xf32>
    %741 = vector.broadcast %734 : vector<1x1xf32> to vector<1x32xf32>
    %742 = arith.mulf %740, %741 : vector<1x32xf32>
    %cst_174 = arith.constant 0.000000e+00 : f32
    %743 = vector.broadcast %cst_174 : f32 to vector<16x1xf32>
    %744 = arith.cmpf ogt, %728, %743 : vector<16x1xf32>
    %cst_175 = arith.constant -3.40282347E+38 : f32
    %745 = vector.shape_cast %744 : vector<16x1xi1> to vector<16x1xi1>
    %746 = vector.broadcast %745 : vector<16x1xi1> to vector<16x32xi1>
    %747 = vector.broadcast %cst_175 : f32 to vector<16x32xf32>
    %748 = arith.select %746, %718, %747 : vector<16x32xi1>, vector<16x32xf32>
    %cst_176 = arith.constant dense<0xFF800000> : vector<32xf32>
    %749 = vector.multi_reduction <maximumf>, %748, %cst_176 [0] : vector<16x32xf32> to vector<32xf32>
    %750 = vector.shape_cast %749 : vector<32xf32> to vector<1x32xf32>
    %cst_177 = arith.constant 0.000000e+00 : f32
    %751 = vector.shape_cast %736 : vector<1x1xi1> to vector<1x1xi1>
    %752 = vector.broadcast %751 : vector<1x1xi1> to vector<1x32xi1>
    %753 = vector.broadcast %cst_177 : f32 to vector<1x32xf32>
    %754 = arith.select %752, %750, %753 : vector<1x32xi1>, vector<1x32xf32>
    %755 = vector.broadcast %728 : vector<16x1xf32> to vector<16x32xf32>
    %756 = arith.mulf %755, %720 : vector<16x32xf32>
    %cst_178 = arith.constant dense<0.000000e+00> : vector<32xf32>
    %757 = vector.multi_reduction <add>, %756, %cst_178 [0] : vector<16x32xf32> to vector<32xf32>
    %758 = vector.shape_cast %757 : vector<32xf32> to vector<1x32xf32>
    %759 = vector.broadcast %734 : vector<1x1xf32> to vector<1x32xf32>
    %760 = arith.mulf %758, %759 : vector<1x32xf32>
    %cst_179 = arith.constant 0.000000e+00 : f32
    %761 = vector.broadcast %cst_179 : f32 to vector<16x1xf32>
    %762 = arith.cmpf ogt, %728, %761 : vector<16x1xf32>
    %cst_180 = arith.constant -3.40282347E+38 : f32
    %763 = vector.shape_cast %762 : vector<16x1xi1> to vector<16x1xi1>
    %764 = vector.broadcast %763 : vector<16x1xi1> to vector<16x32xi1>
    %765 = vector.broadcast %cst_180 : f32 to vector<16x32xf32>
    %766 = arith.select %764, %720, %765 : vector<16x32xi1>, vector<16x32xf32>
    %cst_181 = arith.constant dense<0xFF800000> : vector<32xf32>
    %767 = vector.multi_reduction <maximumf>, %766, %cst_181 [0] : vector<16x32xf32> to vector<32xf32>
    %768 = vector.shape_cast %767 : vector<32xf32> to vector<1x32xf32>
    %cst_182 = arith.constant 0.000000e+00 : f32
    %769 = vector.shape_cast %736 : vector<1x1xi1> to vector<1x1xi1>
    %770 = vector.broadcast %769 : vector<1x1xi1> to vector<1x32xi1>
    %771 = vector.broadcast %cst_182 : f32 to vector<1x32xf32>
    %772 = arith.select %770, %768, %771 : vector<1x32xi1>, vector<1x32xf32>
    %773 = vector.broadcast %728 : vector<16x1xf32> to vector<16x32xf32>
    %774 = arith.mulf %773, %722 : vector<16x32xf32>
    %cst_183 = arith.constant dense<0.000000e+00> : vector<32xf32>
    %775 = vector.multi_reduction <add>, %774, %cst_183 [0] : vector<16x32xf32> to vector<32xf32>
    %776 = vector.shape_cast %775 : vector<32xf32> to vector<1x32xf32>
    %777 = vector.broadcast %734 : vector<1x1xf32> to vector<1x32xf32>
    %778 = arith.mulf %776, %777 : vector<1x32xf32>
    %cst_184 = arith.constant 0.000000e+00 : f32
    %779 = vector.broadcast %cst_184 : f32 to vector<16x1xf32>
    %780 = arith.cmpf ogt, %728, %779 : vector<16x1xf32>
    %cst_185 = arith.constant -3.40282347E+38 : f32
    %781 = vector.shape_cast %780 : vector<16x1xi1> to vector<16x1xi1>
    %782 = vector.broadcast %781 : vector<16x1xi1> to vector<16x32xi1>
    %783 = vector.broadcast %cst_185 : f32 to vector<16x32xf32>
    %784 = arith.select %782, %722, %783 : vector<16x32xi1>, vector<16x32xf32>
    %cst_186 = arith.constant dense<0xFF800000> : vector<32xf32>
    %785 = vector.multi_reduction <maximumf>, %784, %cst_186 [0] : vector<16x32xf32> to vector<32xf32>
    %786 = vector.shape_cast %785 : vector<32xf32> to vector<1x32xf32>
    %cst_187 = arith.constant 0.000000e+00 : f32
    %787 = vector.shape_cast %736 : vector<1x1xi1> to vector<1x1xi1>
    %788 = vector.broadcast %787 : vector<1x1xi1> to vector<1x32xi1>
    %789 = vector.broadcast %cst_187 : f32 to vector<1x32xf32>
    %790 = arith.select %788, %786, %789 : vector<1x32xi1>, vector<1x32xf32>
    %cst_188 = arith.constant 1.000000e+00 : f32
    %791 = vector.broadcast %cst_188 : f32 to vector<16x1xf32>
    %792 = arith.cmpf oeq, %677, %791 : vector<16x1xf32>
    %793 = arith.andi %792, %716 : vector<16x1xi1>
    %cst_189 = arith.constant 1.000000e+00 : f32
    %cst_190 = arith.constant 0.000000e+00 : f32
    %794 = vector.broadcast %cst_189 : f32 to vector<16x1xf32>
    %795 = vector.broadcast %cst_190 : f32 to vector<16x1xf32>
    %796 = arith.select %793, %794, %795 : vector<16x1xi1>, vector<16x1xf32>
    %cst_191 = arith.constant dense<0.000000e+00> : vector<1xf32>
    %797 = vector.multi_reduction <add>, %796, %cst_191 [0] : vector<16x1xf32> to vector<1xf32>
    %798 = vector.shape_cast %797 : vector<1xf32> to vector<1x1xf32>
    %cst_192 = arith.constant 1.000000e+00 : f32
    %799 = vector.broadcast %cst_192 : f32 to vector<1x1xf32>
    %800 = arith.maximumf %798, %799 : vector<1x1xf32>
    %cst_193 = arith.constant 1.000000e+00 : f32
    %801 = vector.broadcast %cst_193 : f32 to vector<1x1xf32>
    %802 = arith.divf %801, %800 : vector<1x1xf32>
    %cst_194 = arith.constant 5.000000e-01 : f32
    %803 = vector.broadcast %cst_194 : f32 to vector<1x1xf32>
    %804 = arith.cmpf ogt, %798, %803 : vector<1x1xf32>
    %805 = vector.broadcast %796 : vector<16x1xf32> to vector<16x32xf32>
    %806 = arith.mulf %805, %718 : vector<16x32xf32>
    %cst_195 = arith.constant dense<0.000000e+00> : vector<32xf32>
    %807 = vector.multi_reduction <add>, %806, %cst_195 [0] : vector<16x32xf32> to vector<32xf32>
    %808 = vector.shape_cast %807 : vector<32xf32> to vector<1x32xf32>
    %809 = vector.broadcast %802 : vector<1x1xf32> to vector<1x32xf32>
    %810 = arith.mulf %808, %809 : vector<1x32xf32>
    %cst_196 = arith.constant 0.000000e+00 : f32
    %811 = vector.broadcast %cst_196 : f32 to vector<16x1xf32>
    %812 = arith.cmpf ogt, %796, %811 : vector<16x1xf32>
    %cst_197 = arith.constant -3.40282347E+38 : f32
    %813 = vector.shape_cast %812 : vector<16x1xi1> to vector<16x1xi1>
    %814 = vector.broadcast %813 : vector<16x1xi1> to vector<16x32xi1>
    %815 = vector.broadcast %cst_197 : f32 to vector<16x32xf32>
    %816 = arith.select %814, %718, %815 : vector<16x32xi1>, vector<16x32xf32>
    %cst_198 = arith.constant dense<0xFF800000> : vector<32xf32>
    %817 = vector.multi_reduction <maximumf>, %816, %cst_198 [0] : vector<16x32xf32> to vector<32xf32>
    %818 = vector.shape_cast %817 : vector<32xf32> to vector<1x32xf32>
    %cst_199 = arith.constant 0.000000e+00 : f32
    %819 = vector.shape_cast %804 : vector<1x1xi1> to vector<1x1xi1>
    %820 = vector.broadcast %819 : vector<1x1xi1> to vector<1x32xi1>
    %821 = vector.broadcast %cst_199 : f32 to vector<1x32xf32>
    %822 = arith.select %820, %818, %821 : vector<1x32xi1>, vector<1x32xf32>
    %823 = vector.broadcast %796 : vector<16x1xf32> to vector<16x32xf32>
    %824 = arith.mulf %823, %720 : vector<16x32xf32>
    %cst_200 = arith.constant dense<0.000000e+00> : vector<32xf32>
    %825 = vector.multi_reduction <add>, %824, %cst_200 [0] : vector<16x32xf32> to vector<32xf32>
    %826 = vector.shape_cast %825 : vector<32xf32> to vector<1x32xf32>
    %827 = vector.broadcast %802 : vector<1x1xf32> to vector<1x32xf32>
    %828 = arith.mulf %826, %827 : vector<1x32xf32>
    %cst_201 = arith.constant 0.000000e+00 : f32
    %829 = vector.broadcast %cst_201 : f32 to vector<16x1xf32>
    %830 = arith.cmpf ogt, %796, %829 : vector<16x1xf32>
    %cst_202 = arith.constant -3.40282347E+38 : f32
    %831 = vector.shape_cast %830 : vector<16x1xi1> to vector<16x1xi1>
    %832 = vector.broadcast %831 : vector<16x1xi1> to vector<16x32xi1>
    %833 = vector.broadcast %cst_202 : f32 to vector<16x32xf32>
    %834 = arith.select %832, %720, %833 : vector<16x32xi1>, vector<16x32xf32>
    %cst_203 = arith.constant dense<0xFF800000> : vector<32xf32>
    %835 = vector.multi_reduction <maximumf>, %834, %cst_203 [0] : vector<16x32xf32> to vector<32xf32>
    %836 = vector.shape_cast %835 : vector<32xf32> to vector<1x32xf32>
    %cst_204 = arith.constant 0.000000e+00 : f32
    %837 = vector.shape_cast %804 : vector<1x1xi1> to vector<1x1xi1>
    %838 = vector.broadcast %837 : vector<1x1xi1> to vector<1x32xi1>
    %839 = vector.broadcast %cst_204 : f32 to vector<1x32xf32>
    %840 = arith.select %838, %836, %839 : vector<1x32xi1>, vector<1x32xf32>
    %841 = vector.broadcast %796 : vector<16x1xf32> to vector<16x32xf32>
    %842 = arith.mulf %841, %722 : vector<16x32xf32>
    %cst_205 = arith.constant dense<0.000000e+00> : vector<32xf32>
    %843 = vector.multi_reduction <add>, %842, %cst_205 [0] : vector<16x32xf32> to vector<32xf32>
    %844 = vector.shape_cast %843 : vector<32xf32> to vector<1x32xf32>
    %845 = vector.broadcast %802 : vector<1x1xf32> to vector<1x32xf32>
    %846 = arith.mulf %844, %845 : vector<1x32xf32>
    %cst_206 = arith.constant 0.000000e+00 : f32
    %847 = vector.broadcast %cst_206 : f32 to vector<16x1xf32>
    %848 = arith.cmpf ogt, %796, %847 : vector<16x1xf32>
    %cst_207 = arith.constant -3.40282347E+38 : f32
    %849 = vector.shape_cast %848 : vector<16x1xi1> to vector<16x1xi1>
    %850 = vector.broadcast %849 : vector<16x1xi1> to vector<16x32xi1>
    %851 = vector.broadcast %cst_207 : f32 to vector<16x32xf32>
    %852 = arith.select %850, %722, %851 : vector<16x32xi1>, vector<16x32xf32>
    %cst_208 = arith.constant dense<0xFF800000> : vector<32xf32>
    %853 = vector.multi_reduction <maximumf>, %852, %cst_208 [0] : vector<16x32xf32> to vector<32xf32>
    %854 = vector.shape_cast %853 : vector<32xf32> to vector<1x32xf32>
    %cst_209 = arith.constant 0.000000e+00 : f32
    %855 = vector.shape_cast %804 : vector<1x1xi1> to vector<1x1xi1>
    %856 = vector.broadcast %855 : vector<1x1xi1> to vector<1x32xi1>
    %857 = vector.broadcast %cst_209 : f32 to vector<1x32xf32>
    %858 = arith.select %856, %854, %857 : vector<1x32xi1>, vector<1x32xf32>
    %c0_210 = arith.constant 0 : index
    %c0_211 = arith.constant 0 : index
    %859 = vector.load %arg11[%c0_210, %c0_211] : memref<1x32xf32, #tpu.memory_space<vmem>>, vector<1x32xf32>
    %860 = tpu.concatenate %742, %810 in 0 : vector<1x32xf32>, vector<1x32xf32> -> vector<2x32xf32>
    %861 = tpu.concatenate %754, %822 in 0 : vector<1x32xf32>, vector<1x32xf32> -> vector<2x32xf32>
    %862 = arith.truncf %860 : vector<2x32xf32> to vector<2x32xbf16>
    %c0_212 = arith.constant 0 : index
    %c0_213 = arith.constant 0 : index
    %863 = vector.load %arg9[%c0_212, %c0_213] : memref<96x32xbf16, #tpu.memory_space<vmem>>, vector<32x32xbf16>
    %cst_214 = arith.constant dense<0.000000e+00> : vector<2x32xf32>
    %864 = tpu.matmul %862, %863, %cst_214 {dimension_numbers = #tpu.dot_dimension_numbers<[1], [0], [0], [1], [0, 0, 1, 1], [], []>} : vector<2x32xbf16>, vector<32x32xbf16>, vector<2x32xf32> -> vector<2x32xf32>
    %865 = vector.broadcast %859 : vector<1x32xf32> to vector<2x32xf32>
    %866 = arith.addf %865, %864 : vector<2x32xf32>
    %867 = arith.truncf %861 : vector<2x32xf32> to vector<2x32xbf16>
    %c0_215 = arith.constant 0 : index
    %c0_216 = arith.constant 0 : index
    %868 = vector.load %arg10[%c0_215, %c0_216] : memref<96x32xbf16, #tpu.memory_space<vmem>>, vector<32x32xbf16>
    %cst_217 = arith.constant dense<0.000000e+00> : vector<2x32xf32>
    %869 = tpu.matmul %867, %868, %cst_217 {dimension_numbers = #tpu.dot_dimension_numbers<[1], [0], [0], [1], [0, 0, 1, 1], [], []>} : vector<2x32xbf16>, vector<32x32xbf16>, vector<2x32xf32> -> vector<2x32xf32>
    %870 = arith.addf %866, %869 : vector<2x32xf32>
    %871 = tpu.concatenate %760, %828 in 0 : vector<1x32xf32>, vector<1x32xf32> -> vector<2x32xf32>
    %872 = tpu.concatenate %772, %840 in 0 : vector<1x32xf32>, vector<1x32xf32> -> vector<2x32xf32>
    %873 = arith.truncf %871 : vector<2x32xf32> to vector<2x32xbf16>
    %c32_218 = arith.constant 32 : index
    %c0_219 = arith.constant 0 : index
    %874 = vector.load %arg9[%c32_218, %c0_219] : memref<96x32xbf16, #tpu.memory_space<vmem>>, vector<32x32xbf16>
    %cst_220 = arith.constant dense<0.000000e+00> : vector<2x32xf32>
    %875 = tpu.matmul %873, %874, %cst_220 {dimension_numbers = #tpu.dot_dimension_numbers<[1], [0], [0], [1], [0, 0, 1, 1], [], []>} : vector<2x32xbf16>, vector<32x32xbf16>, vector<2x32xf32> -> vector<2x32xf32>
    %876 = arith.addf %870, %875 : vector<2x32xf32>
    %877 = arith.truncf %872 : vector<2x32xf32> to vector<2x32xbf16>
    %c32_221 = arith.constant 32 : index
    %c0_222 = arith.constant 0 : index
    %878 = vector.load %arg10[%c32_221, %c0_222] : memref<96x32xbf16, #tpu.memory_space<vmem>>, vector<32x32xbf16>
    %cst_223 = arith.constant dense<0.000000e+00> : vector<2x32xf32>
    %879 = tpu.matmul %877, %878, %cst_223 {dimension_numbers = #tpu.dot_dimension_numbers<[1], [0], [0], [1], [0, 0, 1, 1], [], []>} : vector<2x32xbf16>, vector<32x32xbf16>, vector<2x32xf32> -> vector<2x32xf32>
    %880 = arith.addf %876, %879 : vector<2x32xf32>
    %881 = tpu.concatenate %778, %846 in 0 : vector<1x32xf32>, vector<1x32xf32> -> vector<2x32xf32>
    %882 = tpu.concatenate %790, %858 in 0 : vector<1x32xf32>, vector<1x32xf32> -> vector<2x32xf32>
    %883 = arith.truncf %881 : vector<2x32xf32> to vector<2x32xbf16>
    %c64_224 = arith.constant 64 : index
    %c0_225 = arith.constant 0 : index
    %884 = vector.load %arg9[%c64_224, %c0_225] : memref<96x32xbf16, #tpu.memory_space<vmem>>, vector<32x32xbf16>
    %cst_226 = arith.constant dense<0.000000e+00> : vector<2x32xf32>
    %885 = tpu.matmul %883, %884, %cst_226 {dimension_numbers = #tpu.dot_dimension_numbers<[1], [0], [0], [1], [0, 0, 1, 1], [], []>} : vector<2x32xbf16>, vector<32x32xbf16>, vector<2x32xf32> -> vector<2x32xf32>
    %886 = arith.addf %880, %885 : vector<2x32xf32>
    %887 = arith.truncf %882 : vector<2x32xf32> to vector<2x32xbf16>
    %c64_227 = arith.constant 64 : index
    %c0_228 = arith.constant 0 : index
    %888 = vector.load %arg10[%c64_227, %c0_228] : memref<96x32xbf16, #tpu.memory_space<vmem>>, vector<32x32xbf16>
    %cst_229 = arith.constant dense<0.000000e+00> : vector<2x32xf32>
    %889 = tpu.matmul %887, %888, %cst_229 {dimension_numbers = #tpu.dot_dimension_numbers<[1], [0], [0], [1], [0, 0, 1, 1], [], []>} : vector<2x32xbf16>, vector<32x32xbf16>, vector<2x32xf32> -> vector<2x32xf32>
    %890 = arith.addf %886, %889 : vector<2x32xf32>
    %cst_230 = arith.constant 0.000000e+00 : f32
    %891 = vector.broadcast %cst_230 : f32 to vector<2x32xf32>
    %892 = arith.maximumf %890, %891 : vector<2x32xf32>
    %893 = arith.truncf %892 : vector<2x32xf32> to vector<2x32xbf16>
    %c0_231 = arith.constant 0 : index
    %c0_232 = arith.constant 0 : index
    %894 = vector.load %arg12[%c0_231, %c0_232] : memref<32x16xbf16, #tpu.memory_space<vmem>>, vector<32x16xbf16>
    %cst_233 = arith.constant dense<0.000000e+00> : vector<2x16xf32>
    %895 = tpu.matmul %893, %894, %cst_233 {dimension_numbers = #tpu.dot_dimension_numbers<[1], [0], [0], [1], [0, 0, 1, 1], [], []>} : vector<2x32xbf16>, vector<32x16xbf16>, vector<2x16xf32> -> vector<2x16xf32>
    %c0_234 = arith.constant 0 : index
    %c0_235 = arith.constant 0 : index
    %896 = vector.load %arg13[%c0_234, %c0_235] : memref<1x16xf32, #tpu.memory_space<vmem>>, vector<1x16xf32>
    %897 = vector.broadcast %896 : vector<1x16xf32> to vector<2x16xf32>
    %898 = arith.addf %895, %897 : vector<2x16xf32>
    %cst_236 = arith.constant 0.000000e+00 : f32
    %899 = vector.broadcast %cst_236 : f32 to vector<2x16xf32>
    %900 = arith.maximumf %898, %899 : vector<2x16xf32>
    %901 = arith.truncf %900 : vector<2x16xf32> to vector<2x16xbf16>
    %c0_237 = arith.constant 0 : index
    %c0_238 = arith.constant 0 : index
    %902 = vector.load %arg14[%c0_237, %c0_238] : memref<16x3xbf16, #tpu.memory_space<vmem>>, vector<16x3xbf16>
    %cst_239 = arith.constant dense<0.000000e+00> : vector<2x3xf32>
    %903 = tpu.matmul %901, %902, %cst_239 {dimension_numbers = #tpu.dot_dimension_numbers<[1], [0], [0], [1], [0, 0, 1, 1], [], []>} : vector<2x16xbf16>, vector<16x3xbf16>, vector<2x3xf32> -> vector<2x3xf32>
    %c0_240 = arith.constant 0 : index
    %c0_241 = arith.constant 0 : index
    %904 = vector.load %arg15[%c0_240, %c0_241] : memref<1x3xf32, #tpu.memory_space<vmem>>, vector<1x3xf32>
    %905 = vector.broadcast %904 : vector<1x3xf32> to vector<2x3xf32>
    %906 = arith.addf %903, %905 : vector<2x3xf32>
    %c0_242 = arith.constant 0 : index
    %c0_243 = arith.constant 0 : index
    %907 = vector.load %arg16[%c0_242, %c0_243] : memref<2x3xf32, #tpu.memory_space<vmem>>, vector<2x3xf32>
    tpu.vector_store %arg16[%c0_242, %c0_243], %906 {strides = array<i32>} : memref<2x3xf32, #tpu.memory_space<vmem>>, vector<2x3xf32>,
    return
  }
}

</mosaic_0001>

<llo_original>
// kernel: graph_cls_forward.1
$region0: #{graph_cls_forward.1}
  #allocation0 [shape = 'u32[]', space=smem, size = 0x4, offset = 0x4, fixed_abs, tag = 'smem constant byte address 0x4 - core index']
  #allocation1 [shape = 'u32[72,128]{1,0:T(1,128)}', space=vmem, size = 0x9000, scoped, tag = 'internal scratch']
  %s0 = inlined_call_operand.vmem [shape: f32[16,512], index: 0, kind: input, shape index: {}]
  %s1 = inlined_call_operand.vmem [shape: s32[2,40], index: 1, kind: input, shape index: {}]
  %s2 = inlined_call_operand.vmem [shape: f32[40], index: 2, kind: input, shape index: {}]
  %s3 = inlined_call_operand.vmem [shape: f32[16,1], index: 3, kind: input, shape index: {}]
  %s4 = inlined_call_operand.vmem [shape: bf16[512,32], index: 4, kind: input, shape index: {}]
  %s5 = inlined_call_operand.vmem [shape: f32[1,32], index: 5, kind: input, shape index: {}]
  %s6 = inlined_call_operand.vmem [shape: bf16[32,32], index: 6, kind: input, shape index: {}]
  %s7 = inlined_call_operand.vmem [shape: f32[1,32], index: 7, kind: input, shape index: {}]
  %s8 = inlined_call_operand.vmem [shape: f32[1,96], index: 8, kind: input, shape index: {}]
  %s9 = inlined_call_operand.vmem [shape: bf16[96,32], index: 9, kind: input, shape index: {}]
  %s10 = inlined_call_operand.vmem [shape: bf16[96,32], index: 10, kind: input, shape index: {}]
  %s11 = inlined_call_operand.vmem [shape: f32[1,32], index: 11, kind: input, shape index: {}]
  %s12 = inlined_call_operand.vmem [shape: bf16[32,16], index: 12, kind: input, shape index: {}]
  %s13 = inlined_call_operand.vmem [shape: f32[1,16], index: 13, kind: input, shape index: {}]
  %s14 = inlined_call_operand.vmem [shape: bf16[16,3], index: 14, kind: input, shape index: {}]
  %s15 = inlined_call_operand.vmem [shape: f32[1,3], index: 15, kind: input, shape index: {}]
  %s16 = inlined_call_operand.hbm [shape: f32[2,3], index: 16, kind: output, shape index: {}]
  %s17 = sld [smem:[#allocation0]]
  $region82: #{graph_cls_forward.1} parent=0
    _
  %s19 = ssub.s32 1, %s17
  %s20 = scalar_select 0, %s19, %s17
  $region1: #{graph_cls_forward.1} parent=0
    #allocation2 [shape = 'u8[1024]{0}', space=smem, size = 0x400, scoped, tag = 'input window, operand 1, single buffered']
    #allocation3 [shape = 's32[1]{0}', space=sflag, size = 0x4, scoped, tag = 'scoped memory for graph_cls_forward.1']
    #allocation4 [shape = 's32[1]{0}', space=sflag, size = 0x4, scoped, tag = 'scoped memory for graph_cls_forward.1']
    #allocation5 [shape = 'u8[512]{0}', space=smem, size = 0x200, scoped, tag = 'input window, operand 2, single buffered']
    #allocation6 [shape = 's32[1]{0}', space=sflag, size = 0x4, scoped, tag = 'scoped memory for graph_cls_forward.1']
    #allocation7 [shape = 'u8[1024]{0}', space=vmem, size = 0x400, scoped, tag = 'output window, operand 0, single buffered']
    %21 = vsyncpa [#allocation4], 0
    %22 = vsyncpa [#allocation6], 0
    %23 = vsyncpa [#allocation3], 0
    // Predicated region
    $region2: #{graph_cls_forward.1} parent=1 // pred_check
      _
    $region3: #{graph_cls_forward.1} parent=1 // pred_check_branch
      %25 = sbr.rel (0) target = $region5
    $region4: #{graph_cls_forward.1} parent=1 // pred_region
      _
    $region5: #{graph_cls_forward.1} parent=1 // pred_fallthru
      _
    // Predicated region
    $region6: #{graph_cls_forward.1} parent=1 // pred_check
      _
    $region7: #{graph_cls_forward.1} parent=1 // pred_check_branch
      %27 = sbr.rel (0) target = $region9
    $region8: #{graph_cls_forward.1} parent=1 // pred_region
      %29 = vsyncadd [#allocation4], 0
      %s31 = sshll.u32 %s1, 4
      %s32 = int_to_ptr.vmem [resolvable:$true] %s31
      %34 = dma.vmem_to_smem %s32, 32, [#allocation2], [#allocation4]
    $region9: #{graph_cls_forward.1} parent=1 // pred_fallthru
      _
    // Predicated region
    $region10: #{graph_cls_forward.1} parent=1 // pred_check
      _
    $region11: #{graph_cls_forward.1} parent=1 // pred_check_branch
      %36 = sbr.rel (0) target = $region13
    $region12: #{graph_cls_forward.1} parent=1 // pred_region
      %38 = vsyncadd [#allocation6], 0
      %s40 = sshll.u32 %s2, 4
      %s41 = int_to_ptr.vmem [resolvable:$true] %s40
      %43 = dma.vmem_to_smem %s41, 16, [#allocation5], [#allocation6]
    $region13: #{graph_cls_forward.1} parent=1 // pred_fallthru
      _
    // Predicated region
    $region14: #{graph_cls_forward.1} parent=1 // pred_check
      _
    $region15: #{graph_cls_forward.1} parent=1 // pred_check_branch
      %45 = sbr.rel (0) target = $region17
    $region16: #{graph_cls_forward.1} parent=1 // pred_region
      _
    $region17: #{graph_cls_forward.1} parent=1 // pred_fallthru
      _
    // Predicated region
    $region18: #{graph_cls_forward.1} parent=1 // pred_check
      _
    $region19: #{graph_cls_forward.1} parent=1 // pred_check_branch
      %47 = sbr.rel (0) target = $region21
    $region20: #{graph_cls_forward.1} parent=1 // pred_region
      _
    $region21: #{graph_cls_forward.1} parent=1 // pred_fallthru
      _
    // Predicated region
    $region22: #{graph_cls_forward.1} parent=1 // pred_check
      _
    $region23: #{graph_cls_forward.1} parent=1 // pred_check_branch
      %49 = sbr.rel (0) target = $region25
    $region24: #{graph_cls_forward.1} parent=1 // pred_region
      _
    $region25: #{graph_cls_forward.1} parent=1 // pred_fallthru
      _
    // Predicated region
    $region26: #{graph_cls_forward.1} parent=1 // pred_check
      _
    $region27: #{graph_cls_forward.1} parent=1 // pred_check_branch
      %51 = sbr.rel (0) target = $region29
    $region28: #{graph_cls_forward.1} parent=1 // pred_region
      _
    $region29: #{graph_cls_forward.1} parent=1 // pred_fallthru
      _
    // Predicated region
    $region30: #{graph_cls_forward.1} parent=1 // pred_check
      _
    $region31: #{graph_cls_forward.1} parent=1 // pred_check_branch
      %53 = sbr.rel (0) target = $region33
    $region32: #{graph_cls_forward.1} parent=1 // pred_region
      _
    $region33: #{graph_cls_forward.1} parent=1 // pred_fallthru
      _
    // Predicated region
    $region34: #{graph_cls_forward.1} parent=1 // pred_check
      _
    $region35: #{graph_cls_forward.1} parent=1 // pred_check_branch
      %55 = sbr.rel (0) target = $region37
    $region36: #{graph_cls_forward.1} parent=1 // pred_region
      _
    $region37: #{graph_cls_forward.1} parent=1 // pred_fallthru
      _
    // Predicated region
    $region38: #{graph_cls_forward.1} parent=1 // pred_check
      _
    $region39: #{graph_cls_forward.1} parent=1 // pred_check_branch
      %57 = sbr.rel (0) target = $region41
    $region40: #{graph_cls_forward.1} parent=1 // pred_region
      _
    $region41: #{graph_cls_forward.1} parent=1 // pred_fallthru
      _
    // Predicated region
    $region42: #{graph_cls_forward.1} parent=1 // pred_check
      _
    $region43: #{graph_cls_forward.1} parent=1 // pred_check_branch
      %59 = sbr.rel (0) target = $region45
    $region44: #{graph_cls_forward.1} parent=1 // pred_region
      _
    $region45: #{graph_cls_forward.1} parent=1 // pred_fallthru
      _
    // Predicated region
    $region46: #{graph_cls_forward.1} parent=1 // pred_check
      _
    $region47: #{graph_cls_forward.1} parent=1 // pred_check_branch
      %61 = sbr.rel (0) target = $region49
    $region48: #{graph_cls_forward.1} parent=1 // pred_region
      _
    $region49: #{graph_cls_forward.1} parent=1 // pred_fallthru
      _
    // Predicated region
    $region50: #{graph_cls_forward.1} parent=1 // pred_check
      _
    $region51: #{graph_cls_forward.1} parent=1 // pred_check_branch
      %63 = sbr.rel (0) target = $region53
    $region52: #{graph_cls_forward.1} parent=1 // pred_region
      _
    $region53: #{graph_cls_forward.1} parent=1 // pred_fallthru
      _
    // Predicated region
    $region54: #{graph_cls_forward.1} parent=1 // pred_check
      _
    $region55: #{graph_cls_forward.1} parent=1 // pred_check_branch
      %65 = sbr.rel (0) target = $region57
    $region56: #{graph_cls_forward.1} parent=1 // pred_region
      _
    $region57: #{graph_cls_forward.1} parent=1 // pred_fallthru
      _
    // Predicated region
    $region58: #{graph_cls_forward.1} parent=1 // pred_check
      _
    $region59: #{graph_cls_forward.1} parent=1 // pred_check_branch
      %67 = sbr.rel (0) target = $region61
    $region60: #{graph_cls_forward.1} parent=1 // pred_region
      _
    $region61: #{graph_cls_forward.1} parent=1 // pred_fallthru
      _
    // Predicated region
    $region62: #{graph_cls_forward.1} parent=1 // pred_check
      _
    $region63: #{graph_cls_forward.1} parent=1 // pred_check_branch
      %69 = sbr.rel (0) target = $region65
    $region64: #{graph_cls_forward.1} parent=1 // pred_region
      _
    $region65: #{graph_cls_forward.1} parent=1 // pred_fallthru
      _
    // Predicated region
    $region66: #{graph_cls_forward.1} parent=1 // pred_check
      _
    $region67: #{graph_cls_forward.1} parent=1 // pred_check_branch
      %71 = sbr.rel (0) target = $region69
    $region68: #{graph_cls_forward.1} parent=1 // pred_region
      %73 = dma.done [#allocation4], 32
    $region69: #{graph_cls_forward.1} parent=1 // pred_fallthru
      _
    // Predicated region
    $region70: #{graph_cls_forward.1} parent=1 // pred_check
      _
    $region71: #{graph_cls_forward.1} parent=1 // pred_check_branch
      %75 = sbr.rel (0) target = $region73
    $region72: #{graph_cls_forward.1} parent=1 // pred_region
      %77 = dma.done [#allocation6], 16
    $region73: #{graph_cls_forward.1} parent=1 // pred_fallthru
      _
    %78 = sfence
    %v80 = vlaneseq
    %v81 = vshrl.u32 %v80, 7
    %v82 = vadd.s32 %v81, 8
    %v83 = vlaneseq
    %v84 = vand.u32 %v83, 127
    %vm85 = vcmp.eq.s32.totalorder %v81, %v84
    %vm86 = vcmp.eq.s32.totalorder %v82, %v84
    %v87 = vsel %vm85, 1.0, 0.0
    %v88 = vsel %vm86, 1.0, 0.0
    %s89 = sld [smem:[#allocation2]]
    %s90 = sld [smem:[#allocation2 + $0x80]]
    %s91 = sld [smem:[#allocation5]]
    %v92 = vstv %s90
    %vm93 = vcmp.eq.s32.totalorder %v81, %v92
    %vm94 = vcmp.eq.s32.totalorder %v82, %v92
    %v95 = vstv %s89
    %vm96 = vcmp.eq.s32.totalorder %v84, %v95
    %vm97 = vmand %vm93, %vm96
    %vm98 = vmand %vm94, %vm96
    %v99 = vstv %s91
    %v100 = vsel %vm97, %v99, 0.0
    %v101 = vsel %vm98, %v99, 0.0
    %v102 = vadd.f32 %v87, %v100
    %v103 = vadd.f32 %v88, %v101
    %s104 = sld [smem:[#allocation2 + $0x1]]
    %s105 = sld [smem:[#allocation2 + $0x81]]
    %s106 = sld [smem:[#allocation5 + $0x1]]
    %v107 = vstv %s105
    %vm108 = vcmp.eq.s32.totalorder %v81, %v107
    %vm109 = vcmp.eq.s32.totalorder %v82, %v107
    %v110 = vstv %s104
    %vm111 = vcmp.eq.s32.totalorder %v84, %v110
    %vm112 = vmand %vm108, %vm111
    %vm113 = vmand %vm109, %vm111
    %v114 = vstv %s106
    %v115 = vsel %vm112, %v114, 0.0
    %v116 = vsel %vm113, %v114, 0.0
    %v117 = vadd.f32 %v102, %v115
    %v118 = vadd.f32 %v103, %v116
    %s119 = sld [smem:[#allocation2 + $0x2]]
    %s120 = sld [smem:[#allocation2 + $0x82]]
    %s121 = sld [smem:[#allocation5 + $0x2]]
    %v122 = vstv %s120
    %vm123 = vcmp.eq.s32.totalorder %v81, %v122
    %vm124 = vcmp.eq.s32.totalorder %v82, %v122
    %v125 = vstv %s119
    %vm126 = vcmp.eq.s32.totalorder %v84, %v125
    %vm127 = vmand %vm123, %vm126
    %vm128 = vmand %vm124, %vm126
    %v129 = vstv %s121
    %v130 = vsel %vm127, %v129, 0.0
    %v131 = vsel %vm128, %v129, 0.0
    %v132 = vadd.f32 %v117, %v130
    %v133 = vadd.f32 %v118, %v131
    %s134 = sld [smem:[#allocation2 + $0x3]]
    %s135 = sld [smem:[#allocation2 + $0x83]]
    %s136 = sld [smem:[#allocation5 + $0x3]]
    %v137 = vstv %s135
    %vm138 = vcmp.eq.s32.totalorder %v81, %v137
    %vm139 = vcmp.eq.s32.totalorder %v82, %v137
    %v140 = vstv %s134
    %vm141 = vcmp.eq.s32.totalorder %v84, %v140
    %vm142 = vmand %vm138, %vm141
    %vm143 = vmand %vm139, %vm141
    %v144 = vstv %s136
    %v145 = vsel %vm142, %v144, 0.0
    %v146 = vsel %vm143, %v144, 0.0
    %v147 = vadd.f32 %v132, %v145
    %v148 = vadd.f32 %v133, %v146
    %s149 = sld [smem:[#allocation2 + $0x4]]
    %s150 = sld [smem:[#allocation2 + $0x84]]
    %s151 = sld [smem:[#allocation5 + $0x4]]
    %v152 = vstv %s150
    %vm153 = vcmp.eq.s32.totalorder %v81, %v152
    %vm154 = vcmp.eq.s32.totalorder %v82, %v152
    %v155 = vstv %s149
    %vm156 = vcmp.eq.s32.totalorder %v84, %v155
    %vm157 = vmand %vm153, %vm156
    %vm158 = vmand %vm154, %vm156
    %v159 = vstv %s151
    %v160 = vsel %vm157, %v159, 0.0
    %v161 = vsel %vm158, %v159, 0.0
    %v162 = vadd.f32 %v147, %v160
    %v163 = vadd.f32 %v148, %v161
    %s164 = sld [smem:[#allocation2 + $0x5]]
    %s165 = sld [smem:[#allocation2 + $0x85]]
    %s166 = sld [smem:[#allocation5 + $0x5]]
    %v167 = vstv %s165
    %vm168 = vcmp.eq.s32.totalorder %v81, %v167
    %vm169 = vcmp.eq.s32.totalorder %v82, %v167
    %v170 = vstv %s164
    %vm171 = vcmp.eq.s32.totalorder %v84, %v170
    %vm172 = vmand %vm168, %vm171
    %vm173 = vmand %vm169, %vm171
    %v174 = vstv %s166
    %v175 = vsel %vm172, %v174, 0.0
    %v176 = vsel %vm173, %v174, 0.0
    %v177 = vadd.f32 %v162, %v175
    %v178 = vadd.f32 %v163, %v176
    %s179 = sld [smem:[#allocation2 + $0x6]]
    %s180 = sld [smem:[#allocation2 + $0x86]]
    %s181 = sld [smem:[#allocation5 + $0x6]]
    %v182 = vstv %s180
    %vm183 = vcmp.eq.s32.totalorder %v81, %v182
    %vm184 = vcmp.eq.s32.totalorder %v82, %v182
    %v185 = vstv %s179
    %vm186 = vcmp.eq.s32.totalorder %v84, %v185
    %vm187 = vmand %vm183, %vm186
    %vm188 = vmand %vm184, %vm186
    %v189 = vstv %s181
    %v190 = vsel %vm187, %v189, 0.0
    %v191 = vsel %vm188, %v189, 0.0
    %v192 = vadd.f32 %v177, %v190
    %v193 = vadd.f32 %v178, %v191
    %s194 = sld [smem:[#allocation2 + $0x7]]
    %s195 = sld [smem:[#allocation2 + $0x87]]
    %s196 = sld [smem:[#allocation5 + $0x7]]
    %v197 = vstv %s195
    %vm198 = vcmp.eq.s32.totalorder %v81, %v197
    %vm199 = vcmp.eq.s32.totalorder %v82, %v197
    %v200 = vstv %s194
    %vm201 = vcmp.eq.s32.totalorder %v84, %v200
    %vm202 = vmand %vm198, %vm201
    %vm203 = vmand %vm199, %vm201
    %v204 = vstv %s196
    %v205 = vsel %vm202, %v204, 0.0
    %v206 = vsel %vm203, %v204, 0.0
    %v207 = vadd.f32 %v192, %v205
    %v208 = vadd.f32 %v193, %v206
    %s209 = sld [smem:[#allocation2 + $0x8]]
    %s210 = sld [smem:[#allocation2 + $0x88]]
    %s211 = sld [smem:[#allocation5 + $0x8]]
    %v212 = vstv %s210
    %vm213 = vcmp.eq.s32.totalorder %v81, %v212
    %vm214 = vcmp.eq.s32.totalorder %v82, %v212
    %v215 = vstv %s209
    %vm216 = vcmp.eq.s32.totalorder %v84, %v215
    %vm217 = vmand %vm213, %vm216
    %vm218 = vmand %vm214, %vm216
    %v219 = vstv %s211
    %v220 = vsel %vm217, %v219, 0.0
    %v221 = vsel %vm218, %v219, 0.0
    %v222 = vadd.f32 %v207, %v220
    %v223 = vadd.f32 %v208, %v221
    %s224 = sld [smem:[#allocation2 + $0x9]]
    %s225 = sld [smem:[#allocation2 + $0x89]]
    %s226 = sld [smem:[#allocation5 + $0x9]]
    %v227 = vstv %s225
    %vm228 = vcmp.eq.s32.totalorder %v81, %v227
    %vm229 = vcmp.eq.s32.totalorder %v82, %v227
    %v230 = vstv %s224
    %vm231 = vcmp.eq.s32.totalorder %v84, %v230
    %vm232 = vmand %vm228, %vm231
    %vm233 = vmand %vm229, %vm231
    %v234 = vstv %s226
    %v235 = vsel %vm232, %v234, 0.0
    %v236 = vsel %vm233, %v234, 0.0
    %v237 = vadd.f32 %v222, %v235
    %v238 = vadd.f32 %v223, %v236
    %s239 = sld [smem:[#allocation2 + $0xa]]
    %s240 = sld [smem:[#allocation2 + $0x8a]]
    %s241 = sld [smem:[#allocation5 + $0xa]]
    %v242 = vstv %s240
    %vm243 = vcmp.eq.s32.totalorder %v81, %v242
    %vm244 = vcmp.eq.s32.totalorder %v82, %v242
    %v245 = vstv %s239
    %vm246 = vcmp.eq.s32.totalorder %v84, %v245
    %vm247 = vmand %vm243, %vm246
    %vm248 = vmand %vm244, %vm246
    %v249 = vstv %s241
    %v250 = vsel %vm247, %v249, 0.0
    %v251 = vsel %vm248, %v249, 0.0
    %v252 = vadd.f32 %v237, %v250
    %v253 = vadd.f32 %v238, %v251
    %s254 = sld [smem:[#allocation2 + $0xb]]
    %s255 = sld [smem:[#allocation2 + $0x8b]]
    %s256 = sld [smem:[#allocation5 + $0xb]]
    %v257 = vstv %s255
    %vm258 = vcmp.eq.s32.totalorder %v81, %v257
    %vm259 = vcmp.eq.s32.totalorder %v82, %v257
    %v260 = vstv %s254
    %vm261 = vcmp.eq.s32.totalorder %v84, %v260
    %vm262 = vmand %vm258, %vm261
    %vm263 = vmand %vm259, %vm261
    %v264 = vstv %s256
    %v265 = vsel %vm262, %v264, 0.0
    %v266 = vsel %vm263, %v264, 0.0
    %v267 = vadd.f32 %v252, %v265
    %v268 = vadd.f32 %v253, %v266
    %s269 = sld [smem:[#allocation2 + $0xc]]
    %s270 = sld [smem:[#allocation2 + $0x8c]]
    %s271 = sld [smem:[#allocation5 + $0xc]]
    %v272 = vstv %s270
    %vm273 = vcmp.eq.s32.totalorder %v81, %v272
    %vm274 = vcmp.eq.s32.totalorder %v82, %v272
    %v275 = vstv %s269
    %vm276 = vcmp.eq.s32.totalorder %v84, %v275
    %vm277 = vmand %vm273, %vm276
    %vm278 = vmand %vm274, %vm276
    %v279 = vstv %s271
    %v280 = vsel %vm277, %v279, 0.0
    %v281 = vsel %vm278, %v279, 0.0
    %v282 = vadd.f32 %v267, %v280
    %v283 = vadd.f32 %v268, %v281
    %s284 = sld [smem:[#allocation2 + $0xd]]
    %s285 = sld [smem:[#allocation2 + $0x8d]]
    %s286 = sld [smem:[#allocation5 + $0xd]]
    %v287 = vstv %s285
    %vm288 = vcmp.eq.s32.totalorder %v81, %v287
    %vm289 = vcmp.eq.s32.totalorder %v82, %v287
    %v290 = vstv %s284
    %vm291 = vcmp.eq.s32.totalorder %v84, %v290
    %vm292 = vmand %vm288, %vm291
    %vm293 = vmand %vm289, %vm291
    %v294 = vstv %s286
    %v295 = vsel %vm292, %v294, 0.0
    %v296 = vsel %vm293, %v294, 0.0
    %v297 = vadd.f32 %v282, %v295
    %v298 = vadd.f32 %v283, %v296
    %s299 = sld [smem:[#allocation2 + $0xe]]
    %s300 = sld [smem:[#allocation2 + $0x8e]]
    %s301 = sld [smem:[#allocation5 + $0xe]]
    %v302 = vstv %s300
    %vm303 = vcmp.eq.s32.totalorder %v81, %v302
    %vm304 = vcmp.eq.s32.totalorder %v82, %v302
    %v305 = vstv %s299
    %vm306 = vcmp.eq.s32.totalorder %v84, %v305
    %vm307 = vmand %vm303, %vm306
    %vm308 = vmand %vm304, %vm306
    %v309 = vstv %s301
    %v310 = vsel %vm307, %v309, 0.0
    %v311 = vsel %vm308, %v309, 0.0
    %v312 = vadd.f32 %v297, %v310
    %v313 = vadd.f32 %v298, %v311
    %s314 = sld [smem:[#allocation2 + $0xf]]
    %s315 = sld [smem:[#allocation2 + $0x8f]]
    %s316 = sld [smem:[#allocation5 + $0xf]]
    %v317 = vstv %s315
    %vm318 = vcmp.eq.s32.totalorder %v81, %v317
    %vm319 = vcmp.eq.s32.totalorder %v82, %v317
    %v320 = vstv %s314
    %vm321 = vcmp.eq.s32.totalorder %v84, %v320
    %vm322 = vmand %vm318, %vm321
    %vm323 = vmand %vm319, %vm321
    %v324 = vstv %s316
    %v325 = vsel %vm322, %v324, 0.0
    %v326 = vsel %vm323, %v324, 0.0
    %v327 = vadd.f32 %v312, %v325
    %v328 = vadd.f32 %v313, %v326
    %s329 = sld [smem:[#allocation2 + $0x10]]
    %s330 = sld [smem:[#allocation2 + $0x90]]
    %s331 = sld [smem:[#allocation5 + $0x10]]
    %v332 = vstv %s330
    %vm333 = vcmp.eq.s32.totalorder %v81, %v332
    %vm334 = vcmp.eq.s32.totalorder %v82, %v332
    %v335 = vstv %s329
    %vm336 = vcmp.eq.s32.totalorder %v84, %v335
    %vm337 = vmand %vm333, %vm336
    %vm338 = vmand %vm334, %vm336
    %v339 = vstv %s331
    %v340 = vsel %vm337, %v339, 0.0
    %v341 = vsel %vm338, %v339, 0.0
    %v342 = vadd.f32 %v327, %v340
    %v343 = vadd.f32 %v328, %v341
    %s344 = sld [smem:[#allocation2 + $0x11]]
    %s345 = sld [smem:[#allocation2 + $0x91]]
    %s346 = sld [smem:[#allocation5 + $0x11]]
    %v347 = vstv %s345
    %vm348 = vcmp.eq.s32.totalorder %v81, %v347
    %vm349 = vcmp.eq.s32.totalorder %v82, %v347
    %v350 = vstv %s344
    %vm351 = vcmp.eq.s32.totalorder %v84, %v350
    %vm352 = vmand %vm348, %vm351
    %vm353 = vmand %vm349, %vm351
    %v354 = vstv %s346
    %v355 = vsel %vm352, %v354, 0.0
    %v356 = vsel %vm353, %v354, 0.0
    %v357 = vadd.f32 %v342, %v355
    %v358 = vadd.f32 %v343, %v356
    %s359 = sld [smem:[#allocation2 + $0x12]]
    %s360 = sld [smem:[#allocation2 + $0x92]]
    %s361 = sld [smem:[#allocation5 + $0x12]]
    %v362 = vstv %s360
    %vm363 = vcmp.eq.s32.totalorder %v81, %v362
    %vm364 = vcmp.eq.s32.totalorder %v82, %v362
    %v365 = vstv %s359
    %vm366 = vcmp.eq.s32.totalorder %v84, %v365
    %vm367 = vmand %vm363, %vm366
    %vm368 = vmand %vm364, %vm366
    %v369 = vstv %s361
    %v370 = vsel %vm367, %v369, 0.0
    %v371 = vsel %vm368, %v369, 0.0
    %v372 = vadd.f32 %v357, %v370
    %v373 = vadd.f32 %v358, %v371
    %s374 = sld [smem:[#allocation2 + $0x13]]
    %s375 = sld [smem:[#allocation2 + $0x93]]
    %s376 = sld [smem:[#allocation5 + $0x13]]
    %v377 = vstv %s375
    %vm378 = vcmp.eq.s32.totalorder %v81, %v377
    %vm379 = vcmp.eq.s32.totalorder %v82, %v377
    %v380 = vstv %s374
    %vm381 = vcmp.eq.s32.totalorder %v84, %v380
    %vm382 = vmand %vm378, %vm381
    %vm383 = vmand %vm379, %vm381
    %v384 = vstv %s376
    %v385 = vsel %vm382, %v384, 0.0
    %v386 = vsel %vm383, %v384, 0.0
    %v387 = vadd.f32 %v372, %v385
    %v388 = vadd.f32 %v373, %v386
    %s389 = sld [smem:[#allocation2 + $0x14]]
    %s390 = sld [smem:[#allocation2 + $0x94]]
    %s391 = sld [smem:[#allocation5 + $0x14]]
    %v392 = vstv %s390
    %vm393 = vcmp.eq.s32.totalorder %v81, %v392
    %vm394 = vcmp.eq.s32.totalorder %v82, %v392
    %v395 = vstv %s389
    %vm396 = vcmp.eq.s32.totalorder %v84, %v395
    %vm397 = vmand %vm393, %vm396
    %vm398 = vmand %vm394, %vm396
    %v399 = vstv %s391
    %v400 = vsel %vm397, %v399, 0.0
    %v401 = vsel %vm398, %v399, 0.0
    %v402 = vadd.f32 %v387, %v400
    %v403 = vadd.f32 %v388, %v401
    %s404 = sld [smem:[#allocation2 + $0x15]]
    %s405 = sld [smem:[#allocation2 + $0x95]]
    %s406 = sld [smem:[#allocation5 + $0x15]]
    %v407 = vstv %s405
    %vm408 = vcmp.eq.s32.totalorder %v81, %v407
    %vm409 = vcmp.eq.s32.totalorder %v82, %v407
    %v410 = vstv %s404
    %vm411 = vcmp.eq.s32.totalorder %v84, %v410
    %vm412 = vmand %vm408, %vm411
    %vm413 = vmand %vm409, %vm411
    %v414 = vstv %s406
    %v415 = vsel %vm412, %v414, 0.0
    %v416 = vsel %vm413, %v414, 0.0
    %v417 = vadd.f32 %v402, %v415
    %v418 = vadd.f32 %v403, %v416
    %s419 = sld [smem:[#allocation2 + $0x16]]
    %s420 = sld [smem:[#allocation2 + $0x96]]
    %s421 = sld [smem:[#allocation5 + $0x16]]
    %v422 = vstv %s420
    %vm423 = vcmp.eq.s32.totalorder %v81, %v422
    %vm424 = vcmp.eq.s32.totalorder %v82, %v422
    %v425 = vstv %s419
    %vm426 = vcmp.eq.s32.totalorder %v84, %v425
    %vm427 = vmand %vm423, %vm426
    %vm428 = vmand %vm424, %vm426
    %v429 = vstv %s421
    %v430 = vsel %vm427, %v429, 0.0
    %v431 = vsel %vm428, %v429, 0.0
    %v432 = vadd.f32 %v417, %v430
    %v433 = vadd.f32 %v418, %v431
    %s434 = sld [smem:[#allocation2 + $0x17]]
    %s435 = sld [smem:[#allocation2 + $0x97]]
    %s436 = sld [smem:[#allocation5 + $0x17]]
    %v437 = vstv %s435
    %vm438 = vcmp.eq.s32.totalorder %v81, %v437
    %vm439 = vcmp.eq.s32.totalorder %v82, %v437
    %v440 = vstv %s434
    %vm441 = vcmp.eq.s32.totalorder %v84, %v440
    %vm442 = vmand %vm438, %vm441
    %vm443 = vmand %vm439, %vm441
    %v444 = vstv %s436
    %v445 = vsel %vm442, %v444, 0.0
    %v446 = vsel %vm443, %v444, 0.0
    %v447 = vadd.f32 %v432, %v445
    %v448 = vadd.f32 %v433, %v446
    %s449 = sld [smem:[#allocation2 + $0x18]]
    %s450 = sld [smem:[#allocation2 + $0x98]]
    %s451 = sld [smem:[#allocation5 + $0x18]]
    %v452 = vstv %s450
    %vm453 = vcmp.eq.s32.totalorder %v81, %v452
    %vm454 = vcmp.eq.s32.totalorder %v82, %v452
    %v455 = vstv %s449
    %vm456 = vcmp.eq.s32.totalorder %v84, %v455
    %vm457 = vmand %vm453, %vm456
    %vm458 = vmand %vm454, %vm456
    %v459 = vstv %s451
    %v460 = vsel %vm457, %v459, 0.0
    %v461 = vsel %vm458, %v459, 0.0
    %v462 = vadd.f32 %v447, %v460
    %v463 = vadd.f32 %v448, %v461
    %s464 = sld [smem:[#allocation2 + $0x19]]
    %s465 = sld [smem:[#allocation2 + $0x99]]
    %s466 = sld [smem:[#allocation5 + $0x19]]
    %v467 = vstv %s465
    %vm468 = vcmp.eq.s32.totalorder %v81, %v467
    %vm469 = vcmp.eq.s32.totalorder %v82, %v467
    %v470 = vstv %s464
    %vm471 = vcmp.eq.s32.totalorder %v84, %v470
    %vm472 = vmand %vm468, %vm471
    %vm473 = vmand %vm469, %vm471
    %v474 = vstv %s466
    %v475 = vsel %vm472, %v474, 0.0
    %v476 = vsel %vm473, %v474, 0.0
    %v477 = vadd.f32 %v462, %v475
    %v478 = vadd.f32 %v463, %v476
    %s479 = sld [smem:[#allocation2 + $0x1a]]
    %s480 = sld [smem:[#allocation2 + $0x9a]]
    %s481 = sld [smem:[#allocation5 + $0x1a]]
    %v482 = vstv %s480
    %vm483 = vcmp.eq.s32.totalorder %v81, %v482
    %vm484 = vcmp.eq.s32.totalorder %v82, %v482
    %v485 = vstv %s479
    %vm486 = vcmp.eq.s32.totalorder %v84, %v485
    %vm487 = vmand %vm483, %vm486
    %vm488 = vmand %vm484, %vm486
    %v489 = vstv %s481
    %v490 = vsel %vm487, %v489, 0.0
    %v491 = vsel %vm488, %v489, 0.0
    %v492 = vadd.f32 %v477, %v490
    %v493 = vadd.f32 %v478, %v491
    %s494 = sld [smem:[#allocation2 + $0x1b]]
    %s495 = sld [smem:[#allocation2 + $0x9b]]
    %s496 = sld [smem:[#allocation5 + $0x1b]]
    %v497 = vstv %s495
    %vm498 = vcmp.eq.s32.totalorder %v81, %v497
    %vm499 = vcmp.eq.s32.totalorder %v82, %v497
    %v500 = vstv %s494
    %vm501 = vcmp.eq.s32.totalorder %v84, %v500
    %vm502 = vmand %vm498, %vm501
    %vm503 = vmand %vm499, %vm501
    %v504 = vstv %s496
    %v505 = vsel %vm502, %v504, 0.0
    %v506 = vsel %vm503, %v504, 0.0
    %v507 = vadd.f32 %v492, %v505
    %v508 = vadd.f32 %v493, %v506
    %s509 = sld [smem:[#allocation2 + $0x1c]]
    %s510 = sld [smem:[#allocation2 + $0x9c]]
    %s511 = sld [smem:[#allocation5 + $0x1c]]
    %v512 = vstv %s510
    %vm513 = vcmp.eq.s32.totalorder %v81, %v512
    %vm514 = vcmp.eq.s32.totalorder %v82, %v512
    %v515 = vstv %s509
    %vm516 = vcmp.eq.s32.totalorder %v84, %v515
    %vm517 = vmand %vm513, %vm516
    %vm518 = vmand %vm514, %vm516
    %v519 = vstv %s511
    %v520 = vsel %vm517, %v519, 0.0
    %v521 = vsel %vm518, %v519, 0.0
    %v522 = vadd.f32 %v507, %v520
    %v523 = vadd.f32 %v508, %v521
    %s524 = sld [smem:[#allocation2 + $0x1d]]
    %s525 = sld [smem:[#allocation2 + $0x9d]]
    %s526 = sld [smem:[#allocation5 + $0x1d]]
    %v527 = vstv %s525
    %vm528 = vcmp.eq.s32.totalorder %v81, %v527
    %vm529 = vcmp.eq.s32.totalorder %v82, %v527
    %v530 = vstv %s524
    %vm531 = vcmp.eq.s32.totalorder %v84, %v530
    %vm532 = vmand %vm528, %vm531
    %vm533 = vmand %vm529, %vm531
    %v534 = vstv %s526
    %v535 = vsel %vm532, %v534, 0.0
    %v536 = vsel %vm533, %v534, 0.0
    %v537 = vadd.f32 %v522, %v535
    %v538 = vadd.f32 %v523, %v536
    %s539 = sld [smem:[#allocation2 + $0x1e]]
    %s540 = sld [smem:[#allocation2 + $0x9e]]
    %s541 = sld [smem:[#allocation5 + $0x1e]]
    %v542 = vstv %s540
    %vm543 = vcmp.eq.s32.totalorder %v81, %v542
    %vm544 = vcmp.eq.s32.totalorder %v82, %v542
    %v545 = vstv %s539
    %vm546 = vcmp.eq.s32.totalorder %v84, %v545
    %vm547 = vmand %vm543, %vm546
    %vm548 = vmand %vm544, %vm546
    %v549 = vstv %s541
    %v550 = vsel %vm547, %v549, 0.0
    %v551 = vsel %vm548, %v549, 0.0
    %v552 = vadd.f32 %v537, %v550
    %v553 = vadd.f32 %v538, %v551
    %s554 = sld [smem:[#allocation2 + $0x1f]]
    %s555 = sld [smem:[#allocation2 + $0x9f]]
    %s556 = sld [smem:[#allocation5 + $0x1f]]
    %v557 = vstv %s555
    %vm558 = vcmp.eq.s32.totalorder %v81, %v557
    %vm559 = vcmp.eq.s32.totalorder %v82, %v557
    %v560 = vstv %s554
    %vm561 = vcmp.eq.s32.totalorder %v84, %v560
    %vm562 = vmand %vm558, %vm561
    %vm563 = vmand %vm559, %vm561
    %v564 = vstv %s556
    %v565 = vsel %vm562, %v564, 0.0
    %v566 = vsel %vm563, %v564, 0.0
    %v567 = vadd.f32 %v552, %v565
    %v568 = vadd.f32 %v553, %v566
    %s569 = sld [smem:[#allocation2 + $0x20]]
    %s570 = sld [smem:[#allocation2 + $0xa0]]
    %s571 = sld [smem:[#allocation5 + $0x20]]
    %v572 = vstv %s570
    %vm573 = vcmp.eq.s32.totalorder %v81, %v572
    %vm574 = vcmp.eq.s32.totalorder %v82, %v572
    %v575 = vstv %s569
    %vm576 = vcmp.eq.s32.totalorder %v84, %v575
    %vm577 = vmand %vm573, %vm576
    %vm578 = vmand %vm574, %vm576
    %v579 = vstv %s571
    %v580 = vsel %vm577, %v579, 0.0
    %v581 = vsel %vm578, %v579, 0.0
    %v582 = vadd.f32 %v567, %v580
    %v583 = vadd.f32 %v568, %v581
    %s584 = sld [smem:[#allocation2 + $0x21]]
    %s585 = sld [smem:[#allocation2 + $0xa1]]
    %s586 = sld [smem:[#allocation5 + $0x21]]
    %v587 = vstv %s585
    %vm588 = vcmp.eq.s32.totalorder %v81, %v587
    %vm589 = vcmp.eq.s32.totalorder %v82, %v587
    %v590 = vstv %s584
    %vm591 = vcmp.eq.s32.totalorder %v84, %v590
    %vm592 = vmand %vm588, %vm591
    %vm593 = vmand %vm589, %vm591
    %v594 = vstv %s586
    %v595 = vsel %vm592, %v594, 0.0
    %v596 = vsel %vm593, %v594, 0.0
    %v597 = vadd.f32 %v582, %v595
    %v598 = vadd.f32 %v583, %v596
    %s599 = sld [smem:[#allocation2 + $0x22]]
    %s600 = sld [smem:[#allocation2 + $0xa2]]
    %s601 = sld [smem:[#allocation5 + $0x22]]
    %v602 = vstv %s600
    %vm603 = vcmp.eq.s32.totalorder %v81, %v602
    %vm604 = vcmp.eq.s32.totalorder %v82, %v602
    %v605 = vstv %s599
    %vm606 = vcmp.eq.s32.totalorder %v84, %v605
    %vm607 = vmand %vm603, %vm606
    %vm608 = vmand %vm604, %vm606
    %v609 = vstv %s601
    %v610 = vsel %vm607, %v609, 0.0
    %v611 = vsel %vm608, %v609, 0.0
    %v612 = vadd.f32 %v597, %v610
    %v613 = vadd.f32 %v598, %v611
    %s614 = sld [smem:[#allocation2 + $0x23]]
    %s615 = sld [smem:[#allocation2 + $0xa3]]
    %s616 = sld [smem:[#allocation5 + $0x23]]
    %v617 = vstv %s615
    %vm618 = vcmp.eq.s32.totalorder %v81, %v617
    %vm619 = vcmp.eq.s32.totalorder %v82, %v617
    %v620 = vstv %s614
    %vm621 = vcmp.eq.s32.totalorder %v84, %v620
    %vm622 = vmand %vm618, %vm621
    %vm623 = vmand %vm619, %vm621
    %v624 = vstv %s616
    %v625 = vsel %vm622, %v624, 0.0
    %v626 = vsel %vm623, %v624, 0.0
    %v627 = vadd.f32 %v612, %v625
    %v628 = vadd.f32 %v613, %v626
    %s629 = sld [smem:[#allocation2 + $0x24]]
    %s630 = sld [smem:[#allocation2 + $0xa4]]
    %s631 = sld [smem:[#allocation5 + $0x24]]
    %v632 = vstv %s630
    %vm633 = vcmp.eq.s32.totalorder %v81, %v632
    %vm634 = vcmp.eq.s32.totalorder %v82, %v632
    %v635 = vstv %s629
    %vm636 = vcmp.eq.s32.totalorder %v84, %v635
    %vm637 = vmand %vm633, %vm636
    %vm638 = vmand %vm634, %vm636
    %v639 = vstv %s631
    %v640 = vsel %vm637, %v639, 0.0
    %v641 = vsel %vm638, %v639, 0.0
    %v642 = vadd.f32 %v627, %v640
    %v643 = vadd.f32 %v628, %v641
    %s644 = sld [smem:[#allocation2 + $0x25]]
    %s645 = sld [smem:[#allocation2 + $0xa5]]
    %s646 = sld [smem:[#allocation5 + $0x25]]
    %v647 = vstv %s645
    %vm648 = vcmp.eq.s32.totalorder %v81, %v647
    %vm649 = vcmp.eq.s32.totalorder %v82, %v647
    %v650 = vstv %s644
    %vm651 = vcmp.eq.s32.totalorder %v84, %v650
    %vm652 = vmand %vm648, %vm651
    %vm653 = vmand %vm649, %vm651
    %v654 = vstv %s646
    %v655 = vsel %vm652, %v654, 0.0
    %v656 = vsel %vm653, %v654, 0.0
    %v657 = vadd.f32 %v642, %v655
    %v658 = vadd.f32 %v643, %v656
    %s659 = sld [smem:[#allocation2 + $0x26]]
    %s660 = sld [smem:[#allocation2 + $0xa6]]
    %s661 = sld [smem:[#allocation5 + $0x26]]
    %v662 = vstv %s660
    %vm663 = vcmp.eq.s32.totalorder %v81, %v662
    %vm664 = vcmp.eq.s32.totalorder %v82, %v662
    %v665 = vstv %s659
    %vm666 = vcmp.eq.s32.totalorder %v84, %v665
    %vm667 = vmand %vm663, %vm666
    %vm668 = vmand %vm664, %vm666
    %v669 = vstv %s661
    %v670 = vsel %vm667, %v669, 0.0
    %v671 = vsel %vm668, %v669, 0.0
    %v672 = vadd.f32 %v657, %v670
    %v673 = vadd.f32 %v658, %v671
    %s674 = sld [smem:[#allocation2 + $0x27]]
    %s675 = sld [smem:[#allocation2 + $0xa7]]
    %s676 = sld [smem:[#allocation5 + $0x27]]
    %v677 = vstv %s675
    %vm678 = vcmp.eq.s32.totalorder %v81, %v677
    %vm679 = vcmp.eq.s32.totalorder %v82, %v677
    %v680 = vstv %s674
    %vm681 = vcmp.eq.s32.totalorder %v84, %v680
    %vm682 = vmand %vm678, %vm681
    %vm683 = vmand %vm679, %vm681
    %v684 = vstv %s676
    %v685 = vsel %vm682, %v684, 0.0
    %v686 = vsel %vm683, %v684, 0.0
    %v687 = vadd.f32 %v672, %v685
    %v688 = vadd.f32 %v673, %v686
    %vm689 = vcmask 130048
    %v690 = vsel %vm689, %v687, 0.0
    %691 = vadd.xlane.f32.xlu0 %v690
    %v692 = vpop.xlane.xlu0 %691
    %v693 = vsel %vm689, %v688, 0.0
    %694 = vadd.xlane.f32.xlu0 %v693
    %v695 = vpop.xlane.xlu0 %694
    %v696 = vrsqrt.pop %v692
    %v697 = vmul.f32 %v696, %v692
    %v698 = vmul.f32 %v697, %v696
    %v699 = vmul.f32 0.5, %v698
    %v700 = vsub.f32 1.5, %v699
    %v701 = vmul.f32 %v696, %v700
    %vm702 = vweird.f32 %v692
    %vm703 = vweird.f32 %v696
    %vm704 = vmor %vm702, %vm703
    %v705 = vsel %vm704, %v696, %v701
    %v706 = vrsqrt.pop %v695
    %v707 = vmul.f32 %v706, %v695
    %v708 = vmul.f32 %v707, %v706
    %v709 = vmul.f32 0.5, %v708
    %v710 = vsub.f32 1.5, %v709
    %v711 = vmul.f32 %v706, %v710
    %vm712 = vweird.f32 %v695
    %vm713 = vweird.f32 %v706
    %vm714 = vmor %vm712, %vm713
    %v715 = vsel %vm714, %v706, %v711
    %v716 = vpack.c.bf16 %v688, %v687
    %v717 = vld [vmem:[%s0] sm:$0xff]
    %v718 = vld [vmem:[%s0 + $0x8] sm:$0xff]
    %v719 = vld [vmem:[%s0 + $0x10] sm:$0xff]
    %v720 = vld [vmem:[%s0 + $0x18] sm:$0xff]
    %v721 = vld [vmem:[%s0 + $0x20] sm:$0xff]
    %v722 = vld [vmem:[%s0 + $0x28] sm:$0xff]
    %v723 = vld [vmem:[%s0 + $0x30] sm:$0xff]
    %v724 = vld [vmem:[%s0 + $0x38] sm:$0xff]
    %v725 = vpack.c.bf16 %v721, %v717
    %v726 = vpack.c.bf16 %v722, %v718
    %v727 = vpack.c.bf16 %v723, %v719
    %v728 = vpack.c.bf16 %v724, %v720
    %v729 = vld [vmem:[%s4] sm:$0xf]
    %v730 = vld [vmem:[%s4 + $0x4] sm:$0xf]
    %v731 = vld [vmem:[%s4 + $0x8] sm:$0xf]
    %v732 = vld [vmem:[%s4 + $0xc] sm:$0xf]
    %v733 = vld [vmem:[%s4 + $0x10] sm:$0xf]
    %v734 = vld [vmem:[%s4 + $0x14] sm:$0xf]
    %v735 = vld [vmem:[%s4 + $0x18] sm:$0xf]
    %v736 = vld [vmem:[%s4 + $0x1c] sm:$0xf]
    %v737 = vld [vmem:[%s4 + $0x20] sm:$0xf]
    %v738 = vld [vmem:[%s4 + $0x24] sm:$0xf]
    %v739 = vld [vmem:[%s4 + $0x28] sm:$0xf]
    %v740 = vld [vmem:[%s4 + $0x2c] sm:$0xf]
    %v741 = vld [vmem:[%s4 + $0x30] sm:$0xf]
    %v742 = vld [vmem:[%s4 + $0x34] sm:$0xf]
    %v743 = vld [vmem:[%s4 + $0x38] sm:$0xf]
    %v744 = vld [vmem:[%s4 + $0x3c] sm:$0xf]
    %v745 = vld [vmem:[%s4 + $0x40] sm:$0xf]
    %v746 = vld [vmem:[%s4 + $0x44] sm:$0xf]
    %v747 = vld [vmem:[%s4 + $0x48] sm:$0xf]
    %v748 = vld [vmem:[%s4 + $0x4c] sm:$0xf]
    %v749 = vld [vmem:[%s4 + $0x50] sm:$0xf]
    %v750 = vld [vmem:[%s4 + $0x54] sm:$0xf]
    %v751 = vld [vmem:[%s4 + $0x58] sm:$0xf]
    %v752 = vld [vmem:[%s4 + $0x5c] sm:$0xf]
    %v753 = vld [vmem:[%s4 + $0x60] sm:$0xf]
    %v754 = vld [vmem:[%s4 + $0x64] sm:$0xf]
    %v755 = vld [vmem:[%s4 + $0x68] sm:$0xf]
    %v756 = vld [vmem:[%s4 + $0x6c] sm:$0xf]
    %v757 = vld [vmem:[%s4 + $0x70] sm:$0xf]
    %v758 = vld [vmem:[%s4 + $0x74] sm:$0xf]
    %v759 = vld [vmem:[%s4 + $0x78] sm:$0xf]
    %v760 = vld [vmem:[%s4 + $0x7c] sm:$0xf]
    %v761 = vld [vmem:[%s4 + $0x80] sm:$0xf]
    %v762 = vld [vmem:[%s4 + $0x84] sm:$0xf]
    %v763 = vld [vmem:[%s4 + $0x88] sm:$0xf]
    %v764 = vld [vmem:[%s4 + $0x8c] sm:$0xf]
    %v765 = vld [vmem:[%s4 + $0x90] sm:$0xf]
    %v766 = vld [vmem:[%s4 + $0x94] sm:$0xf]
    %v767 = vld [vmem:[%s4 + $0x98] sm:$0xf]
    %v768 = vld [vmem:[%s4 + $0x9c] sm:$0xf]
    %v769 = vld [vmem:[%s4 + $0xa0] sm:$0xf]
    %v770 = vld [vmem:[%s4 + $0xa4] sm:$0xf]
    %v771 = vld [vmem:[%s4 + $0xa8] sm:$0xf]
    %v772 = vld [vmem:[%s4 + $0xac] sm:$0xf]
    %v773 = vld [vmem:[%s4 + $0xb0] sm:$0xf]
    %v774 = vld [vmem:[%s4 + $0xb4] sm:$0xf]
    %v775 = vld [vmem:[%s4 + $0xb8] sm:$0xf]
    %v776 = vld [vmem:[%s4 + $0xbc] sm:$0xf]
    %v777 = vld [vmem:[%s4 + $0xc0] sm:$0xf]
    %v778 = vld [vmem:[%s4 + $0xc4] sm:$0xf]
    %v779 = vld [vmem:[%s4 + $0xc8] sm:$0xf]
    %v780 = vld [vmem:[%s4 + $0xcc] sm:$0xf]
    %v781 = vld [vmem:[%s4 + $0xd0] sm:$0xf]
    %v782 = vld [vmem:[%s4 + $0xd4] sm:$0xf]
    %v783 = vld [vmem:[%s4 + $0xd8] sm:$0xf]
    %v784 = vld [vmem:[%s4 + $0xdc] sm:$0xf]
    %v785 = vld [vmem:[%s4 + $0xe0] sm:$0xf]
    %v786 = vld [vmem:[%s4 + $0xe4] sm:$0xf]
    %v787 = vld [vmem:[%s4 + $0xe8] sm:$0xf]
    %v788 = vld [vmem:[%s4 + $0xec] sm:$0xf]
    %v789 = vld [vmem:[%s4 + $0xf0] sm:$0xf]
    %v790 = vld [vmem:[%s4 + $0xf4] sm:$0xf]
    %v791 = vld [vmem:[%s4 + $0xf8] sm:$0xf]
    %v792 = vld [vmem:[%s4 + $0xfc] sm:$0xf]
    %v857 = vunpack.c.l.b16 %v729
    %v858 = vunpack.c.l.b16 %v730
    %v859 = vunpack.c.l.b16 %v731
    %v860 = vunpack.c.l.b16 %v732
    %v861 = vunpack.c.l.b16 %v733
    %v862 = vunpack.c.l.b16 %v734
    %v863 = vunpack.c.l.b16 %v735
    %v864 = vunpack.c.l.b16 %v736
    %v865 = vunpack.c.l.b16 %v737
    %v866 = vunpack.c.l.b16 %v738
    %v867 = vunpack.c.l.b16 %v739
    %v868 = vunpack.c.l.b16 %v740
    %v869 = vunpack.c.l.b16 %v741
    %v870 = vunpack.c.l.b16 %v742
    %v871 = vunpack.c.l.b16 %v743
    %v872 = vunpack.c.l.b16 %v744
    %v873 = vunpack.c.l.b16 %v745
    %v874 = vunpack.c.l.b16 %v746
    %v875 = vunpack.c.l.b16 %v747
    %v876 = vunpack.c.l.b16 %v748
    %v877 = vunpack.c.l.b16 %v749
    %v878 = vunpack.c.l.b16 %v750
    %v879 = vunpack.c.l.b16 %v751
    %v880 = vunpack.c.l.b16 %v752
    %v881 = vunpack.c.l.b16 %v753
    %v882 = vunpack.c.l.b16 %v754
    %v883 = vunpack.c.l.b16 %v755
    %v884 = vunpack.c.l.b16 %v756
    %v885 = vunpack.c.l.b16 %v757
    %v886 = vunpack.c.l.b16 %v758
    %v887 = vunpack.c.l.b16 %v759
    %v888 = vunpack.c.l.b16 %v760
    %v889 = vunpack.c.l.b16 %v761
    %v890 = vunpack.c.l.b16 %v762
    %v891 = vunpack.c.l.b16 %v763
    %v892 = vunpack.c.l.b16 %v764
    %v893 = vunpack.c.l.b16 %v765
    %v894 = vunpack.c.l.b16 %v766
    %v895 = vunpack.c.l.b16 %v767
    %v896 = vunpack.c.l.b16 %v768
    %v897 = vunpack.c.l.b16 %v769
    %v898 = vunpack.c.l.b16 %v770
    %v899 = vunpack.c.l.b16 %v771
    %v900 = vunpack.c.l.b16 %v772
    %v901 = vunpack.c.l.b16 %v773
    %v902 = vunpack.c.l.b16 %v774
    %v903 = vunpack.c.l.b16 %v775
    %v904 = vunpack.c.l.b16 %v776
    %v905 = vunpack.c.l.b16 %v777
    %v906 = vunpack.c.l.b16 %v778
    %v907 = vunpack.c.l.b16 %v779
    %v908 = vunpack.c.l.b16 %v780
    %v909 = vunpack.c.l.b16 %v781
    %v910 = vunpack.c.l.b16 %v782
    %v911 = vunpack.c.l.b16 %v783
    %v912 = vunpack.c.l.b16 %v784
    %v913 = vunpack.c.l.b16 %v785
    %v914 = vunpack.c.l.b16 %v786
    %v915 = vunpack.c.l.b16 %v787
    %v916 = vunpack.c.l.b16 %v788
    %v917 = vunpack.c.l.b16 %v789
    %v918 = vunpack.c.l.b16 %v790
    %v919 = vunpack.c.l.b16 %v791
    %v920 = vunpack.c.l.b16 %v792
    %v921 = vpack.c.b16 %v858, %v857
    %v922 = vpack.c.b16 %v860, %v859
    %v923 = vpack.c.b16 %v862, %v861
    %v924 = vpack.c.b16 %v864, %v863
    %v925 = vpack.c.b16 %v866, %v865
    %v926 = vpack.c.b16 %v868, %v867
    %v927 = vpack.c.b16 %v870, %v869
    %v928 = vpack.c.b16 %v872, %v871
    %v929 = vpack.c.b16 %v874, %v873
    %v930 = vpack.c.b16 %v876, %v875
    %v931 = vpack.c.b16 %v878, %v877
    %v932 = vpack.c.b16 %v880, %v879
    %v933 = vpack.c.b16 %v882, %v881
    %v934 = vpack.c.b16 %v884, %v883
    %v935 = vpack.c.b16 %v886, %v885
    %v936 = vpack.c.b16 %v888, %v887
    %v937 = vpack.c.b16 %v890, %v889
    %v938 = vpack.c.b16 %v892, %v891
    %v939 = vpack.c.b16 %v894, %v893
    %v940 = vpack.c.b16 %v896, %v895
    %v941 = vpack.c.b16 %v898, %v897
    %v942 = vpack.c.b16 %v900, %v899
    %v943 = vpack.c.b16 %v902, %v901
    %v944 = vpack.c.b16 %v904, %v903
    %v945 = vpack.c.b16 %v906, %v905
    %v946 = vpack.c.b16 %v908, %v907
    %v947 = vpack.c.b16 %v910, %v909
    %v948 = vpack.c.b16 %v912, %v911
    %v949 = vpack.c.b16 %v914, %v913
    %v950 = vpack.c.b16 %v916, %v915
    %v951 = vpack.c.b16 %v918, %v917
    %v952 = vpack.c.b16 %v920, %v919
    %985 = vmatpush.bf16.msra.mxu0 %v928
    %986 = vmatpush.bf16.msra.mxu0 %v927
    %987 = vmatpush.bf16.msra.mxu0 %v926
    %988 = vmatpush.bf16.msra.mxu0 %v925
    %989 = vmatpush.bf16.msra.mxu0 %v924
    %990 = vmatpush.bf16.msra.mxu0 %v923
    %991 = vmatpush.bf16.msra.mxu0 %v922
    %992 = vmatpush.bf16.msra.mxu0 %v921
    %993 = vmatmul.bf16.gmra.mxu0 %v725
    %v994 = vpop.f32.mrf.mxu0
    %v995 = vadd.f32 0.0, %v994
    %v996 = vpop.f32.mrf.mxu0
    %v997 = vadd.f32 0.0, %v996
    %998 = vdwg.mxu0
    %999 = vmatpush.bf16.msra.mxu0 %v936
    %1000 = vmatpush.bf16.msra.mxu0 %v935
    %1001 = vmatpush.bf16.msra.mxu0 %v934
    %1002 = vmatpush.bf16.msra.mxu0 %v933
    %1003 = vmatpush.bf16.msra.mxu0 %v932
    %1004 = vmatpush.bf16.msra.mxu0 %v931
    %1005 = vmatpush.bf16.msra.mxu0 %v930
    %1006 = vmatpush.bf16.msra.mxu0 %v929
    %1007 = vmatmul.bf16.gmra.mxu0 %v726
    %v1008 = vpop.f32.mrf.mxu0
    %v1009 = vadd.f32 %v995, %v1008
    %v1010 = vpop.f32.mrf.mxu0
    %v1011 = vadd.f32 %v997, %v1010
    %1012 = vdwg.mxu0
    %1013 = vmatpush.bf16.msra.mxu0 %v944
    %1014 = vmatpush.bf16.msra.mxu0 %v943
    %1015 = vmatpush.bf16.msra.mxu0 %v942
    %1016 = vmatpush.bf16.msra.mxu0 %v941
    %1017 = vmatpush.bf16.msra.mxu0 %v940
    %1018 = vmatpush.bf16.msra.mxu0 %v939
    %1019 = vmatpush.bf16.msra.mxu0 %v938
    %1020 = vmatpush.bf16.msra.mxu0 %v937
    %1021 = vmatmul.bf16.gmra.mxu0 %v727
    %v1022 = vpop.f32.mrf.mxu0
    %v1023 = vadd.f32 %v1009, %v1022
    %v1024 = vpop.f32.mrf.mxu0
    %v1025 = vadd.f32 %v1011, %v1024
    %1026 = vdwg.mxu0
    %1027 = vmatpush.bf16.msra.mxu0 %v952
    %1028 = vmatpush.bf16.msra.mxu0 %v951
    %1029 = vmatpush.bf16.msra.mxu0 %v950
    %1030 = vmatpush.bf16.msra.mxu0 %v949
    %1031 = vmatpush.bf16.msra.mxu0 %v948
    %1032 = vmatpush.bf16.msra.mxu0 %v947
    %1033 = vmatpush.bf16.msra.mxu0 %v946
    %1034 = vmatpush.bf16.msra.mxu0 %v945
    %1035 = vmatmul.bf16.gmra.mxu0 %v728
    %v1036 = vpop.f32.mrf.mxu0
    %v1037 = vadd.f32 %v1023, %v1036
    %v1038 = vpop.f32.mrf.mxu0
    %v1039 = vadd.f32 %v1025, %v1038
    %1040 = vdwg.mxu0
    %v1041 = vmul.f32 %v705, %v1037
    %v1042 = vmul.f32 %v715, %v1039
    %v1043 = vpack.c.bf16 %v1042, %v1041
    %v1045 = vsel %vm689, %v716, 0
    %1047 = vmatpush.bf16.msra.mxu0 0
    %1048 = vmatpush.bf16.msra.mxu0 0
    %1049 = vmatpush.bf16.msra.mxu0 0
    %1050 = vmatpush.bf16.msra.mxu0 0
    %1051 = vmatpush.bf16.msra.mxu0 0
    %1052 = vmatpush.bf16.msra.mxu0 0
    %1053 = vmatpush.bf16.msra.mxu0 0
    %1054 = vmatpush.bf16.msra.mxu0 %v1043
    %1055 = vmatmul.bf16.gmra.mxu0 %v1045
    %v1056 = vpop.f32.mrf.mxu0
    %v1057 = vadd.f32 0.0, %v1056
    %v1058 = vpop.f32.mrf.mxu0
    %v1059 = vadd.f32 0.0, %v1058
    %1060 = vdwg.mxu0
    %v1061 = vmul.f32 %v705, %v1057
    %v1062 = vmul.f32 %v715, %v1059
    %v1063 = vld [vmem:[%s5] sm:$0x1]
    %v1065 = vperm.slane %v1063, 0
    %v1067 = vadd.f32 %v1061, %v1065
    %v1068 = vadd.f32 %v1062, %v1065
    %v1069 = vmax.f32 %v1067, 0.0
    %v1070 = vmax.f32 %v1068, 0.0
    %v1071 = vpack.c.bf16 %v1070, %v1069
    %v1072 = vld [vmem:[%s6] sm:$0xf]
    %v1073 = vld [vmem:[%s6 + $0x4] sm:$0xf]
    %v1074 = vld [vmem:[%s6 + $0x8] sm:$0xf]
    %v1075 = vld [vmem:[%s6 + $0xc] sm:$0xf]
    %v1080 = vunpack.c.l.b16 %v1072
    %v1081 = vunpack.c.l.b16 %v1073
    %v1082 = vunpack.c.l.b16 %v1074
    %v1083 = vunpack.c.l.b16 %v1075
    %v1084 = vpack.c.b16 %v1081, %v1080
    %v1085 = vpack.c.b16 %v1083, %v1082
    %vm1088 = vcmask 261120
    %v1090 = vsel %vm1088, %v1071, 0
    %1092 = vmatpush.bf16.msra.mxu0 0
    %1093 = vmatpush.bf16.msra.mxu0 0
    %1094 = vmatpush.bf16.msra.mxu0 0
    %1095 = vmatpush.bf16.msra.mxu0 0
    %1096 = vmatpush.bf16.msra.mxu0 0
    %1097 = vmatpush.bf16.msra.mxu0 0
    %1098 = vmatpush.bf16.msra.mxu0 %v1085
    %1099 = vmatpush.bf16.msra.mxu0 %v1084
    %1100 = vmatmul.bf16.gmra.mxu0 %v1090
    %v1101 = vpop.f32.mrf.mxu0
    %v1102 = vadd.f32 0.0, %v1101
    %v1103 = vpop.f32.mrf.mxu0
    %v1104 = vadd.f32 0.0, %v1103
    %1105 = vdwg.mxu0
    %v1106 = vmul.f32 %v705, %v1102
    %v1107 = vmul.f32 %v715, %v1104
    %v1108 = vpack.c.bf16 %v1107, %v1106
    %1109 = vmatpush.bf16.msra.mxu0 0
    %1110 = vmatpush.bf16.msra.mxu0 0
    %1111 = vmatpush.bf16.msra.mxu0 0
    %1112 = vmatpush.bf16.msra.mxu0 0
    %1113 = vmatpush.bf16.msra.mxu0 0
    %1114 = vmatpush.bf16.msra.mxu0 0
    %1115 = vmatpush.bf16.msra.mxu0 0
    %1116 = vmatpush.bf16.msra.mxu0 %v1108
    %1117 = vmatmul.bf16.gmra.mxu0 %v1045
    %v1118 = vpop.f32.mrf.mxu0
    %v1119 = vadd.f32 0.0, %v1118
    %v1120 = vpop.f32.mrf.mxu0
    %v1121 = vadd.f32 0.0, %v1120
    %1122 = vdwg.mxu0
    %v1123 = vmul.f32 %v705, %v1119
    %v1124 = vmul.f32 %v715, %v1121
    %v1125 = vld [vmem:[%s7] sm:$0x1]
    %v1127 = vperm.slane %v1125, 0
    %v1129 = vadd.f32 %v1123, %v1127
    %v1130 = vadd.f32 %v1124, %v1127
    %v1131 = vmax.f32 %v1129, 0.0
    %v1132 = vmax.f32 %v1130, 0.0
    %v1133 = vpack.c.bf16 %v1132, %v1131
    %v1135 = vsel %vm1088, %v1133, 0
    %1137 = vmatpush.bf16.msra.mxu0 0
    %1138 = vmatpush.bf16.msra.mxu0 0
    %1139 = vmatpush.bf16.msra.mxu0 0
    %1140 = vmatpush.bf16.msra.mxu0 0
    %1141 = vmatpush.bf16.msra.mxu0 0
    %1142 = vmatpush.bf16.msra.mxu0 0
    %1143 = vmatpush.bf16.msra.mxu0 %v1085
    %1144 = vmatpush.bf16.msra.mxu0 %v1084
    %1145 = vmatmul.bf16.gmra.mxu0 %v1135
    %v1146 = vpop.f32.mrf.mxu0
    %v1147 = vadd.f32 0.0, %v1146
    %v1148 = vpop.f32.mrf.mxu0
    %v1149 = vadd.f32 0.0, %v1148
    %1150 = vdwg.mxu0
    %v1151 = vmul.f32 %v705, %v1147
    %v1152 = vmul.f32 %v715, %v1149
    %v1153 = vpack.c.bf16 %v1152, %v1151
    %1154 = vmatpush.bf16.msra.mxu0 0
    %1155 = vmatpush.bf16.msra.mxu0 0
    %1156 = vmatpush.bf16.msra.mxu0 0
    %1157 = vmatpush.bf16.msra.mxu0 0
    %1158 = vmatpush.bf16.msra.mxu0 0
    %1159 = vmatpush.bf16.msra.mxu0 0
    %1160 = vmatpush.bf16.msra.mxu0 0
    %1161 = vmatpush.bf16.msra.mxu0 %v1153
    %1162 = vmatmul.bf16.gmra.mxu0 %v1045
    %v1163 = vpop.f32.mrf.mxu0
    %v1164 = vadd.f32 0.0, %v1163
    %v1165 = vpop.f32.mrf.mxu0
    %v1166 = vadd.f32 0.0, %v1165
    %1167 = vdwg.mxu0
    %v1168 = vmul.f32 %v705, %v1164
    %v1169 = vmul.f32 %v715, %v1166
    %v1170 = vadd.f32 %v1168, %v1127
    %v1171 = vadd.f32 %v1169, %v1127
    %v1172 = vmax.f32 %v1170, 0.0
    %v1173 = vmax.f32 %v1171, 0.0
    %v1174 = vld [vmem:[%s8] sm:$0x1]
    %v1176 = vperm.slane %v1174, 0
    %v1178 = vmul.f32 %v1069, %v1176
    %v1179 = vmul.f32 %v1070, %v1176
    %v1180 = vsel %vm1088, %v1178, 0.0
    %1181 = vadd.xlane.f32.xlu0 %v1180
    %v1182 = vpop.xlane.xlu0 %1181
    %v1183 = vsel %vm1088, %v1179, 0.0
    %1184 = vadd.xlane.f32.xlu0 %v1183
    %v1185 = vpop.xlane.xlu0 %1184
    %1186 = vrot.lane.b32.xlu0 %v1176, 96
    %v1187 = vpop.permute.xlu0 %1186
    %v1189 = vmul.f32 %v1131, %v1187
    %v1190 = vmul.f32 %v1132, %v1187
    %v1191 = vsel %vm1088, %v1189, 0.0
    %1192 = vadd.xlane.f32.xlu0 %v1191
    %v1193 = vpop.xlane.xlu0 %1192
    %v1194 = vsel %vm1088, %v1190, 0.0
    %1195 = vadd.xlane.f32.xlu0 %v1194
    %v1196 = vpop.xlane.xlu0 %1195
    %v1197 = vadd.f32 %v1182, %v1193
    %v1198 = vadd.f32 %v1185, %v1196
    %1199 = vrot.lane.b32.xlu0 %v1176, 64
    %v1200 = vpop.permute.xlu0 %1199
    %v1202 = vmul.f32 %v1172, %v1200
    %v1203 = vmul.f32 %v1173, %v1200
    %v1204 = vsel %vm1088, %v1202, 0.0
    %1205 = vadd.xlane.f32.xlu0 %v1204
    %v1206 = vpop.xlane.xlu0 %1205
    %v1207 = vsel %vm1088, %v1203, 0.0
    %1208 = vadd.xlane.f32.xlu0 %v1207
    %v1209 = vpop.xlane.xlu0 %1208
    %v1210 = vadd.f32 %v1197, %v1206
    %v1211 = vadd.f32 %v1198, %v1209
    %v1212 = vsub.f32 0.0, %v1210
    %v1213 = vsub.f32 0.0, %v1211
    %v1214 = vmul.f32 %v1212, 1.442695
    %v1215 = vpow.pop %v1214
    %v1216 = vmul.f32 %v1213, 1.442695
    %v1217 = vpow.pop %v1216
    %v1218 = vadd.f32 %v1215, 1.0
    %v1219 = vadd.f32 %v1217, 1.0
    %v1220 = vrcp.pop %v1218
    %v1221 = vmul.f32 %v1218, %v1220
    %v1222 = vsub.f32 1.0, %v1221
    %v1223 = vmul.f32 %v1220, %v1222
    %v1224 = vadd.f32 %v1220, %v1223
    %vm1225 = vweird.f32 %v1218
    %vm1226 = vweird.f32 %v1220
    %vm1227 = vmor %vm1225, %vm1226
    %v1228 = vsel %vm1227, %v1220, %v1224
    %v1229 = vand.u32 2147483647, %v1218
    %vm1230 = vcmp.eq.f32.partialorder %v1229, 8.507059e+37
    %v1231 = vand.u32 %v1218, 2147483648
    %v1232 = vor.u32 1.1754944e-38, %v1231
    %v1233 = vsel %vm1230, %v1232, %v1228
    %v1234 = vmul.f32 1.0, %v1233
    %v1235 = vrcp.pop %v1219
    %v1236 = vmul.f32 %v1219, %v1235
    %v1237 = vsub.f32 1.0, %v1236
    %v1238 = vmul.f32 %v1235, %v1237
    %v1239 = vadd.f32 %v1235, %v1238
    %vm1240 = vweird.f32 %v1219
    %vm1241 = vweird.f32 %v1235
    %vm1242 = vmor %vm1240, %vm1241
    %v1243 = vsel %vm1242, %v1235, %v1239
    %v1244 = vand.u32 2147483647, %v1219
    %vm1245 = vcmp.eq.f32.partialorder %v1244, 8.507059e+37
    %v1246 = vand.u32 %v1219, 2147483648
    %v1247 = vor.u32 1.1754944e-38, %v1246
    %v1248 = vsel %vm1245, %v1247, %v1243
    %v1249 = vmul.f32 1.0, %v1248
    %v1250 = vld [vmem:[%s3] sm:$0xff]
    %v1251 = vld [vmem:[%s3 + $0x8] sm:$0xff]
    %v1252 = vsel %vm85, %v1210, 0.0
    %v1253 = vsel %vm86, %v1211, 0.0
    %v1254 = vsel %vm689, %v1252, 0.0
    %v1255 = vsel %vm689, %v1253, 0.0
    %v1256 = vadd.f32 %v1254, %v1255
    %v1257 = vrot.slane %v1256, 4
    %v1258 = vadd.f32 %v1256, %v1257
    %v1259 = vrot.slane %v1258, 2
    %v1260 = vadd.f32 %v1258, %v1259
    %v1261 = vrot.slane %v1260, 1
    %v1262 = vadd.f32 %v1260, %v1261
    %1264 = vset.pattern.permute.xlu0 0
    %1265 = vperm.xlu0 %1264, %v1250
    %v1266 = vpop.permute.xlu0 %1265
    %1269 = vset.pattern.permute.xlu0 0
    %1270 = vperm.xlu0 %1269, %v1251
    %v1271 = vpop.permute.xlu0 %1270
    %v1273 = vsel %vm85, %v1266, 0.0
    %v1274 = vsel %vm86, %v1271, 0.0
    %v1275 = vsel %vm689, %v1273, 0.0
    %v1276 = vsel %vm689, %v1274, 0.0
    %v1277 = vadd.f32 %v1275, %v1276
    %v1278 = vrot.slane %v1277, 4
    %v1279 = vadd.f32 %v1277, %v1278
    %v1280 = vrot.slane %v1279, 2
    %v1281 = vadd.f32 %v1279, %v1280
    %v1282 = vrot.slane %v1281, 1
    %v1283 = vadd.f32 %v1281, %v1282
    %vm1284 = vcmp.eq.f32.partialorder %v1266, %v1283
    %vm1285 = vcmp.eq.f32.partialorder %v1271, %v1283
    %vm1286 = vcmp.gt.f32.partialorder %v1262, %v1210
    %vm1287 = vcmp.gt.f32.partialorder %v1262, %v1211
    %vm1288 = vcmp.eq.f32.partialorder %v1262, %v1210
    %vm1289 = vcmp.eq.f32.partialorder %v1262, %v1211
    %vm1290 = vcmp.lt.s32.totalorder %v84, %v81
    %vm1291 = vcmp.lt.s32.totalorder %v84, %v82
    %vm1292 = vmand %vm1288, %vm1290
    %vm1293 = vmand %vm1289, %vm1291
    %vm1294 = vmor %vm1286, %vm1292
    %vm1295 = vmor %vm1287, %vm1293
    %vm1296 = vmand %vm1284, %vm1294
    %vm1297 = vmand %vm1285, %vm1295
    %v1298 = vsel %vm1296, 1.0, 0.0
    %v1299 = vsel %vm1297, 1.0, 0.0
    %v1300 = vsel %vm689, %v1298, 0.0
    %1301 = vadd.xlane.f32.xlu0 %v1300
    %v1302 = vpop.xlane.xlu0 %1301
    %v1303 = vsel %vm689, %v1299, 0.0
    %1304 = vadd.xlane.f32.xlu0 %v1303
    %v1305 = vpop.xlane.xlu0 %1304
    %v1306 = vsel %vm1284, 1.0, 0.0
    %v1307 = vsel %vm1285, 1.0, 0.0
    %v1308 = vsel %vm689, %v1306, 0.0
    %1309 = vadd.xlane.f32.xlu0 %v1308
    %v1310 = vpop.xlane.xlu0 %1309
    %v1311 = vsel %vm689, %v1307, 0.0
    %1312 = vadd.xlane.f32.xlu0 %v1311
    %v1313 = vpop.xlane.xlu0 %1312
    %v1314 = vmul.f32 %v1310, 0.8
    %v1315 = vmul.f32 %v1313, 0.8
    %v1316 = vceil.f32 %v1314
    %v1317 = vceil.f32 %v1315
    %vm1318 = vcmp.lt.f32.partialorder %v1302, %v1316
    %vm1319 = vcmp.lt.f32.partialorder %v1305, %v1317
    %v1320 = vmul.f32 %v1069, %v1234
    %v1321 = vmul.f32 %v1070, %v1249
    %v1322 = vmul.f32 %v1131, %v1234
    %v1323 = vmul.f32 %v1132, %v1249
    %v1324 = vmul.f32 %v1172, %v1234
    %v1325 = vmul.f32 %v1173, %v1249
    %vm1326 = vcmp.eq.f32.partialorder %v1250, 0.0
    %vm1327 = vcmp.eq.f32.partialorder %v1251, 0.0
    %vm1328 = vmand %vm1326, %vm1318
    %vm1329 = vmand %vm1327, %vm1319
    %v1330 = vsel %vm1328, 1.0, 0.0
    %v1331 = vsel %vm1329, 1.0, 0.0
    %vm1332 = vcmask 7168
    %v1333 = vsel %vm1332, %v1330, 0.0
    %v1334 = vsel %vm1332, %v1331, 0.0
    %v1335 = vadd.f32 %v1333, %v1334
    %v1336 = vrot.slane %v1335, 4
    %v1337 = vadd.f32 %v1335, %v1336
    %v1338 = vrot.slane %v1337, 2
    %v1339 = vadd.f32 %v1337, %v1338
    %v1340 = vrot.slane %v1339, 1
    %v1341 = vadd.f32 %v1339, %v1340
    %v1342 = vmax.f32 %v1341, 1.0
    %v1343 = vrcp.pop %v1342
    %v1344 = vmul.f32 %v1342, %v1343
    %v1345 = vsub.f32 1.0, %v1344
    %v1346 = vmul.f32 %v1343, %v1345
    %v1347 = vadd.f32 %v1343, %v1346
    %vm1348 = vweird.f32 %v1342
    %vm1349 = vweird.f32 %v1343
    %vm1350 = vmor %vm1348, %vm1349
    %v1351 = vsel %vm1350, %v1343, %v1347
    %v1352 = vand.u32 2147483647, %v1342
    %vm1353 = vcmp.eq.f32.partialorder %v1352, 8.507059e+37
    %v1354 = vand.u32 %v1342, 2147483648
    %v1355 = vor.u32 1.1754944e-38, %v1354
    %v1356 = vsel %vm1353, %v1355, %v1351
    %v1357 = vmul.f32 1.0, %v1356
    %vm1358 = vcmp.gt.f32.partialorder %v1341, 0.5
    %1360 = vset.pattern.permute.xlu0 0
    %1361 = vperm.xlu0 %1360, %v1330
    %v1362 = vpop.permute.xlu0 %1361
    %1365 = vset.pattern.permute.xlu0 0
    %1366 = vperm.xlu0 %1365, %v1331
    %v1367 = vpop.permute.xlu0 %1366
    %v1369 = vmul.f32 %v1362, %v1320
    %v1370 = vmul.f32 %v1367, %v1321
    %v1371 = vsel %vm1088, %v1369, 0.0
    %v1372 = vsel %vm1088, %v1370, 0.0
    %v1373 = vadd.f32 %v1371, %v1372
    %v1374 = vrot.slane %v1373, 4
    %v1375 = vadd.f32 %v1373, %v1374
    %v1376 = vrot.slane %v1375, 2
    %v1377 = vadd.f32 %v1375, %v1376
    %v1378 = vrot.slane %v1377, 1
    %v1379 = vadd.f32 %v1377, %v1378
    %1381 = vset.pattern.permute.xlu0 0
    %1382 = vperm.xlu0 %1381, %v1357
    %v1383 = vpop.permute.xlu0 %1382
    %v1385 = vmul.f32 %v1379, %v1383
    %vm1386 = vcmp.gt.f32.partialorder %v1330, 0.0
    %vm1387 = vcmp.gt.f32.partialorder %v1331, 0.0
    %v1388 = vsel %vm1386, 1, 0
    %v1389 = vsel %vm1387, 1, 0
    %1390 = vset.pattern.permute.xlu0 0
    %1391 = vperm.xlu0 %1390, %v1388
    %v1392 = vpop.permute.xlu0 %1391
    %1393 = vset.pattern.permute.xlu0 0
    %1394 = vperm.xlu0 %1393, %v1389
    %v1395 = vpop.permute.xlu0 %1394
    %vm1396 = vcmp.eq.s32.totalorder %v1392, 1
    %vm1397 = vcmp.eq.s32.totalorder %v1395, 1
    %v1398 = vsel %vm1396, %v1320, -3.4028235e+38
    %v1399 = vsel %vm1397, %v1321, -3.4028235e+38
    %v1400 = vsel %vm1088, %v1398, -inf
    %v1401 = vsel %vm1088, %v1399, -inf
    %v1402 = vmax.f32 %v1400, %v1401
    %v1403 = vrot.slane %v1402, 4
    %v1404 = vmax.f32 %v1402, %v1403
    %v1405 = vrot.slane %v1404, 2
    %v1406 = vmax.f32 %v1404, %v1405
    %v1407 = vrot.slane %v1406, 1
    %v1408 = vmax.f32 %v1406, %v1407
    %v1409 = vsel %vm1358, 1, 0
    %1410 = vset.pattern.permute.xlu0 0
    %1411 = vperm.xlu0 %1410, %v1409
    %v1412 = vpop.permute.xlu0 %1411
    %vm1413 = vcmp.eq.s32.totalorder %v1412, 1
    %v1414 = vsel %vm1413, %v1408, 0.0
    %v1415 = vmul.f32 %v1362, %v1322
    %v1416 = vmul.f32 %v1367, %v1323
    %v1417 = vsel %vm1088, %v1415, 0.0
    %v1418 = vsel %vm1088, %v1416, 0.0
    %v1419 = vadd.f32 %v1417, %v1418
    %v1420 = vrot.slane %v1419, 4
    %v1421 = vadd.f32 %v1419, %v1420
    %v1422 = vrot.slane %v1421, 2
    %v1423 = vadd.f32 %v1421, %v1422
    %v1424 = vrot.slane %v1423, 1
    %v1425 = vadd.f32 %v1423, %v1424
    %v1426 = vmul.f32 %v1425, %v1383
    %v1427 = vsel %vm1396, %v1322, -3.4028235e+38
    %v1428 = vsel %vm1397, %v1323, -3.4028235e+38
    %v1429 = vsel %vm1088, %v1427, -inf
    %v1430 = vsel %vm1088, %v1428, -inf
    %v1431 = vmax.f32 %v1429, %v1430
    %v1432 = vrot.slane %v1431, 4
    %v1433 = vmax.f32 %v1431, %v1432
    %v1434 = vrot.slane %v1433, 2
    %v1435 = vmax.f32 %v1433, %v1434
    %v1436 = vrot.slane %v1435, 1
    %v1437 = vmax.f32 %v1435, %v1436
    %v1438 = vsel %vm1413, %v1437, 0.0
    %v1439 = vmul.f32 %v1362, %v1324
    %v1440 = vmul.f32 %v1367, %v1325
    %v1441 = vsel %vm1088, %v1439, 0.0
    %v1442 = vsel %vm1088, %v1440, 0.0
    %v1443 = vadd.f32 %v1441, %v1442
    %v1444 = vrot.slane %v1443, 4
    %v1445 = vadd.f32 %v1443, %v1444
    %v1446 = vrot.slane %v1445, 2
    %v1447 = vadd.f32 %v1445, %v1446
    %v1448 = vrot.slane %v1447, 1
    %v1449 = vadd.f32 %v1447, %v1448
    %v1450 = vmul.f32 %v1449, %v1383
    %v1451 = vsel %vm1396, %v1324, -3.4028235e+38
    %v1452 = vsel %vm1397, %v1325, -3.4028235e+38
    %v1453 = vsel %vm1088, %v1451, -inf
    %v1454 = vsel %vm1088, %v1452, -inf
    %v1455 = vmax.f32 %v1453, %v1454
    %v1456 = vrot.slane %v1455, 4
    %v1457 = vmax.f32 %v1455, %v1456
    %v1458 = vrot.slane %v1457, 2
    %v1459 = vmax.f32 %v1457, %v1458
    %v1460 = vrot.slane %v1459, 1
    %v1461 = vmax.f32 %v1459, %v1460
    %v1462 = vsel %vm1413, %v1461, 0.0
    %vm1463 = vcmp.eq.f32.partialorder %v1250, 1.0
    %vm1464 = vcmp.eq.f32.partialorder %v1251, 1.0
    %vm1465 = vmand %vm1463, %vm1318
    %vm1466 = vmand %vm1464, %vm1319
    %v1467 = vsel %vm1465, 1.0, 0.0
    %v1468 = vsel %vm1466, 1.0, 0.0
    %v1469 = vsel %vm1332, %v1467, 0.0
    %v1470 = vsel %vm1332, %v1468, 0.0
    %v1471 = vadd.f32 %v1469, %v1470
    %v1472 = vrot.slane %v1471, 4
    %v1473 = vadd.f32 %v1471, %v1472
    %v1474 = vrot.slane %v1473, 2
    %v1475 = vadd.f32 %v1473, %v1474
    %v1476 = vrot.slane %v1475, 1
    %v1477 = vadd.f32 %v1475, %v1476
    %v1478 = vmax.f32 %v1477, 1.0
    %v1479 = vrcp.pop %v1478
    %v1480 = vmul.f32 %v1478, %v1479
    %v1481 = vsub.f32 1.0, %v1480
    %v1482 = vmul.f32 %v1479, %v1481
    %v1483 = vadd.f32 %v1479, %v1482
    %vm1484 = vweird.f32 %v1478
    %vm1485 = vweird.f32 %v1479
    %vm1486 = vmor %vm1484, %vm1485
    %v1487 = vsel %vm1486, %v1479, %v1483
    %v1488 = vand.u32 2147483647, %v1478
    %vm1489 = vcmp.eq.f32.partialorder %v1488, 8.507059e+37
    %v1490 = vand.u32 %v1478, 2147483648
    %v1491 = vor.u32 1.1754944e-38, %v1490
    %v1492 = vsel %vm1489, %v1491, %v1487
    %v1493 = vmul.f32 1.0, %v1492
    %vm1494 = vcmp.gt.f32.partialorder %v1477, 0.5
    %1496 = vset.pattern.permute.xlu0 0
    %1497 = vperm.xlu0 %1496, %v1467
    %v1498 = vpop.permute.xlu0 %1497
    %1501 = vset.pattern.permute.xlu0 0
    %1502 = vperm.xlu0 %1501, %v1468
    %v1503 = vpop.permute.xlu0 %1502
    %v1505 = vmul.f32 %v1498, %v1320
    %v1506 = vmul.f32 %v1503, %v1321
    %v1507 = vsel %vm1088, %v1505, 0.0
    %v1508 = vsel %vm1088, %v1506, 0.0
    %v1509 = vadd.f32 %v1507, %v1508
    %v1510 = vrot.slane %v1509, 4
    %v1511 = vadd.f32 %v1509, %v1510
    %v1512 = vrot.slane %v1511, 2
    %v1513 = vadd.f32 %v1511, %v1512
    %v1514 = vrot.slane %v1513, 1
    %v1515 = vadd.f32 %v1513, %v1514
    %1517 = vset.pattern.permute.xlu0 0
    %1518 = vperm.xlu0 %1517, %v1493
    %v1519 = vpop.permute.xlu0 %1518
    %v1521 = vmul.f32 %v1515, %v1519
    %vm1522 = vcmp.gt.f32.partialorder %v1467, 0.0
    %vm1523 = vcmp.gt.f32.partialorder %v1468, 0.0
    %v1524 = vsel %vm1522, 1, 0
    %v1525 = vsel %vm1523, 1, 0
    %1526 = vset.pattern.permute.xlu0 0
    %1527 = vperm.xlu0 %1526, %v1524
    %v1528 = vpop.permute.xlu0 %1527
    %1529 = vset.pattern.permute.xlu0 0
    %1530 = vperm.xlu0 %1529, %v1525
    %v1531 = vpop.permute.xlu0 %1530
    %vm1532 = vcmp.eq.s32.totalorder %v1528, 1
    %vm1533 = vcmp.eq.s32.totalorder %v1531, 1
    %v1534 = vsel %vm1532, %v1320, -3.4028235e+38
    %v1535 = vsel %vm1533, %v1321, -3.4028235e+38
    %v1536 = vsel %vm1088, %v1534, -inf
    %v1537 = vsel %vm1088, %v1535, -inf
    %v1538 = vmax.f32 %v1536, %v1537
    %v1539 = vrot.slane %v1538, 4
    %v1540 = vmax.f32 %v1538, %v1539
    %v1541 = vrot.slane %v1540, 2
    %v1542 = vmax.f32 %v1540, %v1541
    %v1543 = vrot.slane %v1542, 1
    %v1544 = vmax.f32 %v1542, %v1543
    %v1545 = vsel %vm1494, 1, 0
    %1546 = vset.pattern.permute.xlu0 0
    %1547 = vperm.xlu0 %1546, %v1545
    %v1548 = vpop.permute.xlu0 %1547
    %vm1549 = vcmp.eq.s32.totalorder %v1548, 1
    %v1550 = vsel %vm1549, %v1544, 0.0
    %v1551 = vmul.f32 %v1498, %v1322
    %v1552 = vmul.f32 %v1503, %v1323
    %v1553 = vsel %vm1088, %v1551, 0.0
    %v1554 = vsel %vm1088, %v1552, 0.0
    %v1555 = vadd.f32 %v1553, %v1554
    %v1556 = vrot.slane %v1555, 4
    %v1557 = vadd.f32 %v1555, %v1556
    %v1558 = vrot.slane %v1557, 2
    %v1559 = vadd.f32 %v1557, %v1558
    %v1560 = vrot.slane %v1559, 1
    %v1561 = vadd.f32 %v1559, %v1560
    %v1562 = vmul.f32 %v1561, %v1519
    %v1563 = vsel %vm1532, %v1322, -3.4028235e+38
    %v1564 = vsel %vm1533, %v1323, -3.4028235e+38
    %v1565 = vsel %vm1088, %v1563, -inf
    %v1566 = vsel %vm1088, %v1564, -inf
    %v1567 = vmax.f32 %v1565, %v1566
    %v1568 = vrot.slane %v1567, 4
    %v1569 = vmax.f32 %v1567, %v1568
    %v1570 = vrot.slane %v1569, 2
    %v1571 = vmax.f32 %v1569, %v1570
    %v1572 = vrot.slane %v1571, 1
    %v1573 = vmax.f32 %v1571, %v1572
    %v1574 = vsel %vm1549, %v1573, 0.0
    %v1575 = vmul.f32 %v1498, %v1324
    %v1576 = vmul.f32 %v1503, %v1325
    %v1577 = vsel %vm1088, %v1575, 0.0
    %v1578 = vsel %vm1088, %v1576, 0.0
    %v1579 = vadd.f32 %v1577, %v1578
    %v1580 = vrot.slane %v1579, 4
    %v1581 = vadd.f32 %v1579, %v1580
    %v1582 = vrot.slane %v1581, 2
    %v1583 = vadd.f32 %v1581, %v1582
    %v1584 = vrot.slane %v1583, 1
    %v1585 = vadd.f32 %v1583, %v1584
    %v1586 = vmul.f32 %v1585, %v1519
    %v1587 = vsel %vm1532, %v1324, -3.4028235e+38
    %v1588 = vsel %vm1533, %v1325, -3.4028235e+38
    %v1589 = vsel %vm1088, %v1587, -inf
    %v1590 = vsel %vm1088, %v1588, -inf
    %v1591 = vmax.f32 %v1589, %v1590
    %v1592 = vrot.slane %v1591, 4
    %v1593 = vmax.f32 %v1591, %v1592
    %v1594 = vrot.slane %v1593, 2
    %v1595 = vmax.f32 %v1593, %v1594
    %v1596 = vrot.slane %v1595, 1
    %v1597 = vmax.f32 %v1595, %v1596
    %v1598 = vsel %vm1549, %v1597, 0.0
    %v1599 = vld [vmem:[%s11] sm:$0x1]
    %vm1600 = vcmask 1040384
    %v1601 = vsel %vm1600, %v1385, %v1521
    %v1602 = vsel %vm1600, %v1414, %v1550
    %v1603 = vpack.c.bf16 %v1601, %v1601
    %v1604 = vld [vmem:[%s9] sm:$0xf]
    %v1605 = vld [vmem:[%s9 + $0x4] sm:$0xf]
    %v1606 = vld [vmem:[%s9 + $0x8] sm:$0xf]
    %v1607 = vld [vmem:[%s9 + $0xc] sm:$0xf]
    %v1612 = vunpack.c.l.b16 %v1604
    %v1613 = vunpack.c.l.b16 %v1605
    %v1614 = vunpack.c.l.b16 %v1606
    %v1615 = vunpack.c.l.b16 %v1607
    %v1616 = vpack.c.b16 %v1613, %v1612
    %v1617 = vpack.c.b16 %v1615, %v1614
    %v1621 = vsel %vm1088, %v1603, 0
    %1623 = vmatpush.bf16.msra.mxu0 0
    %1624 = vmatpush.bf16.msra.mxu0 0
    %1625 = vmatpush.bf16.msra.mxu0 0
    %1626 = vmatpush.bf16.msra.mxu0 0
    %1627 = vmatpush.bf16.msra.mxu0 0
    %1628 = vmatpush.bf16.msra.mxu0 0
    %1629 = vmatpush.bf16.msra.mxu0 %v1617
    %1630 = vmatpush.bf16.msra.mxu0 %v1616
    %1631 = vmatmul.bf16.gmra.mxu0 %v1621
    %v1632 = vpop.f32.mrf.mxu0
    %v1633 = vadd.f32 0.0, %v1632
    %v1634 = vpop.f32.mrf.mxu0
    %1635 = vdwg.mxu0
    %v1637 = vperm.slane %v1599, 0
    %v1639 = vadd.f32 %v1637, %v1633
    %v1640 = vpack.c.bf16 %v1602, %v1602
    %v1641 = vld [vmem:[%s10] sm:$0xf]
    %v1642 = vld [vmem:[%s10 + $0x4] sm:$0xf]
    %v1643 = vld [vmem:[%s10 + $0x8] sm:$0xf]
    %v1644 = vld [vmem:[%s10 + $0xc] sm:$0xf]
    %v1649 = vunpack.c.l.b16 %v1641
    %v1650 = vunpack.c.l.b16 %v1642
    %v1651 = vunpack.c.l.b16 %v1643
    %v1652 = vunpack.c.l.b16 %v1644
    %v1653 = vpack.c.b16 %v1650, %v1649
    %v1654 = vpack.c.b16 %v1652, %v1651
    %v1658 = vsel %vm1088, %v1640, 0
    %1660 = vmatpush.bf16.msra.mxu0 0
    %1661 = vmatpush.bf16.msra.mxu0 0
    %1662 = vmatpush.bf16.msra.mxu0 0
    %1663 = vmatpush.bf16.msra.mxu0 0
    %1664 = vmatpush.bf16.msra.mxu0 0
    %1665 = vmatpush.bf16.msra.mxu0 0
    %1666 = vmatpush.bf16.msra.mxu0 %v1654
    %1667 = vmatpush.bf16.msra.mxu0 %v1653
    %1668 = vmatmul.bf16.gmra.mxu0 %v1658
    %v1669 = vpop.f32.mrf.mxu0
    %v1670 = vadd.f32 0.0, %v1669
    %v1671 = vpop.f32.mrf.mxu0
    %1672 = vdwg.mxu0
    %v1673 = vadd.f32 %v1639, %v1670
    %v1674 = vsel %vm1600, %v1426, %v1562
    %v1675 = vsel %vm1600, %v1438, %v1574
    %v1676 = vpack.c.bf16 %v1674, %v1674
    %v1677 = vld [vmem:[%s9 + $0x10] sm:$0xf]
    %v1678 = vld [vmem:[%s9 + $0x14] sm:$0xf]
    %v1679 = vld [vmem:[%s9 + $0x18] sm:$0xf]
    %v1680 = vld [vmem:[%s9 + $0x1c] sm:$0xf]
    %v1685 = vunpack.c.l.b16 %v1677
    %v1686 = vunpack.c.l.b16 %v1678
    %v1687 = vunpack.c.l.b16 %v1679
    %v1688 = vunpack.c.l.b16 %v1680
    %v1689 = vpack.c.b16 %v1686, %v1685
    %v1690 = vpack.c.b16 %v1688, %v1687
    %v1694 = vsel %vm1088, %v1676, 0
    %1696 = vmatpush.bf16.msra.mxu0 0
    %1697 = vmatpush.bf16.msra.mxu0 0
    %1698 = vmatpush.bf16.msra.mxu0 0
    %1699 = vmatpush.bf16.msra.mxu0 0
    %1700 = vmatpush.bf16.msra.mxu0 0
    %1701 = vmatpush.bf16.msra.mxu0 0
    %1702 = vmatpush.bf16.msra.mxu0 %v1690
    %1703 = vmatpush.bf16.msra.mxu0 %v1689
    %1704 = vmatmul.bf16.gmra.mxu0 %v1694
    %v1705 = vpop.f32.mrf.mxu0
    %v1706 = vadd.f32 0.0, %v1705
    %v1707 = vpop.f32.mrf.mxu0
    %1708 = vdwg.mxu0
    %v1709 = vadd.f32 %v1673, %v1706
    %v1710 = vpack.c.bf16 %v1675, %v1675
    %v1711 = vld [vmem:[%s10 + $0x10] sm:$0xf]
    %v1712 = vld [vmem:[%s10 + $0x14] sm:$0xf]
    %v1713 = vld [vmem:[%s10 + $0x18] sm:$0xf]
    %v1714 = vld [vmem:[%s10 + $0x1c] sm:$0xf]
    %v1719 = vunpack.c.l.b16 %v1711
    %v1720 = vunpack.c.l.b16 %v1712
    %v1721 = vunpack.c.l.b16 %v1713
    %v1722 = vunpack.c.l.b16 %v1714
    %v1723 = vpack.c.b16 %v1720, %v1719
    %v1724 = vpack.c.b16 %v1722, %v1721
    %v1728 = vsel %vm1088, %v1710, 0
    %1730 = vmatpush.bf16.msra.mxu0 0
    %1731 = vmatpush.bf16.msra.mxu0 0
    %1732 = vmatpush.bf16.msra.mxu0 0
    %1733 = vmatpush.bf16.msra.mxu0 0
    %1734 = vmatpush.bf16.msra.mxu0 0
    %1735 = vmatpush.bf16.msra.mxu0 0
    %1736 = vmatpush.bf16.msra.mxu0 %v1724
    %1737 = vmatpush.bf16.msra.mxu0 %v1723
    %1738 = vmatmul.bf16.gmra.mxu0 %v1728
    %v1739 = vpop.f32.mrf.mxu0
    %v1740 = vadd.f32 0.0, %v1739
    %v1741 = vpop.f32.mrf.mxu0
    %1742 = vdwg.mxu0
    %v1743 = vadd.f32 %v1709, %v1740
    %v1744 = vsel %vm1600, %v1450, %v1586
    %v1745 = vsel %vm1600, %v1462, %v1598
    %v1746 = vpack.c.bf16 %v1744, %v1744
    %v1747 = vld [vmem:[%s9 + $0x20] sm:$0xf]
    %v1748 = vld [vmem:[%s9 + $0x24] sm:$0xf]
    %v1749 = vld [vmem:[%s9 + $0x28] sm:$0xf]
    %v1750 = vld [vmem:[%s9 + $0x2c] sm:$0xf]
    %v1755 = vunpack.c.l.b16 %v1747
    %v1756 = vunpack.c.l.b16 %v1748
    %v1757 = vunpack.c.l.b16 %v1749
    %v1758 = vunpack.c.l.b16 %v1750
    %v1759 = vpack.c.b16 %v1756, %v1755
    %v1760 = vpack.c.b16 %v1758, %v1757
    %v1764 = vsel %vm1088, %v1746, 0
    %1766 = vmatpush.bf16.msra.mxu0 0
    %1767 = vmatpush.bf16.msra.mxu0 0
    %1768 = vmatpush.bf16.msra.mxu0 0
    %1769 = vmatpush.bf16.msra.mxu0 0
    %1770 = vmatpush.bf16.msra.mxu0 0
    %1771 = vmatpush.bf16.msra.mxu0 0
    %1772 = vmatpush.bf16.msra.mxu0 %v1760
    %1773 = vmatpush.bf16.msra.mxu0 %v1759
    %1774 = vmatmul.bf16.gmra.mxu0 %v1764
    %v1775 = vpop.f32.mrf.mxu0
    %v1776 = vadd.f32 0.0, %v1775
    %v1777 = vpop.f32.mrf.mxu0
    %1778 = vdwg.mxu0
    %v1779 = vadd.f32 %v1743, %v1776
    %v1780 = vpack.c.bf16 %v1745, %v1745
    %v1781 = vld [vmem:[%s10 + $0x20] sm:$0xf]
    %v1782 = vld [vmem:[%s10 + $0x24] sm:$0xf]
    %v1783 = vld [vmem:[%s10 + $0x28] sm:$0xf]
    %v1784 = vld [vmem:[%s10 + $0x2c] sm:$0xf]
    %v1789 = vunpack.c.l.b16 %v1781
    %v1790 = vunpack.c.l.b16 %v1782
    %v1791 = vunpack.c.l.b16 %v1783
    %v1792 = vunpack.c.l.b16 %v1784
    %v1793 = vpack.c.b16 %v1790, %v1789
    %v1794 = vpack.c.b16 %v1792, %v1791
    %v1798 = vsel %vm1088, %v1780, 0
    %1800 = vmatpush.bf16.msra.mxu0 0
    %1801 = vmatpush.bf16.msra.mxu0 0
    %1802 = vmatpush.bf16.msra.mxu0 0
    %1803 = vmatpush.bf16.msra.mxu0 0
    %1804 = vmatpush.bf16.msra.mxu0 0
    %1805 = vmatpush.bf16.msra.mxu0 0
    %1806 = vmatpush.bf16.msra.mxu0 %v1794
    %1807 = vmatpush.bf16.msra.mxu0 %v1793
    %1808 = vmatmul.bf16.gmra.mxu0 %v1798
    %v1809 = vpop.f32.mrf.mxu0
    %v1810 = vadd.f32 0.0, %v1809
    %v1811 = vpop.f32.mrf.mxu0
    %1812 = vdwg.mxu0
    %v1813 = vadd.f32 %v1779, %v1810
    %v1814 = vmax.f32 %v1813, 0.0
    %v1815 = vpack.c.bf16 %v1814, %v1814
    %v1816 = vld [vmem:[%s12] sm:$0xf]
    %v1817 = vld [vmem:[%s12 + $0x4] sm:$0xf]
    %v1818 = vld [vmem:[%s12 + $0x8] sm:$0xf]
    %v1819 = vld [vmem:[%s12 + $0xc] sm:$0xf]
    %v1820 = vld [vmem:[%s13] sm:$0x1]
    %v1822 = vperm.slane %v1820, 0
    %v1828 = vunpack.c.l.b16 %v1816
    %v1829 = vunpack.c.l.b16 %v1817
    %v1830 = vunpack.c.l.b16 %v1818
    %v1831 = vunpack.c.l.b16 %v1819
    %v1832 = vpack.c.b16 %v1829, %v1828
    %v1833 = vpack.c.b16 %v1831, %v1830
    %v1837 = vsel %vm1088, %v1815, 0
    %1839 = vmatpush.bf16.msra.mxu0 0
    %1840 = vmatpush.bf16.msra.mxu0 0
    %1841 = vmatpush.bf16.msra.mxu0 0
    %1842 = vmatpush.bf16.msra.mxu0 0
    %1843 = vmatpush.bf16.msra.mxu0 0
    %1844 = vmatpush.bf16.msra.mxu0 0
    %1845 = vmatpush.bf16.msra.mxu0 %v1833
    %1846 = vmatpush.bf16.msra.mxu0 %v1832
    %1847 = vmatmul.bf16.gmra.mxu0 %v1837
    %v1848 = vpop.f32.mrf.mxu0
    %v1849 = vadd.f32 %v1822, %v1848
    %v1850 = vpop.f32.mrf.mxu0
    %1851 = vdwg.mxu0
    %v1852 = vmax.f32 %v1849, 0.0
    %v1853 = vpack.c.bf16 %v1852, %v1852
    %v1854 = vld [vmem:[%s14] sm:$0xf]
    %v1855 = vld [vmem:[%s14 + $0x4] sm:$0xf]
    %v1856 = vld [vmem:[%s15] sm:$0x1]
    %v1858 = vperm.slane %v1856, 0
    %v1862 = vunpack.c.l.b16 %v1854
    %v1863 = vunpack.c.l.b16 %v1855
    %v1864 = vpack.c.b16 %v1863, %v1862
    %v1867 = vsel %vm689, %v1853, 0
    %1869 = vmatpush.bf16.msra.mxu0 0
    %1870 = vmatpush.bf16.msra.mxu0 0
    %1871 = vmatpush.bf16.msra.mxu0 0
    %1872 = vmatpush.bf16.msra.mxu0 0
    %1873 = vmatpush.bf16.msra.mxu0 0
    %1874 = vmatpush.bf16.msra.mxu0 0
    %1875 = vmatpush.bf16.msra.mxu0 0
    %1876 = vmatpush.bf16.msra.mxu0 %v1864
    %1877 = vmatmul.bf16.gmra.mxu0 %v1867
    %v1878 = vpop.f32.mrf.mxu0
    %v1879 = vadd.f32 %v1858, %v1878
    %v1880 = vpop.f32.mrf.mxu0
    %1881 = vdwg.mxu0
    %vm1882 = vcmask 17408
    %1883 = vst.msk [vmem:[#allocation7] sm:$0x3] %vm1882, %v1879
    // Predicated region
    $region74: #{graph_cls_forward.1} parent=1 // pred_check
      _
    $region75: #{graph_cls_forward.1} parent=1 // pred_check_branch
      %1885 = sbr.rel (0) target = $region77
    $region76: #{graph_cls_forward.1} parent=1 // pred_region
      %1887 = vsyncadd [#allocation3], 0
      %s1889 = sshll.u32 [#allocation7], 4
      %s1890 = int_to_ptr.vmem [resolvable:$true] %s1889
      %s1891 = sshll.u32 %s16, 4
      %s1892 = int_to_ptr.hbm [resolvable:$true] %s1891
      %1894 = dma.vmem_to_hbm [thread:$0]  %s1890, 32, %s1892, [#allocation3]
    $region77: #{graph_cls_forward.1} parent=1 // pred_fallthru
      _
    // Predicated region
    $region78: #{graph_cls_forward.1} parent=1 // pred_check
      _
    $region79: #{graph_cls_forward.1} parent=1 // pred_check_branch
      %1896 = sbr.rel (0) target = $region81
    $region80: #{graph_cls_forward.1} parent=1 // pred_region
      %1898 = dma.done [#allocation3], 32
    $region81: #{graph_cls_forward.1} parent=1 // pred_fallthru
      _
    %1899 = vsyncpa [#allocation3], 1
    %1900 = vsyncpa [#allocation4], 1
    %1901 = vsyncpa [#allocation6], 1

</llo_original>
